<compile_context>
chip_gen: v7x
topology: tpu7x:2x2x1
jax: 0.10.0
libtpu: 0.0.40
codegen_flags: <defaults>
</compile_context>

<pallas_src>
import math
import jax
import jax.numpy as jnp
from jax.experimental import pallas as pl
from jax.experimental.pallas import tpu as pltpu

# ---------------- config (small, synthetic) ----------------
B, T, C = 2, 8, 32
N_HEAD = 4
N_QUERY_GROUPS = 4                      # MHA (no GQA expansion path)
HEAD_SIZE = C // N_HEAD                 # 8
ROPE_N_ELEM = HEAD_SIZE                 # rotary_percentage = 1.0
INTERMEDIATE = 64
EPS = 1e-5
ROPE_BASE = 10000.0
Q_PER_KV = N_HEAD // N_QUERY_GROUPS     # 1
TOTAL_QKV = Q_PER_KV + 2                # 3


# ---------------- helpers ----------------
def _rmsnorm(v, w):
    ms = jnp.mean(v * v, axis=-1, keepdims=True)
    return v * jax.lax.rsqrt(ms + EPS) * w


# ---------------- the fused Block kernel (one batch element per grid step) ----
def block_kernel(x_ref, cos_ref, sin_ref, bias_ref, wqkv_ref, wrot_ref, wo_ref,
                 n1_ref, n2_ref, wgu_ref, wdown_ref, out_ref):
    x = x_ref[...]                                                   # (T, C)

    # ---- norm_1 + head-batched qkv projection: q/k/v land in (H, T, hs) ----
    xn = _rmsnorm(x, n1_ref[...])
    xn_qkv = jnp.broadcast_to(xn[None], (3 * N_HEAD, T, C))
    xn_qk = jnp.broadcast_to(xn[None], (2 * N_HEAD, T, C))
    qkv = jnp.einsum('htc,hcd->htd', xn_qkv, wqkv_ref[...],
                     preferred_element_type=jnp.float32)             # (3H, T, hs)
    qk_rot = jnp.einsum('htc,hcd->htd', xn_qk, wrot_ref[...],
                        preferred_element_type=jnp.float32)          # (2H, T, hs)

    # ---- RoPE: rotate-half permutation, sin sign & score scale pre-folded ----
    qk = qkv[:2 * N_HEAD] * cos_ref[...] + qk_rot * sin_ref[...]     # (2H, T, hs)
    q = qk[:N_HEAD]                                                  # (H, T, hs)
    k = qk[N_HEAD:]
    v = qkv[2 * N_HEAD:]

    # ---- causal attention: per-head batched matmuls, no redundant FLOPs ----
    s = jnp.einsum('htd,hsd->hts', q, k,
                   preferred_element_type=jnp.float32)               # (H, T, T)
    s = s + bias_ref[...]                                            # additive causal bias
    s = s - jnp.max(s, axis=-1, keepdims=True)
    p = jnp.exp(s)
    l = jnp.sum(p, axis=-1, keepdims=True)                           # (H, T, 1)
    y = jnp.einsum('hts,hsd->htd', p, v,
                   preferred_element_type=jnp.float32)               # (H, T, hs)
    y = y * pl.reciprocal(l, approx=True)                            # EUP; folded after p@v

    # ---- output projection (per-head weights, summed over heads) + residual 1 ----
    attn = jnp.sum(jnp.einsum('htd,hdc->htc', y, wo_ref[...],
                              preferred_element_type=jnp.float32), axis=0)    # (T, C)
    x1 = attn + x

    # ---- norm_2 + fused SwiGLU MLP + residual 2 ----
    x2n = _rmsnorm(x1, n2_ref[...])
    gu = jnp.dot(x2n, wgu_ref[...], preferred_element_type=jnp.float32)       # (T, 2I)
    act = jax.nn.silu(gu[:, :INTERMEDIATE]) * gu[:, INTERMEDIATE:]
    mlp = jnp.dot(act, wdown_ref[...], preferred_element_type=jnp.float32)    # (T, C)
    out_ref[...] = x1 + mlp


# ---------------- wrapper-side parameter preparation ----------------
def _prep_params(cos, sin, attn_w, proj_w, n1_w, n2_w, fc1_w, fc2_w, down_w):
    half = HEAD_SIZE // 2
    scale = 1.0 / math.sqrt(HEAD_SIZE)

    # torch fused qkv weight (out, in) with per-group [q..., k, v] interleaving
    w_r = attn_w.reshape(N_QUERY_GROUPS, TOTAL_QKV, HEAD_SIZE, C)
    wq = w_r[:, :Q_PER_KV].reshape(N_HEAD, HEAD_SIZE, C)
    wk = w_r[:, Q_PER_KV:Q_PER_KV + 1].reshape(N_QUERY_GROUPS, HEAD_SIZE, C)
    wv = w_r[:, Q_PER_KV + 1:].reshape(N_QUERY_GROUPS, HEAD_SIZE, C)

    # per-head (C, hs) matmul weights; fold the attention score scale into q
    wq3 = jnp.transpose(wq, (0, 2, 1)) * scale                        # (H, C, hs)
    wk3 = jnp.transpose(wk, (0, 2, 1))
    wv3 = jnp.transpose(wv, (0, 2, 1))
    w_qkv = jnp.concatenate([wq3, wk3, wv3], axis=0)                  # (3H, C, hs)

    # rotate-half as a per-head hs-dim permutation folded into a q|k-only copy
    partner = jnp.concatenate([jnp.arange(half, HEAD_SIZE), jnp.arange(0, half)])
    w_rot = jnp.concatenate([wq3[..., partner], wk3[..., partner]], axis=0)   # (2H, C, hs)

    # sign folded into sin so the kernel's RoPE is a pure VPU FMA
    sign = jnp.concatenate([-jnp.ones((half,), jnp.float32),
                            jnp.ones((half,), jnp.float32)])
    sin_signed = sin * sign[None, :]                                  # (T, hs)

    # causal additive bias precomputed wrapper-side (no in-kernel iota/select)
    bias = jnp.where(jnp.tril(jnp.ones((T, T), bool)),
                     jnp.float32(0.0), jnp.float32(-1e30))            # (T, T)

    # per-head output-projection weights (H, hs, C)
    w_o = jnp.transpose(proj_w.reshape(C, N_HEAD, HEAD_SIZE), (1, 2, 0))

    # fused gate|up (C, 2I) weight and unpadded (I, C) down projection
    w_gu = jnp.concatenate([fc1_w, fc2_w], axis=0).T                  # (C, 2I)
    w_down = down_w.T                                                 # (I, C)

    n1 = n1_w.reshape(1, C)
    n2 = n2_w.reshape(1, C)
    return cos, sin_signed, bias, w_qkv, w_rot, w_o, n1, n2, w_gu, w_down


# ---------------- wrapper ----------------
def block_forward(x, cos, sin, attn_w, proj_w, n1_w, n2_w, fc1_w, fc2_w, down_w):
    assert N_HEAD == N_QUERY_GROUPS, "GQA (q_per_kv > 1) not supported by this kernel"
    assert ROPE_N_ELEM == HEAD_SIZE, "partial rotary not supported by this kernel"

    (cos_hs, sin_signed, bias, w_qkv, w_rot, w_o,
     n1, n2, w_gu, w_down) = _prep_params(cos, sin, attn_w, proj_w, n1_w, n2_w,
                                          fc1_w, fc2_w, down_w)

    H3, H2 = 3 * N_HEAD, 2 * N_HEAD
    I2 = 2 * INTERMEDIATE

    # Batch on a parallel grid axis: removes the B^2 cross-batch score FLOPs of
    # the old collapsed layout; v7x's two TensorCores shard it, v5e/v6e loop.
    in_specs = [
        pl.BlockSpec((pl.Squeezed(), T, C), lambda b: (b, 0, 0)),     # x
        pl.BlockSpec((T, HEAD_SIZE), lambda b: (0, 0)),               # cos
        pl.BlockSpec((T, HEAD_SIZE), lambda b: (0, 0)),               # sin (sign folded)
        pl.BlockSpec((T, T), lambda b: (0, 0)),                       # causal bias
        pl.BlockSpec((H3, C, HEAD_SIZE), lambda b: (0, 0, 0)),        # w_qkv (per-head)
        pl.BlockSpec((H2, C, HEAD_SIZE), lambda b: (0, 0, 0)),        # w_rot (q|k only)
        pl.BlockSpec((N_HEAD, HEAD_SIZE, C), lambda b: (0, 0, 0)),    # w_o (per-head)
        pl.BlockSpec((1, C), lambda b: (0, 0)),                       # norm_1 weight
        pl.BlockSpec((1, C), lambda b: (0, 0)),                       # norm_2 weight
        pl.BlockSpec((C, I2), lambda b: (0, 0)),                      # gate|up
        pl.BlockSpec((INTERMEDIATE, C), lambda b: (0, 0)),            # down
    ]
    out_specs = pl.BlockSpec((pl.Squeezed(), T, C), lambda b: (b, 0, 0))

    out = pl.pallas_call(
        block_kernel,
        out_shape=jax.ShapeDtypeStruct((B, T, C), jnp.float32),
        grid=(B,),
        in_specs=in_specs,
        out_specs=out_specs,
        compiler_params=pltpu.CompilerParams(dimension_semantics=("parallel",)),
    )(x, cos_hs, sin_signed, bias, w_qkv, w_rot, w_o, n1, n2, w_gu, w_down)
    return out


# ---------------- pure-JAX reference (mirrors the PyTorch module) ----------------
def reference_block(x, cos, sin, attn_w, proj_w, n1, n2, fc1_w, fc2_w, down_w):
    def rmsnorm(v, w):
        ms = jnp.mean(v * v, axis=-1, keepdims=True)
        return v * jax.lax.rsqrt(ms + EPS) * w

    def rope(t):
        half = HEAD_SIZE // 2
        a, b = t[..., :half], t[..., half:]
        rot = jnp.concatenate([-b, a], axis=-1)
        return t * cos[None, None] + rot * sin[None, None]

    xn = rmsnorm(x, n1)
    qkv = xn @ attn_w.T                                   # (B, T, 96)
    qkv = qkv.reshape(B, T, N_QUERY_GROUPS, TOTAL_QKV, HEAD_SIZE)
    qkv = jnp.transpose(qkv, (0, 2, 3, 1, 4))             # (B, ng, total, T, hs)
    q = qkv[:, :, :Q_PER_KV].reshape(B, -1, T, HEAD_SIZE)
    k = qkv[:, :, Q_PER_KV:Q_PER_KV + 1].reshape(B, -1, T, HEAD_SIZE)
    v = qkv[:, :, Q_PER_KV + 1:].reshape(B, -1, T, HEAD_SIZE)
    q, k = rope(q), rope(k)
    scale = 1.0 / math.sqrt(HEAD_SIZE)
    s = jnp.einsum('bhtd,bhsd->bhts', q, k) * scale
    causal = jnp.tril(jnp.ones((T, T), bool))
    s = jnp.where(causal, s, -jnp.inf)
    p = jax.nn.softmax(s, axis=-1)
    y = jnp.einsum('bhts,bhsd->bhtd', p, v)
    y = jnp.transpose(y, (0, 2, 1, 3)).reshape(B, T, N_HEAD * HEAD_SIZE)
    attn_out = y @ proj_w.T
    x1 = attn_out + x
    x2n = rmsnorm(x1, n2)
    mlp = (jax.nn.silu(x2n @ fc1_w.T) * (x2n @ fc2_w.T)) @ down_w.T
    return x1 + mlp


if __name__ == "__main__":
    key = jax.random.PRNGKey(0)
    ks = jax.random.split(key, 9)

    # deterministic synthetic parameters (PyTorch Linear layout: (out, in))
    qkv_out = (N_HEAD + 2 * N_QUERY_GROUPS) * HEAD_SIZE            # 96
    attn_w = 0.02 * jax.random.normal(ks[0], (qkv_out, C), jnp.float32)
    proj_w = 0.02 * jax.random.normal(ks[1], (C, N_HEAD * HEAD_SIZE), jnp.float32)
    fc1_w = 0.02 * jax.random.normal(ks[2], (INTERMEDIATE, C), jnp.float32)
    fc2_w = 0.02 * jax.random.normal(ks[3], (INTERMEDIATE, C), jnp.float32)
    down_w = 0.02 * jax.random.normal(ks[4], (C, INTERMEDIATE), jnp.float32)
    n1_w = 1.0 + 0.1 * jax.random.normal(ks[5], (C,), jnp.float32)
    n2_w = 1.0 + 0.1 * jax.random.normal(ks[6], (C,), jnp.float32)

    # input + litgpt-style rope cache
    x = jax.random.normal(ks[7], (B, T, C), jnp.float32)
    theta = 1.0 / (ROPE_BASE ** (jnp.arange(0, ROPE_N_ELEM, 2, dtype=jnp.float32) / ROPE_N_ELEM))
    idx_theta = jnp.outer(jnp.arange(T, dtype=jnp.float32), theta)
    idx_theta = jnp.concatenate([idx_theta, idx_theta], axis=-1)   # (T, rope_n_elem)
    cos, sin = jnp.cos(idx_theta), jnp.sin(idx_theta)

    ref = reference_block(x, cos, sin, attn_w, proj_w, n1_w, n2_w, fc1_w, fc2_w, down_w)

    out = jax.block_until_ready(
        block_forward(x, cos, sin, attn_w, proj_w, n1_w, n2_w, fc1_w, fc2_w, down_w))
    assert out.shape == (B, T, C)
    err = jnp.max(jnp.abs(out - ref))
    assert jnp.allclose(out, ref, rtol=2e-3, atol=2e-3), f"max abs diff {err}"

    print("KERNEL_OK")
</pallas_src>

<mosaic_0001>
module attributes {stable_mosaic.version = 11 : i64} {
  func.func @block_kernel(%arg0: i32, %arg1: memref<1x8x32xf32, #tpu.memory_space<vmem>>, %arg2: memref<8x8xf32, #tpu.memory_space<vmem>>, %arg3: memref<8x8xf32, #tpu.memory_space<vmem>>, %arg4: memref<8x8xf32, #tpu.memory_space<vmem>>, %arg5: memref<12x32x8xf32, #tpu.memory_space<vmem>>, %arg6: memref<8x32x8xf32, #tpu.memory_space<vmem>>, %arg7: memref<4x8x32xf32, #tpu.memory_space<vmem>>, %arg8: memref<1x32xf32, #tpu.memory_space<vmem>>, %arg9: memref<1x32xf32, #tpu.memory_space<vmem>>, %arg10: memref<32x128xf32, #tpu.memory_space<vmem>>, %arg11: memref<64x32xf32, #tpu.memory_space<vmem>>, %arg12: memref<1x8x32xf32, #tpu.memory_space<vmem>>) attributes {dimension_semantics = [#tpu.dimension_semantics<parallel>], iteration_bounds = array<i64: 2>, scalar_prefetch = 0 : i64, scratch_operands = 0 : i64, tpu.core_type = #tpu.core_type<tc>, window_params = [{transform_indices = @transform_0, window_bounds = array<i64: 1, 8, 32>}, {pipeline_mode = #tpu.pipeline_mode<synchronous>, transform_indices = @transform_1, window_bounds = array<i64: 8, 8>}, {pipeline_mode = #tpu.pipeline_mode<synchronous>, transform_indices = @transform_2, window_bounds = array<i64: 8, 8>}, {pipeline_mode = #tpu.pipeline_mode<synchronous>, transform_indices = @transform_3, window_bounds = array<i64: 8, 8>}, {pipeline_mode = #tpu.pipeline_mode<synchronous>, transform_indices = @transform_4, window_bounds = array<i64: 12, 32, 8>}, {pipeline_mode = #tpu.pipeline_mode<synchronous>, transform_indices = @transform_5, window_bounds = array<i64: 8, 32, 8>}, {pipeline_mode = #tpu.pipeline_mode<synchronous>, transform_indices = @transform_6, window_bounds = array<i64: 4, 8, 32>}, {pipeline_mode = #tpu.pipeline_mode<synchronous>, transform_indices = @transform_7, window_bounds = array<i64: 1, 32>}, {pipeline_mode = #tpu.pipeline_mode<synchronous>, transform_indices = @transform_8, window_bounds = array<i64: 1, 32>}, {pipeline_mode = #tpu.pipeline_mode<synchronous>, transform_indices = @transform_9, window_bounds = array<i64: 32, 128>}, {pipeline_mode = #tpu.pipeline_mode<synchronous>, transform_indices = @transform_10, window_bounds = array<i64: 64, 32>}, {transform_indices = @transform_11, window_bounds = array<i64: 1, 8, 32>}]} {
    %c0 = arith.constant 0 : index
    %c0_0 = arith.constant 0 : index
    %c0_1 = arith.constant 0 : index
    %0 = vector.load %arg1[%c0, %c0_0, %c0_1] : memref<1x8x32xf32, #tpu.memory_space<vmem>>, vector<1x8x32xf32>
    %1 = vector.shape_cast %0 : vector<1x8x32xf32> to vector<8x32xf32>
    %c0_2 = arith.constant 0 : index
    %c0_3 = arith.constant 0 : index
    %2 = vector.load %arg8[%c0_2, %c0_3] : memref<1x32xf32, #tpu.memory_space<vmem>>, vector<1x32xf32>
    %3 = arith.mulf %1, %1 : vector<8x32xf32>
    %cst = arith.constant dense<0.000000e+00> : vector<8xf32>
    %4 = vector.multi_reduction <add>, %3, %cst [1] : vector<8x32xf32> to vector<8xf32>
    %5 = vector.shape_cast %4 : vector<8xf32> to vector<8x1xf32>
    %cst_4 = arith.constant 3.200000e+01 : f32
    %6 = vector.broadcast %cst_4 : f32 to vector<8x1xf32>
    %7 = arith.divf %5, %6 : vector<8x1xf32>
    %cst_5 = arith.constant 9.99999974E-6 : f32
    %8 = vector.broadcast %cst_5 : f32 to vector<8x1xf32>
    %9 = arith.addf %7, %8 : vector<8x1xf32>
    %10 = math.rsqrt %9 : vector<8x1xf32>
    %11 = vector.broadcast %10 : vector<8x1xf32> to vector<8x32xf32>
    %12 = arith.mulf %1, %11 : vector<8x32xf32>
    %13 = vector.broadcast %2 : vector<1x32xf32> to vector<8x32xf32>
    %14 = arith.mulf %12, %13 : vector<8x32xf32>
    %15 = vector.shape_cast %14 : vector<8x32xf32> to vector<1x8x32xf32>
    %16 = vector.shape_cast %15 : vector<1x8x32xf32> to vector<1x8x32xf32>
    %17 = vector.broadcast %16 : vector<1x8x32xf32> to vector<12x8x32xf32>
    %18 = vector.shape_cast %14 : vector<8x32xf32> to vector<1x8x32xf32>
    %19 = vector.shape_cast %18 : vector<1x8x32xf32> to vector<1x8x32xf32>
    %20 = vector.broadcast %19 : vector<1x8x32xf32> to vector<8x8x32xf32>
    %c0_6 = arith.constant 0 : index
    %c0_7 = arith.constant 0 : index
    %c0_8 = arith.constant 0 : index
    %21 = vector.load %arg5[%c0_6, %c0_7, %c0_8] : memref<12x32x8xf32, #tpu.memory_space<vmem>>, vector<12x32x8xf32>
    "tpu.trace_start"() <{level = 10 : i32, message = "htc,hcd->htd"}> : () -> ()
    %cst_9 = arith.constant dense<0.000000e+00> : vector<12x8x8xf32>
    %22 = tpu.matmul %17, %21, %cst_9 {dimension_numbers = #tpu.dot_dimension_numbers<[2], [1], [1], [2], [0, 0, 0, 1, 1, 2], [0], [0]>} : vector<12x8x32xf32>, vector<12x32x8xf32>, vector<12x8x8xf32> -> vector<12x8x8xf32>
    "tpu.trace_stop"() : () -> ()
    %c0_10 = arith.constant 0 : index
    %c0_11 = arith.constant 0 : index
    %c0_12 = arith.constant 0 : index
    %23 = vector.load %arg6[%c0_10, %c0_11, %c0_12] : memref<8x32x8xf32, #tpu.memory_space<vmem>>, vector<8x32x8xf32>
    "tpu.trace_start"() <{level = 10 : i32, message = "htc,hcd->htd"}> : () -> ()
    %cst_13 = arith.constant dense<0.000000e+00> : vector<8x8x8xf32>
    %24 = tpu.matmul %20, %23, %cst_13 {dimension_numbers = #tpu.dot_dimension_numbers<[2], [1], [1], [2], [0, 0, 0, 1, 1, 2], [0], [0]>} : vector<8x8x32xf32>, vector<8x32x8xf32>, vector<8x8x8xf32> -> vector<8x8x8xf32>
    "tpu.trace_stop"() : () -> ()
    %25 = vector.extract_strided_slice %22 {offsets = [0, 0, 0], sizes = [8, 8, 8], strides = [1, 1, 1]} : vector<12x8x8xf32> to vector<8x8x8xf32>
    %c0_14 = arith.constant 0 : index
    %c0_15 = arith.constant 0 : index
    %26 = vector.load %arg2[%c0_14, %c0_15] : memref<8x8xf32, #tpu.memory_space<vmem>>, vector<8x8xf32>
    %27 = vector.shape_cast %26 : vector<8x8xf32> to vector<1x8x8xf32>
    %28 = vector.broadcast %27 : vector<1x8x8xf32> to vector<8x8x8xf32>
    %29 = arith.mulf %25, %28 : vector<8x8x8xf32>
    %c0_16 = arith.constant 0 : index
    %c0_17 = arith.constant 0 : index
    %30 = vector.load %arg3[%c0_16, %c0_17] : memref<8x8xf32, #tpu.memory_space<vmem>>, vector<8x8xf32>
    %31 = vector.shape_cast %30 : vector<8x8xf32> to vector<1x8x8xf32>
    %32 = vector.broadcast %31 : vector<1x8x8xf32> to vector<8x8x8xf32>
    %33 = arith.mulf %24, %32 : vector<8x8x8xf32>
    %34 = arith.addf %29, %33 : vector<8x8x8xf32>
    %35 = vector.extract_strided_slice %34 {offsets = [0, 0, 0], sizes = [4, 8, 8], strides = [1, 1, 1]} : vector<8x8x8xf32> to vector<4x8x8xf32>
    %36 = vector.extract_strided_slice %34 {offsets = [4, 0, 0], sizes = [4, 8, 8], strides = [1, 1, 1]} : vector<8x8x8xf32> to vector<4x8x8xf32>
    %37 = vector.extract_strided_slice %22 {offsets = [8, 0, 0], sizes = [4, 8, 8], strides = [1, 1, 1]} : vector<12x8x8xf32> to vector<4x8x8xf32>
    "tpu.trace_start"() <{level = 10 : i32, message = "htd,hsd->hts"}> : () -> ()
    %cst_18 = arith.constant dense<0.000000e+00> : vector<4x8x8xf32>
    %38 = tpu.matmul %35, %36, %cst_18 {dimension_numbers = #tpu.dot_dimension_numbers<[2], [2], [1], [1], [0, 0, 0, 1, 1, 1], [0], [0]>} : vector<4x8x8xf32>, vector<4x8x8xf32>, vector<4x8x8xf32> -> vector<4x8x8xf32>
    "tpu.trace_stop"() : () -> ()
    %c0_19 = arith.constant 0 : index
    %c0_20 = arith.constant 0 : index
    %39 = vector.load %arg4[%c0_19, %c0_20] : memref<8x8xf32, #tpu.memory_space<vmem>>, vector<8x8xf32>
    %40 = vector.shape_cast %39 : vector<8x8xf32> to vector<1x8x8xf32>
    %41 = vector.broadcast %40 : vector<1x8x8xf32> to vector<4x8x8xf32>
    %42 = arith.addf %38, %41 : vector<4x8x8xf32>
    %cst_21 = arith.constant dense<0xFF800000> : vector<4x8xf32>
    %43 = vector.multi_reduction <maximumf>, %42, %cst_21 [2] : vector<4x8x8xf32> to vector<4x8xf32>
    %44 = vector.shape_cast %43 : vector<4x8xf32> to vector<4x8x1xf32>
    %45 = vector.broadcast %44 : vector<4x8x1xf32> to vector<4x8x8xf32>
    %46 = arith.subf %42, %45 : vector<4x8x8xf32>
    %47 = math.exp %46 : vector<4x8x8xf32>
    %cst_22 = arith.constant dense<0.000000e+00> : vector<4x8xf32>
    %48 = vector.multi_reduction <add>, %47, %cst_22 [2] : vector<4x8x8xf32> to vector<4x8xf32>
    %49 = vector.shape_cast %48 : vector<4x8xf32> to vector<4x8x1xf32>
    "tpu.trace_start"() <{level = 10 : i32, message = "hts,hsd->htd"}> : () -> ()
    %cst_23 = arith.constant dense<0.000000e+00> : vector<4x8x8xf32>
    %50 = tpu.matmul %47, %37, %cst_23 {dimension_numbers = #tpu.dot_dimension_numbers<[2], [1], [1], [2], [0, 0, 0, 1, 1, 2], [0], [0]>} : vector<4x8x8xf32>, vector<4x8x8xf32>, vector<4x8x8xf32> -> vector<4x8x8xf32>
    "tpu.trace_stop"() : () -> ()
    %51 = tpu.reciprocal %49 {approx = true} : vector<4x8x1xf32> -> vector<4x8x1xf32>
    %52 = vector.broadcast %51 : vector<4x8x1xf32> to vector<4x8x8xf32>
    %53 = arith.mulf %50, %52 : vector<4x8x8xf32>
    %c0_24 = arith.constant 0 : index
    %c0_25 = arith.constant 0 : index
    %c0_26 = arith.constant 0 : index
    %54 = vector.load %arg7[%c0_24, %c0_25, %c0_26] : memref<4x8x32xf32, #tpu.memory_space<vmem>>, vector<4x8x32xf32>
    "tpu.trace_start"() <{level = 10 : i32, message = "htd,hdc->htc"}> : () -> ()
    %cst_27 = arith.constant dense<0.000000e+00> : vector<4x8x32xf32>
    %55 = tpu.matmul %53, %54, %cst_27 {dimension_numbers = #tpu.dot_dimension_numbers<[2], [1], [1], [2], [0, 0, 0, 1, 1, 2], [0], [0]>} : vector<4x8x8xf32>, vector<4x8x32xf32>, vector<4x8x32xf32> -> vector<4x8x32xf32>
    "tpu.trace_stop"() : () -> ()
    %cst_28 = arith.constant dense<0.000000e+00> : vector<8x32xf32>
    %56 = vector.multi_reduction <add>, %55, %cst_28 [0] : vector<4x8x32xf32> to vector<8x32xf32>
    %57 = arith.addf %56, %1 : vector<8x32xf32>
    %c0_29 = arith.constant 0 : index
    %c0_30 = arith.constant 0 : index
    %58 = vector.load %arg9[%c0_29, %c0_30] : memref<1x32xf32, #tpu.memory_space<vmem>>, vector<1x32xf32>
    %59 = arith.mulf %57, %57 : vector<8x32xf32>
    %cst_31 = arith.constant dense<0.000000e+00> : vector<8xf32>
    %60 = vector.multi_reduction <add>, %59, %cst_31 [1] : vector<8x32xf32> to vector<8xf32>
    %61 = vector.shape_cast %60 : vector<8xf32> to vector<8x1xf32>
    %cst_32 = arith.constant 3.200000e+01 : f32
    %62 = vector.broadcast %cst_32 : f32 to vector<8x1xf32>
    %63 = arith.divf %61, %62 : vector<8x1xf32>
    %cst_33 = arith.constant 9.99999974E-6 : f32
    %64 = vector.broadcast %cst_33 : f32 to vector<8x1xf32>
    %65 = arith.addf %63, %64 : vector<8x1xf32>
    %66 = math.rsqrt %65 : vector<8x1xf32>
    %67 = vector.broadcast %66 : vector<8x1xf32> to vector<8x32xf32>
    %68 = arith.mulf %57, %67 : vector<8x32xf32>
    %69 = vector.broadcast %58 : vector<1x32xf32> to vector<8x32xf32>
    %70 = arith.mulf %68, %69 : vector<8x32xf32>
    %c0_34 = arith.constant 0 : index
    %c0_35 = arith.constant 0 : index
    %71 = vector.load %arg10[%c0_34, %c0_35] : memref<32x128xf32, #tpu.memory_space<vmem>>, vector<32x128xf32>
    %cst_36 = arith.constant dense<0.000000e+00> : vector<8x128xf32>
    %72 = tpu.matmul %70, %71, %cst_36 {dimension_numbers = #tpu.dot_dimension_numbers<[1], [0], [0], [1], [0, 0, 1, 1], [], []>} : vector<8x32xf32>, vector<32x128xf32>, vector<8x128xf32> -> vector<8x128xf32>
    %73 = vector.extract_strided_slice %72 {offsets = [0, 0], sizes = [8, 64], strides = [1, 1]} : vector<8x128xf32> to vector<8x64xf32>
    %74 = arith.negf %73 : vector<8x64xf32>
    %75 = math.exp %74 : vector<8x64xf32>
    %cst_37 = arith.constant 1.000000e+00 : f32
    %76 = vector.broadcast %cst_37 : f32 to vector<8x64xf32>
    %77 = arith.addf %76, %75 : vector<8x64xf32>
    %78 = arith.divf %76, %77 : vector<8x64xf32>
    %79 = arith.mulf %73, %78 : vector<8x64xf32>
    %80 = vector.extract_strided_slice %72 {offsets = [0, 64], sizes = [8, 64], strides = [1, 1]} : vector<8x128xf32> to vector<8x64xf32>
    %81 = arith.mulf %79, %80 : vector<8x64xf32>
    %c0_38 = arith.constant 0 : index
    %c0_39 = arith.constant 0 : index
    %82 = vector.load %arg11[%c0_38, %c0_39] : memref<64x32xf32, #tpu.memory_space<vmem>>, vector<64x32xf32>
    %cst_40 = arith.constant dense<0.000000e+00> : vector<8x32xf32>
    %83 = tpu.matmul %81, %82, %cst_40 {dimension_numbers = #tpu.dot_dimension_numbers<[1], [0], [0], [1], [0, 0, 1, 1], [], []>} : vector<8x64xf32>, vector<64x32xf32>, vector<8x32xf32> -> vector<8x32xf32>
    %84 = arith.addf %57, %83 : vector<8x32xf32>
    %c0_41 = arith.constant 0 : index
    %c0_42 = arith.constant 0 : index
    %c0_43 = arith.constant 0 : index
    %85 = vector.load %arg12[%c0_41, %c0_42, %c0_43] : memref<1x8x32xf32, #tpu.memory_space<vmem>>, vector<1x8x32xf32>
    %86 = vector.shape_cast %85 : vector<1x8x32xf32> to vector<8x32xf32>
    %87 = vector.shape_cast %84 : vector<8x32xf32> to vector<1x8x32xf32>
    tpu.vector_store %arg12[%c0_41, %c0_42, %c0_43], %87 {strides = array<i32>} : memref<1x8x32xf32, #tpu.memory_space<vmem>>, vector<1x8x32xf32>,
    return
  }
  func.func @transform_0(%arg0: i32) -> (i32, i32, i32) {
    %c0_i32 = arith.constant 0 : i32
    %c0_i32_0 = arith.constant 0 : i32
    %c0_i32_1 = arith.constant 0 : i32
    return %arg0, %c0_i32, %c0_i32_0 : i32, i32, i32
  }
  func.func @transform_1(%arg0: i32) -> (i32, i32) {
    %c0_i32 = arith.constant 0 : i32
    %c0_i32_0 = arith.constant 0 : i32
    %c0_i32_1 = arith.constant 0 : i32
    return %c0_i32, %c0_i32_0 : i32, i32
  }
  func.func @transform_2(%arg0: i32) -> (i32, i32) {
    %c0_i32 = arith.constant 0 : i32
    %c0_i32_0 = arith.constant 0 : i32
    %c0_i32_1 = arith.constant 0 : i32
    return %c0_i32, %c0_i32_0 : i32, i32
  }
  func.func @transform_3(%arg0: i32) -> (i32, i32) {
    %c0_i32 = arith.constant 0 : i32
    %c0_i32_0 = arith.constant 0 : i32
    %c0_i32_1 = arith.constant 0 : i32
    return %c0_i32, %c0_i32_0 : i32, i32
  }
  func.func @transform_4(%arg0: i32) -> (i32, i32, i32) {
    %c0_i32 = arith.constant 0 : i32
    %c0_i32_0 = arith.constant 0 : i32
    %c0_i32_1 = arith.constant 0 : i32
    %c0_i32_2 = arith.constant 0 : i32
    return %c0_i32, %c0_i32_0, %c0_i32_1 : i32, i32, i32
  }
  func.func @transform_5(%arg0: i32) -> (i32, i32, i32) {
    %c0_i32 = arith.constant 0 : i32
    %c0_i32_0 = arith.constant 0 : i32
    %c0_i32_1 = arith.constant 0 : i32
    %c0_i32_2 = arith.constant 0 : i32
    return %c0_i32, %c0_i32_0, %c0_i32_1 : i32, i32, i32
  }
  func.func @transform_6(%arg0: i32) -> (i32, i32, i32) {
    %c0_i32 = arith.constant 0 : i32
    %c0_i32_0 = arith.constant 0 : i32
    %c0_i32_1 = arith.constant 0 : i32
    %c0_i32_2 = arith.constant 0 : i32
    return %c0_i32, %c0_i32_0, %c0_i32_1 : i32, i32, i32
  }
  func.func @transform_7(%arg0: i32) -> (i32, i32) {
    %c0_i32 = arith.constant 0 : i32
    %c0_i32_0 = arith.constant 0 : i32
    %c0_i32_1 = arith.constant 0 : i32
    return %c0_i32, %c0_i32_0 : i32, i32
  }
  func.func @transform_8(%arg0: i32) -> (i32, i32) {
    %c0_i32 = arith.constant 0 : i32
    %c0_i32_0 = arith.constant 0 : i32
    %c0_i32_1 = arith.constant 0 : i32
    return %c0_i32, %c0_i32_0 : i32, i32
  }
  func.func @transform_9(%arg0: i32) -> (i32, i32) {
    %c0_i32 = arith.constant 0 : i32
    %c0_i32_0 = arith.constant 0 : i32
    %c0_i32_1 = arith.constant 0 : i32
    return %c0_i32, %c0_i32_0 : i32, i32
  }
  func.func @transform_10(%arg0: i32) -> (i32, i32) {
    %c0_i32 = arith.constant 0 : i32
    %c0_i32_0 = arith.constant 0 : i32
    %c0_i32_1 = arith.constant 0 : i32
    return %c0_i32, %c0_i32_0 : i32, i32
  }
  func.func @transform_11(%arg0: i32) -> (i32, i32, i32) {
    %c0_i32 = arith.constant 0 : i32
    %c0_i32_0 = arith.constant 0 : i32
    %c0_i32_1 = arith.constant 0 : i32
    return %arg0, %c0_i32, %c0_i32_0 : i32, i32, i32
  }
}

</mosaic_0001>

<llo_original>
// kernel: tpu_custom_call.1
$region0: #{tpu_custom_call.1}
  #allocation0 [shape = 'u32[]', space=smem, size = 0x4, offset = 0x4, fixed_abs, tag = 'smem constant byte address 0x4 - core index']
  #allocation1 [shape = 'u32[144,128]{1,0:T(1,128)}', space=vmem, size = 0x12000, scoped, tag = 'internal scratch']
  %s0 = inlined_call_operand.vmem [shape: f32[2,8,32], index: 0, kind: input, shape index: {}]
  %s1 = inlined_call_operand.vmem [shape: f32[8,8], index: 1, kind: input, shape index: {}]
  %s2 = inlined_call_operand.vmem [shape: f32[8,8], index: 2, kind: input, shape index: {}]
  %s3 = inlined_call_operand.vmem [shape: f32[8,8], index: 3, kind: input, shape index: {}]
  %s4 = inlined_call_operand.vmem [shape: f32[12,32,8], index: 4, kind: input, shape index: {}]
  %s5 = inlined_call_operand.vmem [shape: f32[8,32,8], index: 5, kind: input, shape index: {}]
  %s6 = inlined_call_operand.vmem [shape: f32[4,8,32], index: 6, kind: input, shape index: {}]
  %s7 = inlined_call_operand.vmem [shape: f32[1,32], index: 7, kind: input, shape index: {}]
  %s8 = inlined_call_operand.vmem [shape: f32[1,32], index: 8, kind: input, shape index: {}]
  %s9 = inlined_call_operand.vmem [shape: f32[32,128], index: 9, kind: input, shape index: {}]
  %s10 = inlined_call_operand.vmem [shape: f32[64,32], index: 10, kind: input, shape index: {}]
  %s11 = inlined_call_operand.hbm [shape: f32[2,8,32], index: 11, kind: output, shape index: {}]
  %s12 = sld [smem:[#allocation0]]
  $region77: #{tpu_custom_call.1} parent=0
    _
  %s14 = ssub.s32 1, %s12
  %s15 = scalar_select 0, %s14, %s12
  $region1: #{tpu_custom_call.1} parent=0
    #allocation2 [shape = 'u8[8192]{0}', space=vmem, size = 0x2000, scoped, tag = 'output window, operand 0']
    #allocation3 [shape = 's32[2]{0}', space=sflag, size = 0x8, scoped, tag = 'scoped memory for tpu_custom_call.1']
    %16 = vsyncpa [#allocation3], 0
    %s17 = scalar_lea.sflag [#allocation3], 1
    %18 = vsyncpa %s17, 0
    loop: start=0, step=1, limit=4
    $region2: #{tpu_custom_call.1} parent=1 // loop_pre_header
      _
    $region3: #{tpu_custom_call.1} parent=1 // loop_header
      %s20 = sphi 0, %s24
      %p21 = scmp.ge.s32.totalorder %s20, 4
      %s30 = sphi 0, %s32
      %s33 = sphi 0, %s30
      %s34 = sphi 0, %s33
      %s50 = sphi 0, %s34
      %s54 = sphi 0, %s54
      %s56 = sphi 0, %s54
      %s57 = sphi 0, %s56
      %s71 = sphi 0, %s57
      %s75 = sphi 0, %s75
      %s77 = sphi 0, %s75
      %s78 = sphi 0, %s77
      %s92 = sphi 0, %s78
      %s96 = sphi 0, %s96
      %s98 = sphi 0, %s96
      %s99 = sphi 0, %s98
      %s113 = sphi 0, %s99
      %s117 = sphi 0, %s117
      %s119 = sphi 0, %s117
      %s120 = sphi 0, %s119
      %s134 = sphi 0, %s120
      %s138 = sphi 0, %s138
      %s140 = sphi 0, %s138
      %s141 = sphi 0, %s140
      %s155 = sphi 0, %s141
      %s159 = sphi 0, %s159
      %s161 = sphi 0, %s159
      %s162 = sphi 0, %s161
      %s176 = sphi 0, %s162
      %s180 = sphi 0, %s180
      %s182 = sphi 0, %s180
      %s183 = sphi 0, %s182
      %s197 = sphi 0, %s183
      %s201 = sphi 0, %s201
      %s203 = sphi 0, %s201
      %s204 = sphi 0, %s203
      %s218 = sphi 0, %s204
      %s222 = sphi 0, %s222
      %s224 = sphi 0, %s222
      %s225 = sphi 0, %s224
      %s239 = sphi 0, %s225
      %s243 = sphi 0, %s243
      %s245 = sphi 0, %s243
      %s246 = sphi 0, %s245
      %s260 = sphi 0, %s246
      %s266 = sphi 0, %s268
      %s269 = sphi 0, %s266
      %s270 = sphi 0, %s269
      %s286 = sphi 0, %s270
    $region4: #{tpu_custom_call.1} parent=1 // loop_header_branch
      %23 = sbr.rel (%p21) target = $region8
    $region5: #{tpu_custom_call.1} parent=1 // loop_body
      %s25 = ssub.s32 %s20, 1
      %s26 = ssub.s32 %s20, 2
      %s27 = sadd.s32 %s20, 1
      %s28 = ssub.s32 %s20, %s27
      %p29 = scmp.eq.s32.totalorder %s28, 0
      %s31 = sadd.s32 %s30, 1
      %s32 = scalar_select %p29, %s30, %s31
      %p35 = pneg %p29
      %p36 = scmp.eq.s32.totalorder %s20, 1
      %p37 = por %p35, %p36
      %p38 = scmp.ne.s32.totalorder %s30, %s33
      %p39 = scmp.eq.s32.totalorder %s20, 0
      %p40 = por %p38, %p39
      %p41 = scmp.ne.s32.totalorder %s30, %s33
      %p42 = scmp.eq.s32.totalorder %s25, 1
      %p43 = por %p41, %p42
      %p44 = scmp.ne.s32.totalorder %s33, %s34
      %p45 = scmp.eq.s32.totalorder %s25, 0
      %p46 = por %p44, %p45
      %p47 = scmp.ne.s32.totalorder %s33, %s34
      %p48 = scmp.eq.s32.totalorder %s26, 1
      %p49 = por %p47, %p48
      %p51 = scmp.ne.s32.totalorder %s34, %s50
      %p52 = scmp.eq.s32.totalorder %s26, 0
      %p53 = por %p51, %p52
      %s55 = sadd.s32 %s54, 1
      %p58 = scmp.eq.s32.totalorder %s20, 1
      %p59 = scmp.ne.s32.totalorder %s54, %s56
      %p60 = scmp.eq.s32.totalorder %s20, 0
      %p61 = por %p59, %p60
      %p62 = scmp.ne.s32.totalorder %s54, %s56
      %p63 = scmp.eq.s32.totalorder %s25, 1
      %p64 = por %p62, %p63
      %p65 = scmp.ne.s32.totalorder %s56, %s57
      %p66 = scmp.eq.s32.totalorder %s25, 0
      %p67 = por %p65, %p66
      %p68 = scmp.ne.s32.totalorder %s56, %s57
      %p69 = scmp.eq.s32.totalorder %s26, 1
      %p70 = por %p68, %p69
      %p72 = scmp.ne.s32.totalorder %s57, %s71
      %p73 = scmp.eq.s32.totalorder %s26, 0
      %p74 = por %p72, %p73
      %s76 = sadd.s32 %s75, 1
      %p79 = scmp.eq.s32.totalorder %s20, 1
      %p80 = scmp.ne.s32.totalorder %s75, %s77
      %p81 = scmp.eq.s32.totalorder %s20, 0
      %p82 = por %p80, %p81
      %p83 = scmp.ne.s32.totalorder %s75, %s77
      %p84 = scmp.eq.s32.totalorder %s25, 1
      %p85 = por %p83, %p84
      %p86 = scmp.ne.s32.totalorder %s77, %s78
      %p87 = scmp.eq.s32.totalorder %s25, 0
      %p88 = por %p86, %p87
      %p89 = scmp.ne.s32.totalorder %s77, %s78
      %p90 = scmp.eq.s32.totalorder %s26, 1
      %p91 = por %p89, %p90
      %p93 = scmp.ne.s32.totalorder %s78, %s92
      %p94 = scmp.eq.s32.totalorder %s26, 0
      %p95 = por %p93, %p94
      %s97 = sadd.s32 %s96, 1
      %p100 = scmp.eq.s32.totalorder %s20, 1
      %p101 = scmp.ne.s32.totalorder %s96, %s98
      %p102 = scmp.eq.s32.totalorder %s20, 0
      %p103 = por %p101, %p102
      %p104 = scmp.ne.s32.totalorder %s96, %s98
      %p105 = scmp.eq.s32.totalorder %s25, 1
      %p106 = por %p104, %p105
      %p107 = scmp.ne.s32.totalorder %s98, %s99
      %p108 = scmp.eq.s32.totalorder %s25, 0
      %p109 = por %p107, %p108
      %p110 = scmp.ne.s32.totalorder %s98, %s99
      %p111 = scmp.eq.s32.totalorder %s26, 1
      %p112 = por %p110, %p111
      %p114 = scmp.ne.s32.totalorder %s99, %s113
      %p115 = scmp.eq.s32.totalorder %s26, 0
      %p116 = por %p114, %p115
      %s118 = sadd.s32 %s117, 1
      %p121 = scmp.eq.s32.totalorder %s20, 1
      %p122 = scmp.ne.s32.totalorder %s117, %s119
      %p123 = scmp.eq.s32.totalorder %s20, 0
      %p124 = por %p122, %p123
      %p125 = scmp.ne.s32.totalorder %s117, %s119
      %p126 = scmp.eq.s32.totalorder %s25, 1
      %p127 = por %p125, %p126
      %p128 = scmp.ne.s32.totalorder %s119, %s120
      %p129 = scmp.eq.s32.totalorder %s25, 0
      %p130 = por %p128, %p129
      %p131 = scmp.ne.s32.totalorder %s119, %s120
      %p132 = scmp.eq.s32.totalorder %s26, 1
      %p133 = por %p131, %p132
      %p135 = scmp.ne.s32.totalorder %s120, %s134
      %p136 = scmp.eq.s32.totalorder %s26, 0
      %p137 = por %p135, %p136
      %s139 = sadd.s32 %s138, 1
      %p142 = scmp.eq.s32.totalorder %s20, 1
      %p143 = scmp.ne.s32.totalorder %s138, %s140
      %p144 = scmp.eq.s32.totalorder %s20, 0
      %p145 = por %p143, %p144
      %p146 = scmp.ne.s32.totalorder %s138, %s140
      %p147 = scmp.eq.s32.totalorder %s25, 1
      %p148 = por %p146, %p147
      %p149 = scmp.ne.s32.totalorder %s140, %s141
      %p150 = scmp.eq.s32.totalorder %s25, 0
      %p151 = por %p149, %p150
      %p152 = scmp.ne.s32.totalorder %s140, %s141
      %p153 = scmp.eq.s32.totalorder %s26, 1
      %p154 = por %p152, %p153
      %p156 = scmp.ne.s32.totalorder %s141, %s155
      %p157 = scmp.eq.s32.totalorder %s26, 0
      %p158 = por %p156, %p157
      %s160 = sadd.s32 %s159, 1
      %p163 = scmp.eq.s32.totalorder %s20, 1
      %p164 = scmp.ne.s32.totalorder %s159, %s161
      %p165 = scmp.eq.s32.totalorder %s20, 0
      %p166 = por %p164, %p165
      %p167 = scmp.ne.s32.totalorder %s159, %s161
      %p168 = scmp.eq.s32.totalorder %s25, 1
      %p169 = por %p167, %p168
      %p170 = scmp.ne.s32.totalorder %s161, %s162
      %p171 = scmp.eq.s32.totalorder %s25, 0
      %p172 = por %p170, %p171
      %p173 = scmp.ne.s32.totalorder %s161, %s162
      %p174 = scmp.eq.s32.totalorder %s26, 1
      %p175 = por %p173, %p174
      %p177 = scmp.ne.s32.totalorder %s162, %s176
      %p178 = scmp.eq.s32.totalorder %s26, 0
      %p179 = por %p177, %p178
      %s181 = sadd.s32 %s180, 1
      %p184 = scmp.eq.s32.totalorder %s20, 1
      %p185 = scmp.ne.s32.totalorder %s180, %s182
      %p186 = scmp.eq.s32.totalorder %s20, 0
      %p187 = por %p185, %p186
      %p188 = scmp.ne.s32.totalorder %s180, %s182
      %p189 = scmp.eq.s32.totalorder %s25, 1
      %p190 = por %p188, %p189
      %p191 = scmp.ne.s32.totalorder %s182, %s183
      %p192 = scmp.eq.s32.totalorder %s25, 0
      %p193 = por %p191, %p192
      %p194 = scmp.ne.s32.totalorder %s182, %s183
      %p195 = scmp.eq.s32.totalorder %s26, 1
      %p196 = por %p194, %p195
      %p198 = scmp.ne.s32.totalorder %s183, %s197
      %p199 = scmp.eq.s32.totalorder %s26, 0
      %p200 = por %p198, %p199
      %s202 = sadd.s32 %s201, 1
      %p205 = scmp.eq.s32.totalorder %s20, 1
      %p206 = scmp.ne.s32.totalorder %s201, %s203
      %p207 = scmp.eq.s32.totalorder %s20, 0
      %p208 = por %p206, %p207
      %p209 = scmp.ne.s32.totalorder %s201, %s203
      %p210 = scmp.eq.s32.totalorder %s25, 1
      %p211 = por %p209, %p210
      %p212 = scmp.ne.s32.totalorder %s203, %s204
      %p213 = scmp.eq.s32.totalorder %s25, 0
      %p214 = por %p212, %p213
      %p215 = scmp.ne.s32.totalorder %s203, %s204
      %p216 = scmp.eq.s32.totalorder %s26, 1
      %p217 = por %p215, %p216
      %p219 = scmp.ne.s32.totalorder %s204, %s218
      %p220 = scmp.eq.s32.totalorder %s26, 0
      %p221 = por %p219, %p220
      %s223 = sadd.s32 %s222, 1
      %p226 = scmp.eq.s32.totalorder %s20, 1
      %p227 = scmp.ne.s32.totalorder %s222, %s224
      %p228 = scmp.eq.s32.totalorder %s20, 0
      %p229 = por %p227, %p228
      %p230 = scmp.ne.s32.totalorder %s222, %s224
      %p231 = scmp.eq.s32.totalorder %s25, 1
      %p232 = por %p230, %p231
      %p233 = scmp.ne.s32.totalorder %s224, %s225
      %p234 = scmp.eq.s32.totalorder %s25, 0
      %p235 = por %p233, %p234
      %p236 = scmp.ne.s32.totalorder %s224, %s225
      %p237 = scmp.eq.s32.totalorder %s26, 1
      %p238 = por %p236, %p237
      %p240 = scmp.ne.s32.totalorder %s225, %s239
      %p241 = scmp.eq.s32.totalorder %s26, 0
      %p242 = por %p240, %p241
      %s244 = sadd.s32 %s243, 1
      %p247 = scmp.eq.s32.totalorder %s20, 1
      %p248 = scmp.ne.s32.totalorder %s243, %s245
      %p249 = scmp.eq.s32.totalorder %s20, 0
      %p250 = por %p248, %p249
      %p251 = scmp.ne.s32.totalorder %s243, %s245
      %p252 = scmp.eq.s32.totalorder %s25, 1
      %p253 = por %p251, %p252
      %p254 = scmp.ne.s32.totalorder %s245, %s246
      %p255 = scmp.eq.s32.totalorder %s25, 0
      %p256 = por %p254, %p255
      %p257 = scmp.ne.s32.totalorder %s245, %s246
      %p258 = scmp.eq.s32.totalorder %s26, 1
      %p259 = por %p257, %p258
      %p261 = scmp.ne.s32.totalorder %s246, %s260
      %p262 = scmp.eq.s32.totalorder %s26, 0
      %p263 = por %p261, %p262
      %s264 = ssub.s32 %s20, %s27
      %p265 = scmp.eq.s32.totalorder %s264, 0
      %s267 = sadd.s32 %s266, 1
      %s268 = scalar_select %p265, %s266, %s267
      %p271 = pneg %p265
      %p272 = scmp.eq.s32.totalorder %s20, 1
      %p273 = por %p271, %p272
      %p274 = scmp.ne.s32.totalorder %s266, %s269
      %p275 = scmp.eq.s32.totalorder %s20, 0
      %p276 = por %p274, %p275
      %p277 = scmp.ne.s32.totalorder %s266, %s269
      %p278 = scmp.eq.s32.totalorder %s25, 1
      %p279 = por %p277, %p278
      %p280 = scmp.ne.s32.totalorder %s269, %s270
      %p281 = scmp.eq.s32.totalorder %s25, 0
      %p282 = por %p280, %p281
      %p283 = scmp.ne.s32.totalorder %s269, %s270
      %p284 = scmp.eq.s32.totalorder %s26, 1
      %p285 = por %p283, %p284
      %p287 = scmp.ne.s32.totalorder %s270, %s286
      %p288 = scmp.eq.s32.totalorder %s26, 0
      %p289 = por %p287, %p288
      %p290 = scmp.le.s32.totalorder 1, %s20
      %p291 = scmp.lt.s32.totalorder %s20, 3
      %p292 = pnand %p290, %p291
      %p293 = pneg %p292
      // Predicated region
      $region9: #{tpu_custom_call.1} parent=5 // pred_check
        _
      $region10: #{tpu_custom_call.1} parent=5 // pred_check_branch
        %295 = sbr.rel (%p292) target = $region12
      $region11: #{tpu_custom_call.1} parent=5 // pred_region
        %s296 = ssub.s32 %s20, 1
        // Predicated region
        $region13: #{tpu_custom_call.1} parent=11 // pred_check
          %p297 = pneg %p67
        $region14: #{tpu_custom_call.1} parent=11 // pred_check_branch
          %299 = sbr.rel (%p297) target = $region16
        $region15: #{tpu_custom_call.1} parent=11 // pred_region
          _
        $region16: #{tpu_custom_call.1} parent=11 // pred_fallthru
          _
        // Predicated region
        $region17: #{tpu_custom_call.1} parent=11 // pred_check
          %p300 = pneg %p88
        $region18: #{tpu_custom_call.1} parent=11 // pred_check_branch
          %302 = sbr.rel (%p300) target = $region20
        $region19: #{tpu_custom_call.1} parent=11 // pred_region
          _
        $region20: #{tpu_custom_call.1} parent=11 // pred_fallthru
          _
        // Predicated region
        $region21: #{tpu_custom_call.1} parent=11 // pred_check
          %p303 = pneg %p109
        $region22: #{tpu_custom_call.1} parent=11 // pred_check_branch
          %305 = sbr.rel (%p303) target = $region24
        $region23: #{tpu_custom_call.1} parent=11 // pred_region
          _
        $region24: #{tpu_custom_call.1} parent=11 // pred_fallthru
          _
        // Predicated region
        $region25: #{tpu_custom_call.1} parent=11 // pred_check
          %p306 = pneg %p130
        $region26: #{tpu_custom_call.1} parent=11 // pred_check_branch
          %308 = sbr.rel (%p306) target = $region28
        $region27: #{tpu_custom_call.1} parent=11 // pred_region
          _
        $region28: #{tpu_custom_call.1} parent=11 // pred_fallthru
          _
        // Predicated region
        $region29: #{tpu_custom_call.1} parent=11 // pred_check
          %p309 = pneg %p151
        $region30: #{tpu_custom_call.1} parent=11 // pred_check_branch
          %311 = sbr.rel (%p309) target = $region32
        $region31: #{tpu_custom_call.1} parent=11 // pred_region
          _
        $region32: #{tpu_custom_call.1} parent=11 // pred_fallthru
          _
        // Predicated region
        $region33: #{tpu_custom_call.1} parent=11 // pred_check
          %p312 = pneg %p172
        $region34: #{tpu_custom_call.1} parent=11 // pred_check_branch
          %314 = sbr.rel (%p312) target = $region36
        $region35: #{tpu_custom_call.1} parent=11 // pred_region
          _
        $region36: #{tpu_custom_call.1} parent=11 // pred_fallthru
          _
        // Predicated region
        $region37: #{tpu_custom_call.1} parent=11 // pred_check
          %p315 = pneg %p193
        $region38: #{tpu_custom_call.1} parent=11 // pred_check_branch
          %317 = sbr.rel (%p315) target = $region40
        $region39: #{tpu_custom_call.1} parent=11 // pred_region
          _
        $region40: #{tpu_custom_call.1} parent=11 // pred_fallthru
          _
        // Predicated region
        $region41: #{tpu_custom_call.1} parent=11 // pred_check
          %p318 = pneg %p214
        $region42: #{tpu_custom_call.1} parent=11 // pred_check_branch
          %320 = sbr.rel (%p318) target = $region44
        $region43: #{tpu_custom_call.1} parent=11 // pred_region
          _
        $region44: #{tpu_custom_call.1} parent=11 // pred_fallthru
          _
        // Predicated region
        $region45: #{tpu_custom_call.1} parent=11 // pred_check
          %p321 = pneg %p235
        $region46: #{tpu_custom_call.1} parent=11 // pred_check_branch
          %323 = sbr.rel (%p321) target = $region48
        $region47: #{tpu_custom_call.1} parent=11 // pred_region
          _
        $region48: #{tpu_custom_call.1} parent=11 // pred_fallthru
          _
        // Predicated region
        $region49: #{tpu_custom_call.1} parent=11 // pred_check
          %p324 = pneg %p256
        $region50: #{tpu_custom_call.1} parent=11 // pred_check_branch
          %326 = sbr.rel (%p324) target = $region52
        $region51: #{tpu_custom_call.1} parent=11 // pred_region
          _
        $region52: #{tpu_custom_call.1} parent=11 // pred_fallthru
          _
      $region12: #{tpu_custom_call.1} parent=5 // pred_fallthru
        _
      %p327 = scmp.lt.s32.totalorder %s20, 2
      // Predicated region
      $region53: #{tpu_custom_call.1} parent=5 // pred_check
        %p328 = pneg %p327
      $region54: #{tpu_custom_call.1} parent=5 // pred_check_branch
        %330 = sbr.rel (%p328) target = $region56
      $region55: #{tpu_custom_call.1} parent=5 // pred_region
        // Predicated region
        $region57: #{tpu_custom_call.1} parent=55 // pred_check
          %p331 = pneg %p40
        $region58: #{tpu_custom_call.1} parent=55 // pred_check_branch
          %333 = sbr.rel (%p331) target = $region60
        $region59: #{tpu_custom_call.1} parent=55 // pred_region
          %p334 = scmp.lt.s32.totalorder %s20, 1
          %s335 = scalar_select %p334, %s20, 1
          %s336 = smul.addr %s335, 8
          %s337 = scalar_lea.vmem %s0, %s336
        $region60: #{tpu_custom_call.1} parent=55 // pred_fallthru
          _
      $region56: #{tpu_custom_call.1} parent=5 // pred_fallthru
        _
      %p338 = scmp.le.s32.totalorder 1, %s20
      %p339 = scmp.lt.s32.totalorder %s20, 3
      %p340 = pnand %p338, %p339
      %p341 = pneg %p340
      // Predicated region
      $region61: #{tpu_custom_call.1} parent=5 // pred_check
        _
      $region62: #{tpu_custom_call.1} parent=5 // pred_check_branch
        %343 = sbr.rel (%p340) target = $region64
      $region63: #{tpu_custom_call.1} parent=5 // pred_region
        %s344 = ssub.s32 %s20, 1
        %p345 = scmp.lt.s32.totalorder %s25, 1
        %s346 = scalar_select %p345, %s25, 1
        %s347 = smul.addr %s346, 8
        %s348 = scalar_lea.vmem %s0, %s347
        %p349 = pneg %p46
        %p350 = pneg %p43
        %p351 = pneg %p67
        %p352 = pneg %p64
        %p353 = pneg %p88
        %p354 = pneg %p85
        %p355 = pneg %p109
        %p356 = pneg %p106
        %p357 = pneg %p130
        %p358 = pneg %p127
        %p359 = pneg %p151
        %p360 = pneg %p148
        %p361 = pneg %p172
        %p362 = pneg %p169
        %p363 = pneg %p193
        %p364 = pneg %p190
        %p365 = pneg %p214
        %p366 = pneg %p211
        %p367 = pneg %p235
        %p368 = pneg %p232
        %p369 = pneg %p256
        %p370 = pneg %p253
        %p371 = pneg %p282
        %p372 = pneg %p279
        %s373 = sand.u32 %s269, 1
        %s374 = scalar_lea.sflag [#allocation3], %s373
        %s375 = sand.u32 %s269, 1
        %s376 = smul.addr %s375, 8
        %s377 = scalar_lea.vmem [#allocation2], %s376
        %p378 = scmp.lt.s32.totalorder %s25, 1
        %s379 = scalar_select %p378, %s25, 1
        %s380 = smul.addr %s379, 8
        %s381 = scalar_lea.vmem %s0, %s380
        %v382 = vld [vmem:[%s381] sm:$0xff]
        %v383 = vld [vmem:[%s7] sm:$0x1]
        %v384 = vmul.f32 %v382, %v382
        %vm385 = vcmask 261120
        %v386 = vsel %vm385, %v384, 0.0
        %387 = vadd.xlane.f32.xlu0 %v386
        %v388 = vpop.xlane.xlu0 %387
        %v389 = vrcp.pop 32.0
        %v390 = vmul.f32 %v388, %v389
        %v391 = vadd.f32 %v390, 1e-05
        %v392 = vrsqrt.pop %v391
        %v393 = vmul.f32 %v382, %v392
        %v395 = vlaneseq
        %v396 = vshrl.u32 %v395, 7
        %v397 = vsub.s32 0, %v396
        %v398 = vrot.slane %v383, %v397
        %v400 = vmul.f32 %v393, %v398
        %v401 = vld [vmem:[%s4] sm:$0xff]
        %v402 = vld [vmem:[%s4 + $0x8] sm:$0xff]
        %v403 = vld [vmem:[%s4 + $0x10] sm:$0xff]
        %v404 = vld [vmem:[%s4 + $0x18] sm:$0xff]
        %v405 = vld [vmem:[%s4 + $0x20] sm:$0xff]
        %v406 = vld [vmem:[%s4 + $0x28] sm:$0xff]
        %v407 = vld [vmem:[%s4 + $0x30] sm:$0xff]
        %v408 = vld [vmem:[%s4 + $0x38] sm:$0xff]
        %v409 = vld [vmem:[%s4 + $0x40] sm:$0xff]
        %v410 = vld [vmem:[%s4 + $0x48] sm:$0xff]
        %v411 = vld [vmem:[%s4 + $0x50] sm:$0xff]
        %v412 = vld [vmem:[%s4 + $0x58] sm:$0xff]
        %v413 = vld [vmem:[%s4 + $0x60] sm:$0xff]
        %v414 = vld [vmem:[%s4 + $0x68] sm:$0xff]
        %v415 = vld [vmem:[%s4 + $0x70] sm:$0xff]
        %v416 = vld [vmem:[%s4 + $0x78] sm:$0xff]
        %v417 = vld [vmem:[%s4 + $0x80] sm:$0xff]
        %v418 = vld [vmem:[%s4 + $0x88] sm:$0xff]
        %v419 = vld [vmem:[%s4 + $0x90] sm:$0xff]
        %v420 = vld [vmem:[%s4 + $0x98] sm:$0xff]
        %v421 = vld [vmem:[%s4 + $0xa0] sm:$0xff]
        %v422 = vld [vmem:[%s4 + $0xa8] sm:$0xff]
        %v423 = vld [vmem:[%s4 + $0xb0] sm:$0xff]
        %v424 = vld [vmem:[%s4 + $0xb8] sm:$0xff]
        %v425 = vld [vmem:[%s4 + $0xc0] sm:$0xff]
        %v426 = vld [vmem:[%s4 + $0xc8] sm:$0xff]
        %v427 = vld [vmem:[%s4 + $0xd0] sm:$0xff]
        %v428 = vld [vmem:[%s4 + $0xd8] sm:$0xff]
        %v429 = vld [vmem:[%s4 + $0xe0] sm:$0xff]
        %v430 = vld [vmem:[%s4 + $0xe8] sm:$0xff]
        %v431 = vld [vmem:[%s4 + $0xf0] sm:$0xff]
        %v432 = vld [vmem:[%s4 + $0xf8] sm:$0xff]
        %v433 = vld [vmem:[%s4 + $0x100] sm:$0xff]
        %v434 = vld [vmem:[%s4 + $0x108] sm:$0xff]
        %v435 = vld [vmem:[%s4 + $0x110] sm:$0xff]
        %v436 = vld [vmem:[%s4 + $0x118] sm:$0xff]
        %v437 = vld [vmem:[%s4 + $0x120] sm:$0xff]
        %v438 = vld [vmem:[%s4 + $0x128] sm:$0xff]
        %v439 = vld [vmem:[%s4 + $0x130] sm:$0xff]
        %v440 = vld [vmem:[%s4 + $0x138] sm:$0xff]
        %v441 = vld [vmem:[%s4 + $0x140] sm:$0xff]
        %v442 = vld [vmem:[%s4 + $0x148] sm:$0xff]
        %v443 = vld [vmem:[%s4 + $0x150] sm:$0xff]
        %v444 = vld [vmem:[%s4 + $0x158] sm:$0xff]
        %v445 = vld [vmem:[%s4 + $0x160] sm:$0xff]
        %v446 = vld [vmem:[%s4 + $0x168] sm:$0xff]
        %v447 = vld [vmem:[%s4 + $0x170] sm:$0xff]
        %v448 = vld [vmem:[%s4 + $0x178] sm:$0xff]
        %v450 = vsel %vm385, %v400, 0
        %452 = vmatprep.subr.mxu0 0.0
        %453 = vmatpush1.msra.mxu0 %v401
        %454 = vmatprep.subr.mxu0 0.0
        %455 = vmatpush1.msra.mxu0 %v402
        %456 = vmatprep.subr.mxu0 0.0
        %457 = vmatpush1.msra.mxu0 %v403
        %458 = vmatprep.subr.mxu0 0.0
        %459 = vmatpush1.msra.mxu0 %v404
        %460 = vmatprep.subr.mxu0 0.0
        %461 = vmatpush1.msra.mxu0 0.0
        %462 = vmatprep.subr.mxu0 0.0
        %463 = vmatpush1.msra.mxu0 0.0
        %464 = vmatprep.subr.mxu0 0.0
        %465 = vmatpush1.msra.mxu0 0.0
        %466 = vmatprep.subr.mxu0 0.0
        %467 = vmatpush1.msra.mxu0 0.0
        %468 = vmatprep.subr.mxu0 0.0
        %469 = vmatpush1.msra.mxu0 0.0
        %470 = vmatprep.subr.mxu0 0.0
        %471 = vmatpush1.msra.mxu0 0.0
        %472 = vmatprep.subr.mxu0 0.0
        %473 = vmatpush1.msra.mxu0 0.0
        %474 = vmatprep.subr.mxu0 0.0
        %475 = vmatpush1.msra.mxu0 0.0
        %476 = vmatprep.subr.mxu0 0.0
        %477 = vmatpush1.msra.mxu0 0.0
        %478 = vmatprep.subr.mxu0 0.0
        %479 = vmatpush1.msra.mxu0 0.0
        %480 = vmatprep.subr.mxu0 0.0
        %481 = vmatpush1.msra.mxu0 0.0
        %482 = vmatprep.subr.mxu0 0.0
        %483 = vmatpush1.msra.mxu0 0.0
        %484 = vmatprep.subr.mxu0 0.0
        %485 = vmatpush1.msra.mxu0 0.0
        %486 = vmatprep.subr.mxu0 0.0
        %487 = vmatpush1.msra.mxu0 0.0
        %488 = vmatprep.subr.mxu0 0.0
        %489 = vmatpush1.msra.mxu0 0.0
        %490 = vmatprep.subr.mxu0 0.0
        %491 = vmatpush1.msra.mxu0 0.0
        %492 = vmatprep.subr.mxu0 0.0
        %493 = vmatpush1.msra.mxu0 0.0
        %494 = vmatprep.subr.mxu0 0.0
        %495 = vmatpush1.msra.mxu0 0.0
        %496 = vmatprep.subr.mxu0 0.0
        %497 = vmatpush1.msra.mxu0 0.0
        %498 = vmatprep.subr.mxu0 0.0
        %499 = vmatpush1.msra.mxu0 0.0
        %500 = vmatprep.subr.mxu0 0.0
        %501 = vmatpush1.msra.mxu0 0.0
        %502 = vmatprep.subr.mxu0 0.0
        %503 = vmatpush1.msra.mxu0 0.0
        %504 = vmatprep.subr.mxu0 0.0
        %505 = vmatpush1.msra.mxu0 0.0
        %506 = vmatprep.subr.mxu0 0.0
        %507 = vmatpush1.msra.mxu0 0.0
        %508 = vmatprep.subr.mxu0 0.0
        %509 = vmatpush1.msra.mxu0 0.0
        %510 = vmatprep.subr.mxu0 0.0
        %511 = vmatpush1.msra.mxu0 0.0
        %512 = vmatprep.subr.mxu0 0.0
        %513 = vmatpush1.msra.mxu0 0.0
        %514 = vmatprep.subr.mxu0 0.0
        %515 = vmatpush1.msra.mxu0 0.0
        %516 = vmatprep.mubr.f32.mxu0 0.0
        %517 = vmatmul.mubr.f32.gmra.mrb[0].mxu0 %v450
        %v518 = vpop.f32.mrb[0].mxu0
        %v519 = vadd.f32 0.0, %v518
        %v520 = vpop.f32.mrb[0].mxu0
        %521 = vdwg.mxu0
        %522 = vmatprep.subr.mxu0 0.0
        %523 = vmatpush1.msra.mxu0 %v405
        %524 = vmatprep.subr.mxu0 0.0
        %525 = vmatpush1.msra.mxu0 %v406
        %526 = vmatprep.subr.mxu0 0.0
        %527 = vmatpush1.msra.mxu0 %v407
        %528 = vmatprep.subr.mxu0 0.0
        %529 = vmatpush1.msra.mxu0 %v408
        %530 = vmatprep.subr.mxu0 0.0
        %531 = vmatpush1.msra.mxu0 0.0
        %532 = vmatprep.subr.mxu0 0.0
        %533 = vmatpush1.msra.mxu0 0.0
        %534 = vmatprep.subr.mxu0 0.0
        %535 = vmatpush1.msra.mxu0 0.0
        %536 = vmatprep.subr.mxu0 0.0
        %537 = vmatpush1.msra.mxu0 0.0
        %538 = vmatprep.subr.mxu0 0.0
        %539 = vmatpush1.msra.mxu0 0.0
        %540 = vmatprep.subr.mxu0 0.0
        %541 = vmatpush1.msra.mxu0 0.0
        %542 = vmatprep.subr.mxu0 0.0
        %543 = vmatpush1.msra.mxu0 0.0
        %544 = vmatprep.subr.mxu0 0.0
        %545 = vmatpush1.msra.mxu0 0.0
        %546 = vmatprep.subr.mxu0 0.0
        %547 = vmatpush1.msra.mxu0 0.0
        %548 = vmatprep.subr.mxu0 0.0
        %549 = vmatpush1.msra.mxu0 0.0
        %550 = vmatprep.subr.mxu0 0.0
        %551 = vmatpush1.msra.mxu0 0.0
        %552 = vmatprep.subr.mxu0 0.0
        %553 = vmatpush1.msra.mxu0 0.0
        %554 = vmatprep.subr.mxu0 0.0
        %555 = vmatpush1.msra.mxu0 0.0
        %556 = vmatprep.subr.mxu0 0.0
        %557 = vmatpush1.msra.mxu0 0.0
        %558 = vmatprep.subr.mxu0 0.0
        %559 = vmatpush1.msra.mxu0 0.0
        %560 = vmatprep.subr.mxu0 0.0
        %561 = vmatpush1.msra.mxu0 0.0
        %562 = vmatprep.subr.mxu0 0.0
        %563 = vmatpush1.msra.mxu0 0.0
        %564 = vmatprep.subr.mxu0 0.0
        %565 = vmatpush1.msra.mxu0 0.0
        %566 = vmatprep.subr.mxu0 0.0
        %567 = vmatpush1.msra.mxu0 0.0
        %568 = vmatprep.subr.mxu0 0.0
        %569 = vmatpush1.msra.mxu0 0.0
        %570 = vmatprep.subr.mxu0 0.0
        %571 = vmatpush1.msra.mxu0 0.0
        %572 = vmatprep.subr.mxu0 0.0
        %573 = vmatpush1.msra.mxu0 0.0
        %574 = vmatprep.subr.mxu0 0.0
        %575 = vmatpush1.msra.mxu0 0.0
        %576 = vmatprep.subr.mxu0 0.0
        %577 = vmatpush1.msra.mxu0 0.0
        %578 = vmatprep.subr.mxu0 0.0
        %579 = vmatpush1.msra.mxu0 0.0
        %580 = vmatprep.subr.mxu0 0.0
        %581 = vmatpush1.msra.mxu0 0.0
        %582 = vmatprep.subr.mxu0 0.0
        %583 = vmatpush1.msra.mxu0 0.0
        %584 = vmatprep.subr.mxu0 0.0
        %585 = vmatpush1.msra.mxu0 0.0
        %586 = vmatprep.mubr.f32.mxu0 0.0
        %587 = vmatmul.mubr.f32.gmra.mrb[0].mxu0 %v450
        %v588 = vpop.f32.mrb[0].mxu0
        %v589 = vadd.f32 0.0, %v588
        %v590 = vpop.f32.mrb[0].mxu0
        %591 = vdwg.mxu0
        %592 = vmatprep.subr.mxu0 0.0
        %593 = vmatpush1.msra.mxu0 %v409
        %594 = vmatprep.subr.mxu0 0.0
        %595 = vmatpush1.msra.mxu0 %v410
        %596 = vmatprep.subr.mxu0 0.0
        %597 = vmatpush1.msra.mxu0 %v411
        %598 = vmatprep.subr.mxu0 0.0
        %599 = vmatpush1.msra.mxu0 %v412
        %600 = vmatprep.subr.mxu0 0.0
        %601 = vmatpush1.msra.mxu0 0.0
        %602 = vmatprep.subr.mxu0 0.0
        %603 = vmatpush1.msra.mxu0 0.0
        %604 = vmatprep.subr.mxu0 0.0
        %605 = vmatpush1.msra.mxu0 0.0
        %606 = vmatprep.subr.mxu0 0.0
        %607 = vmatpush1.msra.mxu0 0.0
        %608 = vmatprep.subr.mxu0 0.0
        %609 = vmatpush1.msra.mxu0 0.0
        %610 = vmatprep.subr.mxu0 0.0
        %611 = vmatpush1.msra.mxu0 0.0
        %612 = vmatprep.subr.mxu0 0.0
        %613 = vmatpush1.msra.mxu0 0.0
        %614 = vmatprep.subr.mxu0 0.0
        %615 = vmatpush1.msra.mxu0 0.0
        %616 = vmatprep.subr.mxu0 0.0
        %617 = vmatpush1.msra.mxu0 0.0
        %618 = vmatprep.subr.mxu0 0.0
        %619 = vmatpush1.msra.mxu0 0.0
        %620 = vmatprep.subr.mxu0 0.0
        %621 = vmatpush1.msra.mxu0 0.0
        %622 = vmatprep.subr.mxu0 0.0
        %623 = vmatpush1.msra.mxu0 0.0
        %624 = vmatprep.subr.mxu0 0.0
        %625 = vmatpush1.msra.mxu0 0.0
        %626 = vmatprep.subr.mxu0 0.0
        %627 = vmatpush1.msra.mxu0 0.0
        %628 = vmatprep.subr.mxu0 0.0
        %629 = vmatpush1.msra.mxu0 0.0
        %630 = vmatprep.subr.mxu0 0.0
        %631 = vmatpush1.msra.mxu0 0.0
        %632 = vmatprep.subr.mxu0 0.0
        %633 = vmatpush1.msra.mxu0 0.0
        %634 = vmatprep.subr.mxu0 0.0
        %635 = vmatpush1.msra.mxu0 0.0
        %636 = vmatprep.subr.mxu0 0.0
        %637 = vmatpush1.msra.mxu0 0.0
        %638 = vmatprep.subr.mxu0 0.0
        %639 = vmatpush1.msra.mxu0 0.0
        %640 = vmatprep.subr.mxu0 0.0
        %641 = vmatpush1.msra.mxu0 0.0
        %642 = vmatprep.subr.mxu0 0.0
        %643 = vmatpush1.msra.mxu0 0.0
        %644 = vmatprep.subr.mxu0 0.0
        %645 = vmatpush1.msra.mxu0 0.0
        %646 = vmatprep.subr.mxu0 0.0
        %647 = vmatpush1.msra.mxu0 0.0
        %648 = vmatprep.subr.mxu0 0.0
        %649 = vmatpush1.msra.mxu0 0.0
        %650 = vmatprep.subr.mxu0 0.0
        %651 = vmatpush1.msra.mxu0 0.0
        %652 = vmatprep.subr.mxu0 0.0
        %653 = vmatpush1.msra.mxu0 0.0
        %654 = vmatprep.subr.mxu0 0.0
        %655 = vmatpush1.msra.mxu0 0.0
        %656 = vmatprep.mubr.f32.mxu0 0.0
        %657 = vmatmul.mubr.f32.gmra.mrb[0].mxu0 %v450
        %v658 = vpop.f32.mrb[0].mxu0
        %v659 = vadd.f32 0.0, %v658
        %v660 = vpop.f32.mrb[0].mxu0
        %661 = vdwg.mxu0
        %662 = vmatprep.subr.mxu0 0.0
        %663 = vmatpush1.msra.mxu0 %v413
        %664 = vmatprep.subr.mxu0 0.0
        %665 = vmatpush1.msra.mxu0 %v414
        %666 = vmatprep.subr.mxu0 0.0
        %667 = vmatpush1.msra.mxu0 %v415
        %668 = vmatprep.subr.mxu0 0.0
        %669 = vmatpush1.msra.mxu0 %v416
        %670 = vmatprep.subr.mxu0 0.0
        %671 = vmatpush1.msra.mxu0 0.0
        %672 = vmatprep.subr.mxu0 0.0
        %673 = vmatpush1.msra.mxu0 0.0
        %674 = vmatprep.subr.mxu0 0.0
        %675 = vmatpush1.msra.mxu0 0.0
        %676 = vmatprep.subr.mxu0 0.0
        %677 = vmatpush1.msra.mxu0 0.0
        %678 = vmatprep.subr.mxu0 0.0
        %679 = vmatpush1.msra.mxu0 0.0
        %680 = vmatprep.subr.mxu0 0.0
        %681 = vmatpush1.msra.mxu0 0.0
        %682 = vmatprep.subr.mxu0 0.0
        %683 = vmatpush1.msra.mxu0 0.0
        %684 = vmatprep.subr.mxu0 0.0
        %685 = vmatpush1.msra.mxu0 0.0
        %686 = vmatprep.subr.mxu0 0.0
        %687 = vmatpush1.msra.mxu0 0.0
        %688 = vmatprep.subr.mxu0 0.0
        %689 = vmatpush1.msra.mxu0 0.0
        %690 = vmatprep.subr.mxu0 0.0
        %691 = vmatpush1.msra.mxu0 0.0
        %692 = vmatprep.subr.mxu0 0.0
        %693 = vmatpush1.msra.mxu0 0.0
        %694 = vmatprep.subr.mxu0 0.0
        %695 = vmatpush1.msra.mxu0 0.0
        %696 = vmatprep.subr.mxu0 0.0
        %697 = vmatpush1.msra.mxu0 0.0
        %698 = vmatprep.subr.mxu0 0.0
        %699 = vmatpush1.msra.mxu0 0.0
        %700 = vmatprep.subr.mxu0 0.0
        %701 = vmatpush1.msra.mxu0 0.0
        %702 = vmatprep.subr.mxu0 0.0
        %703 = vmatpush1.msra.mxu0 0.0
        %704 = vmatprep.subr.mxu0 0.0
        %705 = vmatpush1.msra.mxu0 0.0
        %706 = vmatprep.subr.mxu0 0.0
        %707 = vmatpush1.msra.mxu0 0.0
        %708 = vmatprep.subr.mxu0 0.0
        %709 = vmatpush1.msra.mxu0 0.0
        %710 = vmatprep.subr.mxu0 0.0
        %711 = vmatpush1.msra.mxu0 0.0
        %712 = vmatprep.subr.mxu0 0.0
        %713 = vmatpush1.msra.mxu0 0.0
        %714 = vmatprep.subr.mxu0 0.0
        %715 = vmatpush1.msra.mxu0 0.0
        %716 = vmatprep.subr.mxu0 0.0
        %717 = vmatpush1.msra.mxu0 0.0
        %718 = vmatprep.subr.mxu0 0.0
        %719 = vmatpush1.msra.mxu0 0.0
        %720 = vmatprep.subr.mxu0 0.0
        %721 = vmatpush1.msra.mxu0 0.0
        %722 = vmatprep.subr.mxu0 0.0
        %723 = vmatpush1.msra.mxu0 0.0
        %724 = vmatprep.subr.mxu0 0.0
        %725 = vmatpush1.msra.mxu0 0.0
        %726 = vmatprep.mubr.f32.mxu0 0.0
        %727 = vmatmul.mubr.f32.gmra.mrb[0].mxu0 %v450
        %v728 = vpop.f32.mrb[0].mxu0
        %v729 = vadd.f32 0.0, %v728
        %v730 = vpop.f32.mrb[0].mxu0
        %731 = vdwg.mxu0
        %732 = vmatprep.subr.mxu0 0.0
        %733 = vmatpush1.msra.mxu0 %v417
        %734 = vmatprep.subr.mxu0 0.0
        %735 = vmatpush1.msra.mxu0 %v418
        %736 = vmatprep.subr.mxu0 0.0
        %737 = vmatpush1.msra.mxu0 %v419
        %738 = vmatprep.subr.mxu0 0.0
        %739 = vmatpush1.msra.mxu0 %v420
        %740 = vmatprep.subr.mxu0 0.0
        %741 = vmatpush1.msra.mxu0 0.0
        %742 = vmatprep.subr.mxu0 0.0
        %743 = vmatpush1.msra.mxu0 0.0
        %744 = vmatprep.subr.mxu0 0.0
        %745 = vmatpush1.msra.mxu0 0.0
        %746 = vmatprep.subr.mxu0 0.0
        %747 = vmatpush1.msra.mxu0 0.0
        %748 = vmatprep.subr.mxu0 0.0
        %749 = vmatpush1.msra.mxu0 0.0
        %750 = vmatprep.subr.mxu0 0.0
        %751 = vmatpush1.msra.mxu0 0.0
        %752 = vmatprep.subr.mxu0 0.0
        %753 = vmatpush1.msra.mxu0 0.0
        %754 = vmatprep.subr.mxu0 0.0
        %755 = vmatpush1.msra.mxu0 0.0
        %756 = vmatprep.subr.mxu0 0.0
        %757 = vmatpush1.msra.mxu0 0.0
        %758 = vmatprep.subr.mxu0 0.0
        %759 = vmatpush1.msra.mxu0 0.0
        %760 = vmatprep.subr.mxu0 0.0
        %761 = vmatpush1.msra.mxu0 0.0
        %762 = vmatprep.subr.mxu0 0.0
        %763 = vmatpush1.msra.mxu0 0.0
        %764 = vmatprep.subr.mxu0 0.0
        %765 = vmatpush1.msra.mxu0 0.0
        %766 = vmatprep.subr.mxu0 0.0
        %767 = vmatpush1.msra.mxu0 0.0
        %768 = vmatprep.subr.mxu0 0.0
        %769 = vmatpush1.msra.mxu0 0.0
        %770 = vmatprep.subr.mxu0 0.0
        %771 = vmatpush1.msra.mxu0 0.0
        %772 = vmatprep.subr.mxu0 0.0
        %773 = vmatpush1.msra.mxu0 0.0
        %774 = vmatprep.subr.mxu0 0.0
        %775 = vmatpush1.msra.mxu0 0.0
        %776 = vmatprep.subr.mxu0 0.0
        %777 = vmatpush1.msra.mxu0 0.0
        %778 = vmatprep.subr.mxu0 0.0
        %779 = vmatpush1.msra.mxu0 0.0
        %780 = vmatprep.subr.mxu0 0.0
        %781 = vmatpush1.msra.mxu0 0.0
        %782 = vmatprep.subr.mxu0 0.0
        %783 = vmatpush1.msra.mxu0 0.0
        %784 = vmatprep.subr.mxu0 0.0
        %785 = vmatpush1.msra.mxu0 0.0
        %786 = vmatprep.subr.mxu0 0.0
        %787 = vmatpush1.msra.mxu0 0.0
        %788 = vmatprep.subr.mxu0 0.0
        %789 = vmatpush1.msra.mxu0 0.0
        %790 = vmatprep.subr.mxu0 0.0
        %791 = vmatpush1.msra.mxu0 0.0
        %792 = vmatprep.subr.mxu0 0.0
        %793 = vmatpush1.msra.mxu0 0.0
        %794 = vmatprep.subr.mxu0 0.0
        %795 = vmatpush1.msra.mxu0 0.0
        %796 = vmatprep.mubr.f32.mxu0 0.0
        %797 = vmatmul.mubr.f32.gmra.mrb[0].mxu0 %v450
        %v798 = vpop.f32.mrb[0].mxu0
        %v799 = vadd.f32 0.0, %v798
        %v800 = vpop.f32.mrb[0].mxu0
        %801 = vdwg.mxu0
        %802 = vmatprep.subr.mxu0 0.0
        %803 = vmatpush1.msra.mxu0 %v421
        %804 = vmatprep.subr.mxu0 0.0
        %805 = vmatpush1.msra.mxu0 %v422
        %806 = vmatprep.subr.mxu0 0.0
        %807 = vmatpush1.msra.mxu0 %v423
        %808 = vmatprep.subr.mxu0 0.0
        %809 = vmatpush1.msra.mxu0 %v424
        %810 = vmatprep.subr.mxu0 0.0
        %811 = vmatpush1.msra.mxu0 0.0
        %812 = vmatprep.subr.mxu0 0.0
        %813 = vmatpush1.msra.mxu0 0.0
        %814 = vmatprep.subr.mxu0 0.0
        %815 = vmatpush1.msra.mxu0 0.0
        %816 = vmatprep.subr.mxu0 0.0
        %817 = vmatpush1.msra.mxu0 0.0
        %818 = vmatprep.subr.mxu0 0.0
        %819 = vmatpush1.msra.mxu0 0.0
        %820 = vmatprep.subr.mxu0 0.0
        %821 = vmatpush1.msra.mxu0 0.0
        %822 = vmatprep.subr.mxu0 0.0
        %823 = vmatpush1.msra.mxu0 0.0
        %824 = vmatprep.subr.mxu0 0.0
        %825 = vmatpush1.msra.mxu0 0.0
        %826 = vmatprep.subr.mxu0 0.0
        %827 = vmatpush1.msra.mxu0 0.0
        %828 = vmatprep.subr.mxu0 0.0
        %829 = vmatpush1.msra.mxu0 0.0
        %830 = vmatprep.subr.mxu0 0.0
        %831 = vmatpush1.msra.mxu0 0.0
        %832 = vmatprep.subr.mxu0 0.0
        %833 = vmatpush1.msra.mxu0 0.0
        %834 = vmatprep.subr.mxu0 0.0
        %835 = vmatpush1.msra.mxu0 0.0
        %836 = vmatprep.subr.mxu0 0.0
        %837 = vmatpush1.msra.mxu0 0.0
        %838 = vmatprep.subr.mxu0 0.0
        %839 = vmatpush1.msra.mxu0 0.0
        %840 = vmatprep.subr.mxu0 0.0
        %841 = vmatpush1.msra.mxu0 0.0
        %842 = vmatprep.subr.mxu0 0.0
        %843 = vmatpush1.msra.mxu0 0.0
        %844 = vmatprep.subr.mxu0 0.0
        %845 = vmatpush1.msra.mxu0 0.0
        %846 = vmatprep.subr.mxu0 0.0
        %847 = vmatpush1.msra.mxu0 0.0
        %848 = vmatprep.subr.mxu0 0.0
        %849 = vmatpush1.msra.mxu0 0.0
        %850 = vmatprep.subr.mxu0 0.0
        %851 = vmatpush1.msra.mxu0 0.0
        %852 = vmatprep.subr.mxu0 0.0
        %853 = vmatpush1.msra.mxu0 0.0
        %854 = vmatprep.subr.mxu0 0.0
        %855 = vmatpush1.msra.mxu0 0.0
        %856 = vmatprep.subr.mxu0 0.0
        %857 = vmatpush1.msra.mxu0 0.0
        %858 = vmatprep.subr.mxu0 0.0
        %859 = vmatpush1.msra.mxu0 0.0
        %860 = vmatprep.subr.mxu0 0.0
        %861 = vmatpush1.msra.mxu0 0.0
        %862 = vmatprep.subr.mxu0 0.0
        %863 = vmatpush1.msra.mxu0 0.0
        %864 = vmatprep.subr.mxu0 0.0
        %865 = vmatpush1.msra.mxu0 0.0
        %866 = vmatprep.mubr.f32.mxu0 0.0
        %867 = vmatmul.mubr.f32.gmra.mrb[0].mxu0 %v450
        %v868 = vpop.f32.mrb[0].mxu0
        %v869 = vadd.f32 0.0, %v868
        %v870 = vpop.f32.mrb[0].mxu0
        %871 = vdwg.mxu0
        %872 = vmatprep.subr.mxu0 0.0
        %873 = vmatpush1.msra.mxu0 %v425
        %874 = vmatprep.subr.mxu0 0.0
        %875 = vmatpush1.msra.mxu0 %v426
        %876 = vmatprep.subr.mxu0 0.0
        %877 = vmatpush1.msra.mxu0 %v427
        %878 = vmatprep.subr.mxu0 0.0
        %879 = vmatpush1.msra.mxu0 %v428
        %880 = vmatprep.subr.mxu0 0.0
        %881 = vmatpush1.msra.mxu0 0.0
        %882 = vmatprep.subr.mxu0 0.0
        %883 = vmatpush1.msra.mxu0 0.0
        %884 = vmatprep.subr.mxu0 0.0
        %885 = vmatpush1.msra.mxu0 0.0
        %886 = vmatprep.subr.mxu0 0.0
        %887 = vmatpush1.msra.mxu0 0.0
        %888 = vmatprep.subr.mxu0 0.0
        %889 = vmatpush1.msra.mxu0 0.0
        %890 = vmatprep.subr.mxu0 0.0
        %891 = vmatpush1.msra.mxu0 0.0
        %892 = vmatprep.subr.mxu0 0.0
        %893 = vmatpush1.msra.mxu0 0.0
        %894 = vmatprep.subr.mxu0 0.0
        %895 = vmatpush1.msra.mxu0 0.0
        %896 = vmatprep.subr.mxu0 0.0
        %897 = vmatpush1.msra.mxu0 0.0
        %898 = vmatprep.subr.mxu0 0.0
        %899 = vmatpush1.msra.mxu0 0.0
        %900 = vmatprep.subr.mxu0 0.0
        %901 = vmatpush1.msra.mxu0 0.0
        %902 = vmatprep.subr.mxu0 0.0
        %903 = vmatpush1.msra.mxu0 0.0
        %904 = vmatprep.subr.mxu0 0.0
        %905 = vmatpush1.msra.mxu0 0.0
        %906 = vmatprep.subr.mxu0 0.0
        %907 = vmatpush1.msra.mxu0 0.0
        %908 = vmatprep.subr.mxu0 0.0
        %909 = vmatpush1.msra.mxu0 0.0
        %910 = vmatprep.subr.mxu0 0.0
        %911 = vmatpush1.msra.mxu0 0.0
        %912 = vmatprep.subr.mxu0 0.0
        %913 = vmatpush1.msra.mxu0 0.0
        %914 = vmatprep.subr.mxu0 0.0
        %915 = vmatpush1.msra.mxu0 0.0
        %916 = vmatprep.subr.mxu0 0.0
        %917 = vmatpush1.msra.mxu0 0.0
        %918 = vmatprep.subr.mxu0 0.0
        %919 = vmatpush1.msra.mxu0 0.0
        %920 = vmatprep.subr.mxu0 0.0
        %921 = vmatpush1.msra.mxu0 0.0
        %922 = vmatprep.subr.mxu0 0.0
        %923 = vmatpush1.msra.mxu0 0.0
        %924 = vmatprep.subr.mxu0 0.0
        %925 = vmatpush1.msra.mxu0 0.0
        %926 = vmatprep.subr.mxu0 0.0
        %927 = vmatpush1.msra.mxu0 0.0
        %928 = vmatprep.subr.mxu0 0.0
        %929 = vmatpush1.msra.mxu0 0.0
        %930 = vmatprep.subr.mxu0 0.0
        %931 = vmatpush1.msra.mxu0 0.0
        %932 = vmatprep.subr.mxu0 0.0
        %933 = vmatpush1.msra.mxu0 0.0
        %934 = vmatprep.subr.mxu0 0.0
        %935 = vmatpush1.msra.mxu0 0.0
        %936 = vmatprep.mubr.f32.mxu0 0.0
        %937 = vmatmul.mubr.f32.gmra.mrb[0].mxu0 %v450
        %v938 = vpop.f32.mrb[0].mxu0
        %v939 = vadd.f32 0.0, %v938
        %v940 = vpop.f32.mrb[0].mxu0
        %941 = vdwg.mxu0
        %942 = vmatprep.subr.mxu0 0.0
        %943 = vmatpush1.msra.mxu0 %v429
        %944 = vmatprep.subr.mxu0 0.0
        %945 = vmatpush1.msra.mxu0 %v430
        %946 = vmatprep.subr.mxu0 0.0
        %947 = vmatpush1.msra.mxu0 %v431
        %948 = vmatprep.subr.mxu0 0.0
        %949 = vmatpush1.msra.mxu0 %v432
        %950 = vmatprep.subr.mxu0 0.0
        %951 = vmatpush1.msra.mxu0 0.0
        %952 = vmatprep.subr.mxu0 0.0
        %953 = vmatpush1.msra.mxu0 0.0
        %954 = vmatprep.subr.mxu0 0.0
        %955 = vmatpush1.msra.mxu0 0.0
        %956 = vmatprep.subr.mxu0 0.0
        %957 = vmatpush1.msra.mxu0 0.0
        %958 = vmatprep.subr.mxu0 0.0
        %959 = vmatpush1.msra.mxu0 0.0
        %960 = vmatprep.subr.mxu0 0.0
        %961 = vmatpush1.msra.mxu0 0.0
        %962 = vmatprep.subr.mxu0 0.0
        %963 = vmatpush1.msra.mxu0 0.0
        %964 = vmatprep.subr.mxu0 0.0
        %965 = vmatpush1.msra.mxu0 0.0
        %966 = vmatprep.subr.mxu0 0.0
        %967 = vmatpush1.msra.mxu0 0.0
        %968 = vmatprep.subr.mxu0 0.0
        %969 = vmatpush1.msra.mxu0 0.0
        %970 = vmatprep.subr.mxu0 0.0
        %971 = vmatpush1.msra.mxu0 0.0
        %972 = vmatprep.subr.mxu0 0.0
        %973 = vmatpush1.msra.mxu0 0.0
        %974 = vmatprep.subr.mxu0 0.0
        %975 = vmatpush1.msra.mxu0 0.0
        %976 = vmatprep.subr.mxu0 0.0
        %977 = vmatpush1.msra.mxu0 0.0
        %978 = vmatprep.subr.mxu0 0.0
        %979 = vmatpush1.msra.mxu0 0.0
        %980 = vmatprep.subr.mxu0 0.0
        %981 = vmatpush1.msra.mxu0 0.0
        %982 = vmatprep.subr.mxu0 0.0
        %983 = vmatpush1.msra.mxu0 0.0
        %984 = vmatprep.subr.mxu0 0.0
        %985 = vmatpush1.msra.mxu0 0.0
        %986 = vmatprep.subr.mxu0 0.0
        %987 = vmatpush1.msra.mxu0 0.0
        %988 = vmatprep.subr.mxu0 0.0
        %989 = vmatpush1.msra.mxu0 0.0
        %990 = vmatprep.subr.mxu0 0.0
        %991 = vmatpush1.msra.mxu0 0.0
        %992 = vmatprep.subr.mxu0 0.0
        %993 = vmatpush1.msra.mxu0 0.0
        %994 = vmatprep.subr.mxu0 0.0
        %995 = vmatpush1.msra.mxu0 0.0
        %996 = vmatprep.subr.mxu0 0.0
        %997 = vmatpush1.msra.mxu0 0.0
        %998 = vmatprep.subr.mxu0 0.0
        %999 = vmatpush1.msra.mxu0 0.0
        %1000 = vmatprep.subr.mxu0 0.0
        %1001 = vmatpush1.msra.mxu0 0.0
        %1002 = vmatprep.subr.mxu0 0.0
        %1003 = vmatpush1.msra.mxu0 0.0
        %1004 = vmatprep.subr.mxu0 0.0
        %1005 = vmatpush1.msra.mxu0 0.0
        %1006 = vmatprep.mubr.f32.mxu0 0.0
        %1007 = vmatmul.mubr.f32.gmra.mrb[0].mxu0 %v450
        %v1008 = vpop.f32.mrb[0].mxu0
        %v1009 = vadd.f32 0.0, %v1008
        %v1010 = vpop.f32.mrb[0].mxu0
        %1011 = vdwg.mxu0
        %1012 = vmatprep.subr.mxu0 0.0
        %1013 = vmatpush1.msra.mxu0 %v433
        %1014 = vmatprep.subr.mxu0 0.0
        %1015 = vmatpush1.msra.mxu0 %v434
        %1016 = vmatprep.subr.mxu0 0.0
        %1017 = vmatpush1.msra.mxu0 %v435
        %1018 = vmatprep.subr.mxu0 0.0
        %1019 = vmatpush1.msra.mxu0 %v436
        %1020 = vmatprep.subr.mxu0 0.0
        %1021 = vmatpush1.msra.mxu0 0.0
        %1022 = vmatprep.subr.mxu0 0.0
        %1023 = vmatpush1.msra.mxu0 0.0
        %1024 = vmatprep.subr.mxu0 0.0
        %1025 = vmatpush1.msra.mxu0 0.0
        %1026 = vmatprep.subr.mxu0 0.0
        %1027 = vmatpush1.msra.mxu0 0.0
        %1028 = vmatprep.subr.mxu0 0.0
        %1029 = vmatpush1.msra.mxu0 0.0
        %1030 = vmatprep.subr.mxu0 0.0
        %1031 = vmatpush1.msra.mxu0 0.0
        %1032 = vmatprep.subr.mxu0 0.0
        %1033 = vmatpush1.msra.mxu0 0.0
        %1034 = vmatprep.subr.mxu0 0.0
        %1035 = vmatpush1.msra.mxu0 0.0
        %1036 = vmatprep.subr.mxu0 0.0
        %1037 = vmatpush1.msra.mxu0 0.0
        %1038 = vmatprep.subr.mxu0 0.0
        %1039 = vmatpush1.msra.mxu0 0.0
        %1040 = vmatprep.subr.mxu0 0.0
        %1041 = vmatpush1.msra.mxu0 0.0
        %1042 = vmatprep.subr.mxu0 0.0
        %1043 = vmatpush1.msra.mxu0 0.0
        %1044 = vmatprep.subr.mxu0 0.0
        %1045 = vmatpush1.msra.mxu0 0.0
        %1046 = vmatprep.subr.mxu0 0.0
        %1047 = vmatpush1.msra.mxu0 0.0
        %1048 = vmatprep.subr.mxu0 0.0
        %1049 = vmatpush1.msra.mxu0 0.0
        %1050 = vmatprep.subr.mxu0 0.0
        %1051 = vmatpush1.msra.mxu0 0.0
        %1052 = vmatprep.subr.mxu0 0.0
        %1053 = vmatpush1.msra.mxu0 0.0
        %1054 = vmatprep.subr.mxu0 0.0
        %1055 = vmatpush1.msra.mxu0 0.0
        %1056 = vmatprep.subr.mxu0 0.0
        %1057 = vmatpush1.msra.mxu0 0.0
        %1058 = vmatprep.subr.mxu0 0.0
        %1059 = vmatpush1.msra.mxu0 0.0
        %1060 = vmatprep.subr.mxu0 0.0
        %1061 = vmatpush1.msra.mxu0 0.0
        %1062 = vmatprep.subr.mxu0 0.0
        %1063 = vmatpush1.msra.mxu0 0.0
        %1064 = vmatprep.subr.mxu0 0.0
        %1065 = vmatpush1.msra.mxu0 0.0
        %1066 = vmatprep.subr.mxu0 0.0
        %1067 = vmatpush1.msra.mxu0 0.0
        %1068 = vmatprep.subr.mxu0 0.0
        %1069 = vmatpush1.msra.mxu0 0.0
        %1070 = vmatprep.subr.mxu0 0.0
        %1071 = vmatpush1.msra.mxu0 0.0
        %1072 = vmatprep.subr.mxu0 0.0
        %1073 = vmatpush1.msra.mxu0 0.0
        %1074 = vmatprep.subr.mxu0 0.0
        %1075 = vmatpush1.msra.mxu0 0.0
        %1076 = vmatprep.mubr.f32.mxu0 0.0
        %1077 = vmatmul.mubr.f32.gmra.mrb[0].mxu0 %v450
        %v1078 = vpop.f32.mrb[0].mxu0
        %v1079 = vadd.f32 0.0, %v1078
        %v1080 = vpop.f32.mrb[0].mxu0
        %1081 = vdwg.mxu0
        %1082 = vmatprep.subr.mxu0 0.0
        %1083 = vmatpush1.msra.mxu0 %v437
        %1084 = vmatprep.subr.mxu0 0.0
        %1085 = vmatpush1.msra.mxu0 %v438
        %1086 = vmatprep.subr.mxu0 0.0
        %1087 = vmatpush1.msra.mxu0 %v439
        %1088 = vmatprep.subr.mxu0 0.0
        %1089 = vmatpush1.msra.mxu0 %v440
        %1090 = vmatprep.subr.mxu0 0.0
        %1091 = vmatpush1.msra.mxu0 0.0
        %1092 = vmatprep.subr.mxu0 0.0
        %1093 = vmatpush1.msra.mxu0 0.0
        %1094 = vmatprep.subr.mxu0 0.0
        %1095 = vmatpush1.msra.mxu0 0.0
        %1096 = vmatprep.subr.mxu0 0.0
        %1097 = vmatpush1.msra.mxu0 0.0
        %1098 = vmatprep.subr.mxu0 0.0
        %1099 = vmatpush1.msra.mxu0 0.0
        %1100 = vmatprep.subr.mxu0 0.0
        %1101 = vmatpush1.msra.mxu0 0.0
        %1102 = vmatprep.subr.mxu0 0.0
        %1103 = vmatpush1.msra.mxu0 0.0
        %1104 = vmatprep.subr.mxu0 0.0
        %1105 = vmatpush1.msra.mxu0 0.0
        %1106 = vmatprep.subr.mxu0 0.0
        %1107 = vmatpush1.msra.mxu0 0.0
        %1108 = vmatprep.subr.mxu0 0.0
        %1109 = vmatpush1.msra.mxu0 0.0
        %1110 = vmatprep.subr.mxu0 0.0
        %1111 = vmatpush1.msra.mxu0 0.0
        %1112 = vmatprep.subr.mxu0 0.0
        %1113 = vmatpush1.msra.mxu0 0.0
        %1114 = vmatprep.subr.mxu0 0.0
        %1115 = vmatpush1.msra.mxu0 0.0
        %1116 = vmatprep.subr.mxu0 0.0
        %1117 = vmatpush1.msra.mxu0 0.0
        %1118 = vmatprep.subr.mxu0 0.0
        %1119 = vmatpush1.msra.mxu0 0.0
        %1120 = vmatprep.subr.mxu0 0.0
        %1121 = vmatpush1.msra.mxu0 0.0
        %1122 = vmatprep.subr.mxu0 0.0
        %1123 = vmatpush1.msra.mxu0 0.0
        %1124 = vmatprep.subr.mxu0 0.0
        %1125 = vmatpush1.msra.mxu0 0.0
        %1126 = vmatprep.subr.mxu0 0.0
        %1127 = vmatpush1.msra.mxu0 0.0
        %1128 = vmatprep.subr.mxu0 0.0
        %1129 = vmatpush1.msra.mxu0 0.0
        %1130 = vmatprep.subr.mxu0 0.0
        %1131 = vmatpush1.msra.mxu0 0.0
        %1132 = vmatprep.subr.mxu0 0.0
        %1133 = vmatpush1.msra.mxu0 0.0
        %1134 = vmatprep.subr.mxu0 0.0
        %1135 = vmatpush1.msra.mxu0 0.0
        %1136 = vmatprep.subr.mxu0 0.0
        %1137 = vmatpush1.msra.mxu0 0.0
        %1138 = vmatprep.subr.mxu0 0.0
        %1139 = vmatpush1.msra.mxu0 0.0
        %1140 = vmatprep.subr.mxu0 0.0
        %1141 = vmatpush1.msra.mxu0 0.0
        %1142 = vmatprep.subr.mxu0 0.0
        %1143 = vmatpush1.msra.mxu0 0.0
        %1144 = vmatprep.subr.mxu0 0.0
        %1145 = vmatpush1.msra.mxu0 0.0
        %1146 = vmatprep.mubr.f32.mxu0 0.0
        %1147 = vmatmul.mubr.f32.gmra.mrb[0].mxu0 %v450
        %v1148 = vpop.f32.mrb[0].mxu0
        %v1149 = vadd.f32 0.0, %v1148
        %v1150 = vpop.f32.mrb[0].mxu0
        %1151 = vdwg.mxu0
        %1152 = vmatprep.subr.mxu0 0.0
        %1153 = vmatpush1.msra.mxu0 %v441
        %1154 = vmatprep.subr.mxu0 0.0
        %1155 = vmatpush1.msra.mxu0 %v442
        %1156 = vmatprep.subr.mxu0 0.0
        %1157 = vmatpush1.msra.mxu0 %v443
        %1158 = vmatprep.subr.mxu0 0.0
        %1159 = vmatpush1.msra.mxu0 %v444
        %1160 = vmatprep.subr.mxu0 0.0
        %1161 = vmatpush1.msra.mxu0 0.0
        %1162 = vmatprep.subr.mxu0 0.0
        %1163 = vmatpush1.msra.mxu0 0.0
        %1164 = vmatprep.subr.mxu0 0.0
        %1165 = vmatpush1.msra.mxu0 0.0
        %1166 = vmatprep.subr.mxu0 0.0
        %1167 = vmatpush1.msra.mxu0 0.0
        %1168 = vmatprep.subr.mxu0 0.0
        %1169 = vmatpush1.msra.mxu0 0.0
        %1170 = vmatprep.subr.mxu0 0.0
        %1171 = vmatpush1.msra.mxu0 0.0
        %1172 = vmatprep.subr.mxu0 0.0
        %1173 = vmatpush1.msra.mxu0 0.0
        %1174 = vmatprep.subr.mxu0 0.0
        %1175 = vmatpush1.msra.mxu0 0.0
        %1176 = vmatprep.subr.mxu0 0.0
        %1177 = vmatpush1.msra.mxu0 0.0
        %1178 = vmatprep.subr.mxu0 0.0
        %1179 = vmatpush1.msra.mxu0 0.0
        %1180 = vmatprep.subr.mxu0 0.0
        %1181 = vmatpush1.msra.mxu0 0.0
        %1182 = vmatprep.subr.mxu0 0.0
        %1183 = vmatpush1.msra.mxu0 0.0
        %1184 = vmatprep.subr.mxu0 0.0
        %1185 = vmatpush1.msra.mxu0 0.0
        %1186 = vmatprep.subr.mxu0 0.0
        %1187 = vmatpush1.msra.mxu0 0.0
        %1188 = vmatprep.subr.mxu0 0.0
        %1189 = vmatpush1.msra.mxu0 0.0
        %1190 = vmatprep.subr.mxu0 0.0
        %1191 = vmatpush1.msra.mxu0 0.0
        %1192 = vmatprep.subr.mxu0 0.0
        %1193 = vmatpush1.msra.mxu0 0.0
        %1194 = vmatprep.subr.mxu0 0.0
        %1195 = vmatpush1.msra.mxu0 0.0
        %1196 = vmatprep.subr.mxu0 0.0
        %1197 = vmatpush1.msra.mxu0 0.0
        %1198 = vmatprep.subr.mxu0 0.0
        %1199 = vmatpush1.msra.mxu0 0.0
        %1200 = vmatprep.subr.mxu0 0.0
        %1201 = vmatpush1.msra.mxu0 0.0
        %1202 = vmatprep.subr.mxu0 0.0
        %1203 = vmatpush1.msra.mxu0 0.0
        %1204 = vmatprep.subr.mxu0 0.0
        %1205 = vmatpush1.msra.mxu0 0.0
        %1206 = vmatprep.subr.mxu0 0.0
        %1207 = vmatpush1.msra.mxu0 0.0
        %1208 = vmatprep.subr.mxu0 0.0
        %1209 = vmatpush1.msra.mxu0 0.0
        %1210 = vmatprep.subr.mxu0 0.0
        %1211 = vmatpush1.msra.mxu0 0.0
        %1212 = vmatprep.subr.mxu0 0.0
        %1213 = vmatpush1.msra.mxu0 0.0
        %1214 = vmatprep.subr.mxu0 0.0
        %1215 = vmatpush1.msra.mxu0 0.0
        %1216 = vmatprep.mubr.f32.mxu0 0.0
        %1217 = vmatmul.mubr.f32.gmra.mrb[0].mxu0 %v450
        %v1218 = vpop.f32.mrb[0].mxu0
        %v1219 = vadd.f32 0.0, %v1218
        %v1220 = vpop.f32.mrb[0].mxu0
        %1221 = vdwg.mxu0
        %1222 = vmatprep.subr.mxu0 0.0
        %1223 = vmatpush1.msra.mxu0 %v445
        %1224 = vmatprep.subr.mxu0 0.0
        %1225 = vmatpush1.msra.mxu0 %v446
        %1226 = vmatprep.subr.mxu0 0.0
        %1227 = vmatpush1.msra.mxu0 %v447
        %1228 = vmatprep.subr.mxu0 0.0
        %1229 = vmatpush1.msra.mxu0 %v448
        %1230 = vmatprep.subr.mxu0 0.0
        %1231 = vmatpush1.msra.mxu0 0.0
        %1232 = vmatprep.subr.mxu0 0.0
        %1233 = vmatpush1.msra.mxu0 0.0
        %1234 = vmatprep.subr.mxu0 0.0
        %1235 = vmatpush1.msra.mxu0 0.0
        %1236 = vmatprep.subr.mxu0 0.0
        %1237 = vmatpush1.msra.mxu0 0.0
        %1238 = vmatprep.subr.mxu0 0.0
        %1239 = vmatpush1.msra.mxu0 0.0
        %1240 = vmatprep.subr.mxu0 0.0
        %1241 = vmatpush1.msra.mxu0 0.0
        %1242 = vmatprep.subr.mxu0 0.0
        %1243 = vmatpush1.msra.mxu0 0.0
        %1244 = vmatprep.subr.mxu0 0.0
        %1245 = vmatpush1.msra.mxu0 0.0
        %1246 = vmatprep.subr.mxu0 0.0
        %1247 = vmatpush1.msra.mxu0 0.0
        %1248 = vmatprep.subr.mxu0 0.0
        %1249 = vmatpush1.msra.mxu0 0.0
        %1250 = vmatprep.subr.mxu0 0.0
        %1251 = vmatpush1.msra.mxu0 0.0
        %1252 = vmatprep.subr.mxu0 0.0
        %1253 = vmatpush1.msra.mxu0 0.0
        %1254 = vmatprep.subr.mxu0 0.0
        %1255 = vmatpush1.msra.mxu0 0.0
        %1256 = vmatprep.subr.mxu0 0.0
        %1257 = vmatpush1.msra.mxu0 0.0
        %1258 = vmatprep.subr.mxu0 0.0
        %1259 = vmatpush1.msra.mxu0 0.0
        %1260 = vmatprep.subr.mxu0 0.0
        %1261 = vmatpush1.msra.mxu0 0.0
        %1262 = vmatprep.subr.mxu0 0.0
        %1263 = vmatpush1.msra.mxu0 0.0
        %1264 = vmatprep.subr.mxu0 0.0
        %1265 = vmatpush1.msra.mxu0 0.0
        %1266 = vmatprep.subr.mxu0 0.0
        %1267 = vmatpush1.msra.mxu0 0.0
        %1268 = vmatprep.subr.mxu0 0.0
        %1269 = vmatpush1.msra.mxu0 0.0
        %1270 = vmatprep.subr.mxu0 0.0
        %1271 = vmatpush1.msra.mxu0 0.0
        %1272 = vmatprep.subr.mxu0 0.0
        %1273 = vmatpush1.msra.mxu0 0.0
        %1274 = vmatprep.subr.mxu0 0.0
        %1275 = vmatpush1.msra.mxu0 0.0
        %1276 = vmatprep.subr.mxu0 0.0
        %1277 = vmatpush1.msra.mxu0 0.0
        %1278 = vmatprep.subr.mxu0 0.0
        %1279 = vmatpush1.msra.mxu0 0.0
        %1280 = vmatprep.subr.mxu0 0.0
        %1281 = vmatpush1.msra.mxu0 0.0
        %1282 = vmatprep.subr.mxu0 0.0
        %1283 = vmatpush1.msra.mxu0 0.0
        %1284 = vmatprep.subr.mxu0 0.0
        %1285 = vmatpush1.msra.mxu0 0.0
        %1286 = vmatprep.mubr.f32.mxu0 0.0
        %1287 = vmatmul.mubr.f32.gmra.mrb[0].mxu0 %v450
        %v1288 = vpop.f32.mrb[0].mxu0
        %v1289 = vadd.f32 0.0, %v1288
        %v1290 = vpop.f32.mrb[0].mxu0
        %1291 = vdwg.mxu0
        %v1292 = vld [vmem:[%s5] sm:$0xff]
        %v1293 = vld [vmem:[%s5 + $0x8] sm:$0xff]
        %v1294 = vld [vmem:[%s5 + $0x10] sm:$0xff]
        %v1295 = vld [vmem:[%s5 + $0x18] sm:$0xff]
        %v1296 = vld [vmem:[%s5 + $0x20] sm:$0xff]
        %v1297 = vld [vmem:[%s5 + $0x28] sm:$0xff]
        %v1298 = vld [vmem:[%s5 + $0x30] sm:$0xff]
        %v1299 = vld [vmem:[%s5 + $0x38] sm:$0xff]
        %v1300 = vld [vmem:[%s5 + $0x40] sm:$0xff]
        %v1301 = vld [vmem:[%s5 + $0x48] sm:$0xff]
        %v1302 = vld [vmem:[%s5 + $0x50] sm:$0xff]
        %v1303 = vld [vmem:[%s5 + $0x58] sm:$0xff]
        %v1304 = vld [vmem:[%s5 + $0x60] sm:$0xff]
        %v1305 = vld [vmem:[%s5 + $0x68] sm:$0xff]
        %v1306 = vld [vmem:[%s5 + $0x70] sm:$0xff]
        %v1307 = vld [vmem:[%s5 + $0x78] sm:$0xff]
        %v1308 = vld [vmem:[%s5 + $0x80] sm:$0xff]
        %v1309 = vld [vmem:[%s5 + $0x88] sm:$0xff]
        %v1310 = vld [vmem:[%s5 + $0x90] sm:$0xff]
        %v1311 = vld [vmem:[%s5 + $0x98] sm:$0xff]
        %v1312 = vld [vmem:[%s5 + $0xa0] sm:$0xff]
        %v1313 = vld [vmem:[%s5 + $0xa8] sm:$0xff]
        %v1314 = vld [vmem:[%s5 + $0xb0] sm:$0xff]
        %v1315 = vld [vmem:[%s5 + $0xb8] sm:$0xff]
        %v1316 = vld [vmem:[%s5 + $0xc0] sm:$0xff]
        %v1317 = vld [vmem:[%s5 + $0xc8] sm:$0xff]
        %v1318 = vld [vmem:[%s5 + $0xd0] sm:$0xff]
        %v1319 = vld [vmem:[%s5 + $0xd8] sm:$0xff]
        %v1320 = vld [vmem:[%s5 + $0xe0] sm:$0xff]
        %v1321 = vld [vmem:[%s5 + $0xe8] sm:$0xff]
        %v1322 = vld [vmem:[%s5 + $0xf0] sm:$0xff]
        %v1323 = vld [vmem:[%s5 + $0xf8] sm:$0xff]
        %1324 = vmatprep.subr.mxu0 0.0
        %1325 = vmatpush1.msra.mxu0 %v1292
        %1326 = vmatprep.subr.mxu0 0.0
        %1327 = vmatpush1.msra.mxu0 %v1293
        %1328 = vmatprep.subr.mxu0 0.0
        %1329 = vmatpush1.msra.mxu0 %v1294
        %1330 = vmatprep.subr.mxu0 0.0
        %1331 = vmatpush1.msra.mxu0 %v1295
        %1332 = vmatprep.subr.mxu0 0.0
        %1333 = vmatpush1.msra.mxu0 0.0
        %1334 = vmatprep.subr.mxu0 0.0
        %1335 = vmatpush1.msra.mxu0 0.0
        %1336 = vmatprep.subr.mxu0 0.0
        %1337 = vmatpush1.msra.mxu0 0.0
        %1338 = vmatprep.subr.mxu0 0.0
        %1339 = vmatpush1.msra.mxu0 0.0
        %1340 = vmatprep.subr.mxu0 0.0
        %1341 = vmatpush1.msra.mxu0 0.0
        %1342 = vmatprep.subr.mxu0 0.0
        %1343 = vmatpush1.msra.mxu0 0.0
        %1344 = vmatprep.subr.mxu0 0.0
        %1345 = vmatpush1.msra.mxu0 0.0
        %1346 = vmatprep.subr.mxu0 0.0
        %1347 = vmatpush1.msra.mxu0 0.0
        %1348 = vmatprep.subr.mxu0 0.0
        %1349 = vmatpush1.msra.mxu0 0.0
        %1350 = vmatprep.subr.mxu0 0.0
        %1351 = vmatpush1.msra.mxu0 0.0
        %1352 = vmatprep.subr.mxu0 0.0
        %1353 = vmatpush1.msra.mxu0 0.0
        %1354 = vmatprep.subr.mxu0 0.0
        %1355 = vmatpush1.msra.mxu0 0.0
        %1356 = vmatprep.subr.mxu0 0.0
        %1357 = vmatpush1.msra.mxu0 0.0
        %1358 = vmatprep.subr.mxu0 0.0
        %1359 = vmatpush1.msra.mxu0 0.0
        %1360 = vmatprep.subr.mxu0 0.0
        %1361 = vmatpush1.msra.mxu0 0.0
        %1362 = vmatprep.subr.mxu0 0.0
        %1363 = vmatpush1.msra.mxu0 0.0
        %1364 = vmatprep.subr.mxu0 0.0
        %1365 = vmatpush1.msra.mxu0 0.0
        %1366 = vmatprep.subr.mxu0 0.0
        %1367 = vmatpush1.msra.mxu0 0.0
        %1368 = vmatprep.subr.mxu0 0.0
        %1369 = vmatpush1.msra.mxu0 0.0
        %1370 = vmatprep.subr.mxu0 0.0
        %1371 = vmatpush1.msra.mxu0 0.0
        %1372 = vmatprep.subr.mxu0 0.0
        %1373 = vmatpush1.msra.mxu0 0.0
        %1374 = vmatprep.subr.mxu0 0.0
        %1375 = vmatpush1.msra.mxu0 0.0
        %1376 = vmatprep.subr.mxu0 0.0
        %1377 = vmatpush1.msra.mxu0 0.0
        %1378 = vmatprep.subr.mxu0 0.0
        %1379 = vmatpush1.msra.mxu0 0.0
        %1380 = vmatprep.subr.mxu0 0.0
        %1381 = vmatpush1.msra.mxu0 0.0
        %1382 = vmatprep.subr.mxu0 0.0
        %1383 = vmatpush1.msra.mxu0 0.0
        %1384 = vmatprep.subr.mxu0 0.0
        %1385 = vmatpush1.msra.mxu0 0.0
        %1386 = vmatprep.subr.mxu0 0.0
        %1387 = vmatpush1.msra.mxu0 0.0
        %1388 = vmatprep.mubr.f32.mxu0 0.0
        %1389 = vmatmul.mubr.f32.gmra.mrb[0].mxu0 %v450
        %v1390 = vpop.f32.mrb[0].mxu0
        %v1391 = vadd.f32 0.0, %v1390
        %v1392 = vpop.f32.mrb[0].mxu0
        %1393 = vdwg.mxu0
        %1394 = vmatprep.subr.mxu0 0.0
        %1395 = vmatpush1.msra.mxu0 %v1296
        %1396 = vmatprep.subr.mxu0 0.0
        %1397 = vmatpush1.msra.mxu0 %v1297
        %1398 = vmatprep.subr.mxu0 0.0
        %1399 = vmatpush1.msra.mxu0 %v1298
        %1400 = vmatprep.subr.mxu0 0.0
        %1401 = vmatpush1.msra.mxu0 %v1299
        %1402 = vmatprep.subr.mxu0 0.0
        %1403 = vmatpush1.msra.mxu0 0.0
        %1404 = vmatprep.subr.mxu0 0.0
        %1405 = vmatpush1.msra.mxu0 0.0
        %1406 = vmatprep.subr.mxu0 0.0
        %1407 = vmatpush1.msra.mxu0 0.0
        %1408 = vmatprep.subr.mxu0 0.0
        %1409 = vmatpush1.msra.mxu0 0.0
        %1410 = vmatprep.subr.mxu0 0.0
        %1411 = vmatpush1.msra.mxu0 0.0
        %1412 = vmatprep.subr.mxu0 0.0
        %1413 = vmatpush1.msra.mxu0 0.0
        %1414 = vmatprep.subr.mxu0 0.0
        %1415 = vmatpush1.msra.mxu0 0.0
        %1416 = vmatprep.subr.mxu0 0.0
        %1417 = vmatpush1.msra.mxu0 0.0
        %1418 = vmatprep.subr.mxu0 0.0
        %1419 = vmatpush1.msra.mxu0 0.0
        %1420 = vmatprep.subr.mxu0 0.0
        %1421 = vmatpush1.msra.mxu0 0.0
        %1422 = vmatprep.subr.mxu0 0.0
        %1423 = vmatpush1.msra.mxu0 0.0
        %1424 = vmatprep.subr.mxu0 0.0
        %1425 = vmatpush1.msra.mxu0 0.0
        %1426 = vmatprep.subr.mxu0 0.0
        %1427 = vmatpush1.msra.mxu0 0.0
        %1428 = vmatprep.subr.mxu0 0.0
        %1429 = vmatpush1.msra.mxu0 0.0
        %1430 = vmatprep.subr.mxu0 0.0
        %1431 = vmatpush1.msra.mxu0 0.0
        %1432 = vmatprep.subr.mxu0 0.0
        %1433 = vmatpush1.msra.mxu0 0.0
        %1434 = vmatprep.subr.mxu0 0.0
        %1435 = vmatpush1.msra.mxu0 0.0
        %1436 = vmatprep.subr.mxu0 0.0
        %1437 = vmatpush1.msra.mxu0 0.0
        %1438 = vmatprep.subr.mxu0 0.0
        %1439 = vmatpush1.msra.mxu0 0.0
        %1440 = vmatprep.subr.mxu0 0.0
        %1441 = vmatpush1.msra.mxu0 0.0
        %1442 = vmatprep.subr.mxu0 0.0
        %1443 = vmatpush1.msra.mxu0 0.0
        %1444 = vmatprep.subr.mxu0 0.0
        %1445 = vmatpush1.msra.mxu0 0.0
        %1446 = vmatprep.subr.mxu0 0.0
        %1447 = vmatpush1.msra.mxu0 0.0
        %1448 = vmatprep.subr.mxu0 0.0
        %1449 = vmatpush1.msra.mxu0 0.0
        %1450 = vmatprep.subr.mxu0 0.0
        %1451 = vmatpush1.msra.mxu0 0.0
        %1452 = vmatprep.subr.mxu0 0.0
        %1453 = vmatpush1.msra.mxu0 0.0
        %1454 = vmatprep.subr.mxu0 0.0
        %1455 = vmatpush1.msra.mxu0 0.0
        %1456 = vmatprep.subr.mxu0 0.0
        %1457 = vmatpush1.msra.mxu0 0.0
        %1458 = vmatprep.mubr.f32.mxu0 0.0
        %1459 = vmatmul.mubr.f32.gmra.mrb[0].mxu0 %v450
        %v1460 = vpop.f32.mrb[0].mxu0
        %v1461 = vadd.f32 0.0, %v1460
        %v1462 = vpop.f32.mrb[0].mxu0
        %1463 = vdwg.mxu0
        %1464 = vmatprep.subr.mxu0 0.0
        %1465 = vmatpush1.msra.mxu0 %v1300
        %1466 = vmatprep.subr.mxu0 0.0
        %1467 = vmatpush1.msra.mxu0 %v1301
        %1468 = vmatprep.subr.mxu0 0.0
        %1469 = vmatpush1.msra.mxu0 %v1302
        %1470 = vmatprep.subr.mxu0 0.0
        %1471 = vmatpush1.msra.mxu0 %v1303
        %1472 = vmatprep.subr.mxu0 0.0
        %1473 = vmatpush1.msra.mxu0 0.0
        %1474 = vmatprep.subr.mxu0 0.0
        %1475 = vmatpush1.msra.mxu0 0.0
        %1476 = vmatprep.subr.mxu0 0.0
        %1477 = vmatpush1.msra.mxu0 0.0
        %1478 = vmatprep.subr.mxu0 0.0
        %1479 = vmatpush1.msra.mxu0 0.0
        %1480 = vmatprep.subr.mxu0 0.0
        %1481 = vmatpush1.msra.mxu0 0.0
        %1482 = vmatprep.subr.mxu0 0.0
        %1483 = vmatpush1.msra.mxu0 0.0
        %1484 = vmatprep.subr.mxu0 0.0
        %1485 = vmatpush1.msra.mxu0 0.0
        %1486 = vmatprep.subr.mxu0 0.0
        %1487 = vmatpush1.msra.mxu0 0.0
        %1488 = vmatprep.subr.mxu0 0.0
        %1489 = vmatpush1.msra.mxu0 0.0
        %1490 = vmatprep.subr.mxu0 0.0
        %1491 = vmatpush1.msra.mxu0 0.0
        %1492 = vmatprep.subr.mxu0 0.0
        %1493 = vmatpush1.msra.mxu0 0.0
        %1494 = vmatprep.subr.mxu0 0.0
        %1495 = vmatpush1.msra.mxu0 0.0
        %1496 = vmatprep.subr.mxu0 0.0
        %1497 = vmatpush1.msra.mxu0 0.0
        %1498 = vmatprep.subr.mxu0 0.0
        %1499 = vmatpush1.msra.mxu0 0.0
        %1500 = vmatprep.subr.mxu0 0.0
        %1501 = vmatpush1.msra.mxu0 0.0
        %1502 = vmatprep.subr.mxu0 0.0
        %1503 = vmatpush1.msra.mxu0 0.0
        %1504 = vmatprep.subr.mxu0 0.0
        %1505 = vmatpush1.msra.mxu0 0.0
        %1506 = vmatprep.subr.mxu0 0.0
        %1507 = vmatpush1.msra.mxu0 0.0
        %1508 = vmatprep.subr.mxu0 0.0
        %1509 = vmatpush1.msra.mxu0 0.0
        %1510 = vmatprep.subr.mxu0 0.0
        %1511 = vmatpush1.msra.mxu0 0.0
        %1512 = vmatprep.subr.mxu0 0.0
        %1513 = vmatpush1.msra.mxu0 0.0
        %1514 = vmatprep.subr.mxu0 0.0
        %1515 = vmatpush1.msra.mxu0 0.0
        %1516 = vmatprep.subr.mxu0 0.0
        %1517 = vmatpush1.msra.mxu0 0.0
        %1518 = vmatprep.subr.mxu0 0.0
        %1519 = vmatpush1.msra.mxu0 0.0
        %1520 = vmatprep.subr.mxu0 0.0
        %1521 = vmatpush1.msra.mxu0 0.0
        %1522 = vmatprep.subr.mxu0 0.0
        %1523 = vmatpush1.msra.mxu0 0.0
        %1524 = vmatprep.subr.mxu0 0.0
        %1525 = vmatpush1.msra.mxu0 0.0
        %1526 = vmatprep.subr.mxu0 0.0
        %1527 = vmatpush1.msra.mxu0 0.0
        %1528 = vmatprep.mubr.f32.mxu0 0.0
        %1529 = vmatmul.mubr.f32.gmra.mrb[0].mxu0 %v450
        %v1530 = vpop.f32.mrb[0].mxu0
        %v1531 = vadd.f32 0.0, %v1530
        %v1532 = vpop.f32.mrb[0].mxu0
        %1533 = vdwg.mxu0
        %1534 = vmatprep.subr.mxu0 0.0
        %1535 = vmatpush1.msra.mxu0 %v1304
        %1536 = vmatprep.subr.mxu0 0.0
        %1537 = vmatpush1.msra.mxu0 %v1305
        %1538 = vmatprep.subr.mxu0 0.0
        %1539 = vmatpush1.msra.mxu0 %v1306
        %1540 = vmatprep.subr.mxu0 0.0
        %1541 = vmatpush1.msra.mxu0 %v1307
        %1542 = vmatprep.subr.mxu0 0.0
        %1543 = vmatpush1.msra.mxu0 0.0
        %1544 = vmatprep.subr.mxu0 0.0
        %1545 = vmatpush1.msra.mxu0 0.0
        %1546 = vmatprep.subr.mxu0 0.0
        %1547 = vmatpush1.msra.mxu0 0.0
        %1548 = vmatprep.subr.mxu0 0.0
        %1549 = vmatpush1.msra.mxu0 0.0
        %1550 = vmatprep.subr.mxu0 0.0
        %1551 = vmatpush1.msra.mxu0 0.0
        %1552 = vmatprep.subr.mxu0 0.0
        %1553 = vmatpush1.msra.mxu0 0.0
        %1554 = vmatprep.subr.mxu0 0.0
        %1555 = vmatpush1.msra.mxu0 0.0
        %1556 = vmatprep.subr.mxu0 0.0
        %1557 = vmatpush1.msra.mxu0 0.0
        %1558 = vmatprep.subr.mxu0 0.0
        %1559 = vmatpush1.msra.mxu0 0.0
        %1560 = vmatprep.subr.mxu0 0.0
        %1561 = vmatpush1.msra.mxu0 0.0
        %1562 = vmatprep.subr.mxu0 0.0
        %1563 = vmatpush1.msra.mxu0 0.0
        %1564 = vmatprep.subr.mxu0 0.0
        %1565 = vmatpush1.msra.mxu0 0.0
        %1566 = vmatprep.subr.mxu0 0.0
        %1567 = vmatpush1.msra.mxu0 0.0
        %1568 = vmatprep.subr.mxu0 0.0
        %1569 = vmatpush1.msra.mxu0 0.0
        %1570 = vmatprep.subr.mxu0 0.0
        %1571 = vmatpush1.msra.mxu0 0.0
        %1572 = vmatprep.subr.mxu0 0.0
        %1573 = vmatpush1.msra.mxu0 0.0
        %1574 = vmatprep.subr.mxu0 0.0
        %1575 = vmatpush1.msra.mxu0 0.0
        %1576 = vmatprep.subr.mxu0 0.0
        %1577 = vmatpush1.msra.mxu0 0.0
        %1578 = vmatprep.subr.mxu0 0.0
        %1579 = vmatpush1.msra.mxu0 0.0
        %1580 = vmatprep.subr.mxu0 0.0
        %1581 = vmatpush1.msra.mxu0 0.0
        %1582 = vmatprep.subr.mxu0 0.0
        %1583 = vmatpush1.msra.mxu0 0.0
        %1584 = vmatprep.subr.mxu0 0.0
        %1585 = vmatpush1.msra.mxu0 0.0
        %1586 = vmatprep.subr.mxu0 0.0
        %1587 = vmatpush1.msra.mxu0 0.0
        %1588 = vmatprep.subr.mxu0 0.0
        %1589 = vmatpush1.msra.mxu0 0.0
        %1590 = vmatprep.subr.mxu0 0.0
        %1591 = vmatpush1.msra.mxu0 0.0
        %1592 = vmatprep.subr.mxu0 0.0
        %1593 = vmatpush1.msra.mxu0 0.0
        %1594 = vmatprep.subr.mxu0 0.0
        %1595 = vmatpush1.msra.mxu0 0.0
        %1596 = vmatprep.subr.mxu0 0.0
        %1597 = vmatpush1.msra.mxu0 0.0
        %1598 = vmatprep.mubr.f32.mxu0 0.0
        %1599 = vmatmul.mubr.f32.gmra.mrb[0].mxu0 %v450
        %v1600 = vpop.f32.mrb[0].mxu0
        %v1601 = vadd.f32 0.0, %v1600
        %v1602 = vpop.f32.mrb[0].mxu0
        %1603 = vdwg.mxu0
        %1604 = vmatprep.subr.mxu0 0.0
        %1605 = vmatpush1.msra.mxu0 %v1308
        %1606 = vmatprep.subr.mxu0 0.0
        %1607 = vmatpush1.msra.mxu0 %v1309
        %1608 = vmatprep.subr.mxu0 0.0
        %1609 = vmatpush1.msra.mxu0 %v1310
        %1610 = vmatprep.subr.mxu0 0.0
        %1611 = vmatpush1.msra.mxu0 %v1311
        %1612 = vmatprep.subr.mxu0 0.0
        %1613 = vmatpush1.msra.mxu0 0.0
        %1614 = vmatprep.subr.mxu0 0.0
        %1615 = vmatpush1.msra.mxu0 0.0
        %1616 = vmatprep.subr.mxu0 0.0
        %1617 = vmatpush1.msra.mxu0 0.0
        %1618 = vmatprep.subr.mxu0 0.0
        %1619 = vmatpush1.msra.mxu0 0.0
        %1620 = vmatprep.subr.mxu0 0.0
        %1621 = vmatpush1.msra.mxu0 0.0
        %1622 = vmatprep.subr.mxu0 0.0
        %1623 = vmatpush1.msra.mxu0 0.0
        %1624 = vmatprep.subr.mxu0 0.0
        %1625 = vmatpush1.msra.mxu0 0.0
        %1626 = vmatprep.subr.mxu0 0.0
        %1627 = vmatpush1.msra.mxu0 0.0
        %1628 = vmatprep.subr.mxu0 0.0
        %1629 = vmatpush1.msra.mxu0 0.0
        %1630 = vmatprep.subr.mxu0 0.0
        %1631 = vmatpush1.msra.mxu0 0.0
        %1632 = vmatprep.subr.mxu0 0.0
        %1633 = vmatpush1.msra.mxu0 0.0
        %1634 = vmatprep.subr.mxu0 0.0
        %1635 = vmatpush1.msra.mxu0 0.0
        %1636 = vmatprep.subr.mxu0 0.0
        %1637 = vmatpush1.msra.mxu0 0.0
        %1638 = vmatprep.subr.mxu0 0.0
        %1639 = vmatpush1.msra.mxu0 0.0
        %1640 = vmatprep.subr.mxu0 0.0
        %1641 = vmatpush1.msra.mxu0 0.0
        %1642 = vmatprep.subr.mxu0 0.0
        %1643 = vmatpush1.msra.mxu0 0.0
        %1644 = vmatprep.subr.mxu0 0.0
        %1645 = vmatpush1.msra.mxu0 0.0
        %1646 = vmatprep.subr.mxu0 0.0
        %1647 = vmatpush1.msra.mxu0 0.0
        %1648 = vmatprep.subr.mxu0 0.0
        %1649 = vmatpush1.msra.mxu0 0.0
        %1650 = vmatprep.subr.mxu0 0.0
        %1651 = vmatpush1.msra.mxu0 0.0
        %1652 = vmatprep.subr.mxu0 0.0
        %1653 = vmatpush1.msra.mxu0 0.0
        %1654 = vmatprep.subr.mxu0 0.0
        %1655 = vmatpush1.msra.mxu0 0.0
        %1656 = vmatprep.subr.mxu0 0.0
        %1657 = vmatpush1.msra.mxu0 0.0
        %1658 = vmatprep.subr.mxu0 0.0
        %1659 = vmatpush1.msra.mxu0 0.0
        %1660 = vmatprep.subr.mxu0 0.0
        %1661 = vmatpush1.msra.mxu0 0.0
        %1662 = vmatprep.subr.mxu0 0.0
        %1663 = vmatpush1.msra.mxu0 0.0
        %1664 = vmatprep.subr.mxu0 0.0
        %1665 = vmatpush1.msra.mxu0 0.0
        %1666 = vmatprep.subr.mxu0 0.0
        %1667 = vmatpush1.msra.mxu0 0.0
        %1668 = vmatprep.mubr.f32.mxu0 0.0
        %1669 = vmatmul.mubr.f32.gmra.mrb[0].mxu0 %v450
        %v1670 = vpop.f32.mrb[0].mxu0
        %v1671 = vadd.f32 0.0, %v1670
        %v1672 = vpop.f32.mrb[0].mxu0
        %1673 = vdwg.mxu0
        %1674 = vmatprep.subr.mxu0 0.0
        %1675 = vmatpush1.msra.mxu0 %v1312
        %1676 = vmatprep.subr.mxu0 0.0
        %1677 = vmatpush1.msra.mxu0 %v1313
        %1678 = vmatprep.subr.mxu0 0.0
        %1679 = vmatpush1.msra.mxu0 %v1314
        %1680 = vmatprep.subr.mxu0 0.0
        %1681 = vmatpush1.msra.mxu0 %v1315
        %1682 = vmatprep.subr.mxu0 0.0
        %1683 = vmatpush1.msra.mxu0 0.0
        %1684 = vmatprep.subr.mxu0 0.0
        %1685 = vmatpush1.msra.mxu0 0.0
        %1686 = vmatprep.subr.mxu0 0.0
        %1687 = vmatpush1.msra.mxu0 0.0
        %1688 = vmatprep.subr.mxu0 0.0
        %1689 = vmatpush1.msra.mxu0 0.0
        %1690 = vmatprep.subr.mxu0 0.0
        %1691 = vmatpush1.msra.mxu0 0.0
        %1692 = vmatprep.subr.mxu0 0.0
        %1693 = vmatpush1.msra.mxu0 0.0
        %1694 = vmatprep.subr.mxu0 0.0
        %1695 = vmatpush1.msra.mxu0 0.0
        %1696 = vmatprep.subr.mxu0 0.0
        %1697 = vmatpush1.msra.mxu0 0.0
        %1698 = vmatprep.subr.mxu0 0.0
        %1699 = vmatpush1.msra.mxu0 0.0
        %1700 = vmatprep.subr.mxu0 0.0
        %1701 = vmatpush1.msra.mxu0 0.0
        %1702 = vmatprep.subr.mxu0 0.0
        %1703 = vmatpush1.msra.mxu0 0.0
        %1704 = vmatprep.subr.mxu0 0.0
        %1705 = vmatpush1.msra.mxu0 0.0
        %1706 = vmatprep.subr.mxu0 0.0
        %1707 = vmatpush1.msra.mxu0 0.0
        %1708 = vmatprep.subr.mxu0 0.0
        %1709 = vmatpush1.msra.mxu0 0.0
        %1710 = vmatprep.subr.mxu0 0.0
        %1711 = vmatpush1.msra.mxu0 0.0
        %1712 = vmatprep.subr.mxu0 0.0
        %1713 = vmatpush1.msra.mxu0 0.0
        %1714 = vmatprep.subr.mxu0 0.0
        %1715 = vmatpush1.msra.mxu0 0.0
        %1716 = vmatprep.subr.mxu0 0.0
        %1717 = vmatpush1.msra.mxu0 0.0
        %1718 = vmatprep.subr.mxu0 0.0
        %1719 = vmatpush1.msra.mxu0 0.0
        %1720 = vmatprep.subr.mxu0 0.0
        %1721 = vmatpush1.msra.mxu0 0.0
        %1722 = vmatprep.subr.mxu0 0.0
        %1723 = vmatpush1.msra.mxu0 0.0
        %1724 = vmatprep.subr.mxu0 0.0
        %1725 = vmatpush1.msra.mxu0 0.0
        %1726 = vmatprep.subr.mxu0 0.0
        %1727 = vmatpush1.msra.mxu0 0.0
        %1728 = vmatprep.subr.mxu0 0.0
        %1729 = vmatpush1.msra.mxu0 0.0
        %1730 = vmatprep.subr.mxu0 0.0
        %1731 = vmatpush1.msra.mxu0 0.0
        %1732 = vmatprep.subr.mxu0 0.0
        %1733 = vmatpush1.msra.mxu0 0.0
        %1734 = vmatprep.subr.mxu0 0.0
        %1735 = vmatpush1.msra.mxu0 0.0
        %1736 = vmatprep.subr.mxu0 0.0
        %1737 = vmatpush1.msra.mxu0 0.0
        %1738 = vmatprep.mubr.f32.mxu0 0.0
        %1739 = vmatmul.mubr.f32.gmra.mrb[0].mxu0 %v450
        %v1740 = vpop.f32.mrb[0].mxu0
        %v1741 = vadd.f32 0.0, %v1740
        %v1742 = vpop.f32.mrb[0].mxu0
        %1743 = vdwg.mxu0
        %1744 = vmatprep.subr.mxu0 0.0
        %1745 = vmatpush1.msra.mxu0 %v1316
        %1746 = vmatprep.subr.mxu0 0.0
        %1747 = vmatpush1.msra.mxu0 %v1317
        %1748 = vmatprep.subr.mxu0 0.0
        %1749 = vmatpush1.msra.mxu0 %v1318
        %1750 = vmatprep.subr.mxu0 0.0
        %1751 = vmatpush1.msra.mxu0 %v1319
        %1752 = vmatprep.subr.mxu0 0.0
        %1753 = vmatpush1.msra.mxu0 0.0
        %1754 = vmatprep.subr.mxu0 0.0
        %1755 = vmatpush1.msra.mxu0 0.0
        %1756 = vmatprep.subr.mxu0 0.0
        %1757 = vmatpush1.msra.mxu0 0.0
        %1758 = vmatprep.subr.mxu0 0.0
        %1759 = vmatpush1.msra.mxu0 0.0
        %1760 = vmatprep.subr.mxu0 0.0
        %1761 = vmatpush1.msra.mxu0 0.0
        %1762 = vmatprep.subr.mxu0 0.0
        %1763 = vmatpush1.msra.mxu0 0.0
        %1764 = vmatprep.subr.mxu0 0.0
        %1765 = vmatpush1.msra.mxu0 0.0
        %1766 = vmatprep.subr.mxu0 0.0
        %1767 = vmatpush1.msra.mxu0 0.0
        %1768 = vmatprep.subr.mxu0 0.0
        %1769 = vmatpush1.msra.mxu0 0.0
        %1770 = vmatprep.subr.mxu0 0.0
        %1771 = vmatpush1.msra.mxu0 0.0
        %1772 = vmatprep.subr.mxu0 0.0
        %1773 = vmatpush1.msra.mxu0 0.0
        %1774 = vmatprep.subr.mxu0 0.0
        %1775 = vmatpush1.msra.mxu0 0.0
        %1776 = vmatprep.subr.mxu0 0.0
        %1777 = vmatpush1.msra.mxu0 0.0
        %1778 = vmatprep.subr.mxu0 0.0
        %1779 = vmatpush1.msra.mxu0 0.0
        %1780 = vmatprep.subr.mxu0 0.0
        %1781 = vmatpush1.msra.mxu0 0.0
        %1782 = vmatprep.subr.mxu0 0.0
        %1783 = vmatpush1.msra.mxu0 0.0
        %1784 = vmatprep.subr.mxu0 0.0
        %1785 = vmatpush1.msra.mxu0 0.0
        %1786 = vmatprep.subr.mxu0 0.0
        %1787 = vmatpush1.msra.mxu0 0.0
        %1788 = vmatprep.subr.mxu0 0.0
        %1789 = vmatpush1.msra.mxu0 0.0
        %1790 = vmatprep.subr.mxu0 0.0
        %1791 = vmatpush1.msra.mxu0 0.0
        %1792 = vmatprep.subr.mxu0 0.0
        %1793 = vmatpush1.msra.mxu0 0.0
        %1794 = vmatprep.subr.mxu0 0.0
        %1795 = vmatpush1.msra.mxu0 0.0
        %1796 = vmatprep.subr.mxu0 0.0
        %1797 = vmatpush1.msra.mxu0 0.0
        %1798 = vmatprep.subr.mxu0 0.0
        %1799 = vmatpush1.msra.mxu0 0.0
        %1800 = vmatprep.subr.mxu0 0.0
        %1801 = vmatpush1.msra.mxu0 0.0
        %1802 = vmatprep.subr.mxu0 0.0
        %1803 = vmatpush1.msra.mxu0 0.0
        %1804 = vmatprep.subr.mxu0 0.0
        %1805 = vmatpush1.msra.mxu0 0.0
        %1806 = vmatprep.subr.mxu0 0.0
        %1807 = vmatpush1.msra.mxu0 0.0
        %1808 = vmatprep.mubr.f32.mxu0 0.0
        %1809 = vmatmul.mubr.f32.gmra.mrb[0].mxu0 %v450
        %v1810 = vpop.f32.mrb[0].mxu0
        %v1811 = vadd.f32 0.0, %v1810
        %v1812 = vpop.f32.mrb[0].mxu0
        %1813 = vdwg.mxu0
        %1814 = vmatprep.subr.mxu0 0.0
        %1815 = vmatpush1.msra.mxu0 %v1320
        %1816 = vmatprep.subr.mxu0 0.0
        %1817 = vmatpush1.msra.mxu0 %v1321
        %1818 = vmatprep.subr.mxu0 0.0
        %1819 = vmatpush1.msra.mxu0 %v1322
        %1820 = vmatprep.subr.mxu0 0.0
        %1821 = vmatpush1.msra.mxu0 %v1323
        %1822 = vmatprep.subr.mxu0 0.0
        %1823 = vmatpush1.msra.mxu0 0.0
        %1824 = vmatprep.subr.mxu0 0.0
        %1825 = vmatpush1.msra.mxu0 0.0
        %1826 = vmatprep.subr.mxu0 0.0
        %1827 = vmatpush1.msra.mxu0 0.0
        %1828 = vmatprep.subr.mxu0 0.0
        %1829 = vmatpush1.msra.mxu0 0.0
        %1830 = vmatprep.subr.mxu0 0.0
        %1831 = vmatpush1.msra.mxu0 0.0
        %1832 = vmatprep.subr.mxu0 0.0
        %1833 = vmatpush1.msra.mxu0 0.0
        %1834 = vmatprep.subr.mxu0 0.0
        %1835 = vmatpush1.msra.mxu0 0.0
        %1836 = vmatprep.subr.mxu0 0.0
        %1837 = vmatpush1.msra.mxu0 0.0
        %1838 = vmatprep.subr.mxu0 0.0
        %1839 = vmatpush1.msra.mxu0 0.0
        %1840 = vmatprep.subr.mxu0 0.0
        %1841 = vmatpush1.msra.mxu0 0.0
        %1842 = vmatprep.subr.mxu0 0.0
        %1843 = vmatpush1.msra.mxu0 0.0
        %1844 = vmatprep.subr.mxu0 0.0
        %1845 = vmatpush1.msra.mxu0 0.0
        %1846 = vmatprep.subr.mxu0 0.0
        %1847 = vmatpush1.msra.mxu0 0.0
        %1848 = vmatprep.subr.mxu0 0.0
        %1849 = vmatpush1.msra.mxu0 0.0
        %1850 = vmatprep.subr.mxu0 0.0
        %1851 = vmatpush1.msra.mxu0 0.0
        %1852 = vmatprep.subr.mxu0 0.0
        %1853 = vmatpush1.msra.mxu0 0.0
        %1854 = vmatprep.subr.mxu0 0.0
        %1855 = vmatpush1.msra.mxu0 0.0
        %1856 = vmatprep.subr.mxu0 0.0
        %1857 = vmatpush1.msra.mxu0 0.0
        %1858 = vmatprep.subr.mxu0 0.0
        %1859 = vmatpush1.msra.mxu0 0.0
        %1860 = vmatprep.subr.mxu0 0.0
        %1861 = vmatpush1.msra.mxu0 0.0
        %1862 = vmatprep.subr.mxu0 0.0
        %1863 = vmatpush1.msra.mxu0 0.0
        %1864 = vmatprep.subr.mxu0 0.0
        %1865 = vmatpush1.msra.mxu0 0.0
        %1866 = vmatprep.subr.mxu0 0.0
        %1867 = vmatpush1.msra.mxu0 0.0
        %1868 = vmatprep.subr.mxu0 0.0
        %1869 = vmatpush1.msra.mxu0 0.0
        %1870 = vmatprep.subr.mxu0 0.0
        %1871 = vmatpush1.msra.mxu0 0.0
        %1872 = vmatprep.subr.mxu0 0.0
        %1873 = vmatpush1.msra.mxu0 0.0
        %1874 = vmatprep.subr.mxu0 0.0
        %1875 = vmatpush1.msra.mxu0 0.0
        %1876 = vmatprep.subr.mxu0 0.0
        %1877 = vmatpush1.msra.mxu0 0.0
        %1878 = vmatprep.mubr.f32.mxu0 0.0
        %1879 = vmatmul.mubr.f32.gmra.mrb[0].mxu0 %v450
        %v1880 = vpop.f32.mrb[0].mxu0
        %v1881 = vadd.f32 0.0, %v1880
        %v1882 = vpop.f32.mrb[0].mxu0
        %1883 = vdwg.mxu0
        %v1884 = vld [vmem:[%s1] sm:$0xff]
        %v1885 = vmul.f32 %v519, %v1884
        %v1886 = vmul.f32 %v589, %v1884
        %v1887 = vmul.f32 %v659, %v1884
        %v1888 = vmul.f32 %v729, %v1884
        %v1889 = vmul.f32 %v799, %v1884
        %v1890 = vmul.f32 %v869, %v1884
        %v1891 = vmul.f32 %v939, %v1884
        %v1892 = vmul.f32 %v1009, %v1884
        %v1893 = vld [vmem:[%s2] sm:$0xff]
        %v1894 = vmul.f32 %v1391, %v1893
        %v1895 = vmul.f32 %v1461, %v1893
        %v1896 = vmul.f32 %v1531, %v1893
        %v1897 = vmul.f32 %v1601, %v1893
        %v1898 = vmul.f32 %v1671, %v1893
        %v1899 = vmul.f32 %v1741, %v1893
        %v1900 = vmul.f32 %v1811, %v1893
        %v1901 = vmul.f32 %v1881, %v1893
        %v1902 = vadd.f32 %v1885, %v1894
        %v1903 = vadd.f32 %v1886, %v1895
        %v1904 = vadd.f32 %v1887, %v1896
        %v1905 = vadd.f32 %v1888, %v1897
        %v1906 = vadd.f32 %v1889, %v1898
        %v1907 = vadd.f32 %v1890, %v1899
        %v1908 = vadd.f32 %v1891, %v1900
        %v1909 = vadd.f32 %v1892, %v1901
        %v1910 = vld [vmem:[%s3] sm:$0xff]
        %vm1911 = vcmask 64512
        %v1913 = vsel %vm1911, %v1902, 0
        %v1916 = vsel %vm1911, %v1906, 0
        %1918 = vmatprep.subr.mxu0 0.0
        %1919 = vmatpush1.xpose.msra.mxu0 %v1916
        %1920 = vmatprep.subr.mxu0 0.0
        %1921 = vmatpush1.xpose.msra.mxu0 0.0
        %1922 = vmatprep.subr.mxu0 0.0
        %1923 = vmatpush1.xpose.msra.mxu0 0.0
        %1924 = vmatprep.subr.mxu0 0.0
        %1925 = vmatpush1.xpose.msra.mxu0 0.0
        %1926 = vmatprep.subr.mxu0 0.0
        %1927 = vmatpush1.xpose.msra.mxu0 0.0
        %1928 = vmatprep.subr.mxu0 0.0
        %1929 = vmatpush1.xpose.msra.mxu0 0.0
        %1930 = vmatprep.subr.mxu0 0.0
        %1931 = vmatpush1.xpose.msra.mxu0 0.0
        %1932 = vmatprep.subr.mxu0 0.0
        %1933 = vmatpush1.xpose.msra.mxu0 0.0
        %1934 = vmatprep.subr.mxu0 0.0
        %1935 = vmatpush1.xpose.msra.mxu0 0.0
        %1936 = vmatprep.subr.mxu0 0.0
        %1937 = vmatpush1.xpose.msra.mxu0 0.0
        %1938 = vmatprep.subr.mxu0 0.0
        %1939 = vmatpush1.xpose.msra.mxu0 0.0
        %1940 = vmatprep.subr.mxu0 0.0
        %1941 = vmatpush1.xpose.msra.mxu0 0.0
        %1942 = vmatprep.subr.mxu0 0.0
        %1943 = vmatpush1.xpose.msra.mxu0 0.0
        %1944 = vmatprep.subr.mxu0 0.0
        %1945 = vmatpush1.xpose.msra.mxu0 0.0
        %1946 = vmatprep.subr.mxu0 0.0
        %1947 = vmatpush1.xpose.msra.mxu0 0.0
        %1948 = vmatprep.subr.mxu0 0.0
        %1949 = vmatpush1.xpose.msra.mxu0 0.0
        %1950 = vmatprep.subr.mxu0 0.0
        %1951 = vmatpush1.xpose.msra.mxu0 0.0
        %1952 = vmatprep.subr.mxu0 0.0
        %1953 = vmatpush1.xpose.msra.mxu0 0.0
        %1954 = vmatprep.subr.mxu0 0.0
        %1955 = vmatpush1.xpose.msra.mxu0 0.0
        %1956 = vmatprep.subr.mxu0 0.0
        %1957 = vmatpush1.xpose.msra.mxu0 0.0
        %1958 = vmatprep.subr.mxu0 0.0
        %1959 = vmatpush1.xpose.msra.mxu0 0.0
        %1960 = vmatprep.subr.mxu0 0.0
        %1961 = vmatpush1.xpose.msra.mxu0 0.0
        %1962 = vmatprep.subr.mxu0 0.0
        %1963 = vmatpush1.xpose.msra.mxu0 0.0
        %1964 = vmatprep.subr.mxu0 0.0
        %1965 = vmatpush1.xpose.msra.mxu0 0.0
        %1966 = vmatprep.subr.mxu0 0.0
        %1967 = vmatpush1.xpose.msra.mxu0 0.0
        %1968 = vmatprep.subr.mxu0 0.0
        %1969 = vmatpush1.xpose.msra.mxu0 0.0
        %1970 = vmatprep.subr.mxu0 0.0
        %1971 = vmatpush1.xpose.msra.mxu0 0.0
        %1972 = vmatprep.subr.mxu0 0.0
        %1973 = vmatpush1.xpose.msra.mxu0 0.0
        %1974 = vmatprep.subr.mxu0 0.0
        %1975 = vmatpush1.xpose.msra.mxu0 0.0
        %1976 = vmatprep.subr.mxu0 0.0
        %1977 = vmatpush1.xpose.msra.mxu0 0.0
        %1978 = vmatprep.subr.mxu0 0.0
        %1979 = vmatpush1.xpose.msra.mxu0 0.0
        %1980 = vmatprep.subr.mxu0 0.0
        %1981 = vmatpush1.xpose.msra.mxu0 0.0
        %1982 = vmatprep.mubr.f32.mxu0 0.0
        %1983 = vmatmul.mubr.f32.gmra.mrb[0].mxu0 %v1913
        %v1984 = vpop.f32.mrb[0].mxu0
        %v1985 = vadd.f32 %v1910, %v1984
        %v1986 = vpop.f32.mrb[0].mxu0
        %1987 = vdwg.mxu0
        %v1989 = vsel %vm1911, %v1903, 0
        %v1992 = vsel %vm1911, %v1907, 0
        %1994 = vmatprep.subr.mxu0 0.0
        %1995 = vmatpush1.xpose.msra.mxu0 %v1992
        %1996 = vmatprep.subr.mxu0 0.0
        %1997 = vmatpush1.xpose.msra.mxu0 0.0
        %1998 = vmatprep.subr.mxu0 0.0
        %1999 = vmatpush1.xpose.msra.mxu0 0.0
        %2000 = vmatprep.subr.mxu0 0.0
        %2001 = vmatpush1.xpose.msra.mxu0 0.0
        %2002 = vmatprep.subr.mxu0 0.0
        %2003 = vmatpush1.xpose.msra.mxu0 0.0
        %2004 = vmatprep.subr.mxu0 0.0
        %2005 = vmatpush1.xpose.msra.mxu0 0.0
        %2006 = vmatprep.subr.mxu0 0.0
        %2007 = vmatpush1.xpose.msra.mxu0 0.0
        %2008 = vmatprep.subr.mxu0 0.0
        %2009 = vmatpush1.xpose.msra.mxu0 0.0
        %2010 = vmatprep.subr.mxu0 0.0
        %2011 = vmatpush1.xpose.msra.mxu0 0.0
        %2012 = vmatprep.subr.mxu0 0.0
        %2013 = vmatpush1.xpose.msra.mxu0 0.0
        %2014 = vmatprep.subr.mxu0 0.0
        %2015 = vmatpush1.xpose.msra.mxu0 0.0
        %2016 = vmatprep.subr.mxu0 0.0
        %2017 = vmatpush1.xpose.msra.mxu0 0.0
        %2018 = vmatprep.subr.mxu0 0.0
        %2019 = vmatpush1.xpose.msra.mxu0 0.0
        %2020 = vmatprep.subr.mxu0 0.0
        %2021 = vmatpush1.xpose.msra.mxu0 0.0
        %2022 = vmatprep.subr.mxu0 0.0
        %2023 = vmatpush1.xpose.msra.mxu0 0.0
        %2024 = vmatprep.subr.mxu0 0.0
        %2025 = vmatpush1.xpose.msra.mxu0 0.0
        %2026 = vmatprep.subr.mxu0 0.0
        %2027 = vmatpush1.xpose.msra.mxu0 0.0
        %2028 = vmatprep.subr.mxu0 0.0
        %2029 = vmatpush1.xpose.msra.mxu0 0.0
        %2030 = vmatprep.subr.mxu0 0.0
        %2031 = vmatpush1.xpose.msra.mxu0 0.0
        %2032 = vmatprep.subr.mxu0 0.0
        %2033 = vmatpush1.xpose.msra.mxu0 0.0
        %2034 = vmatprep.subr.mxu0 0.0
        %2035 = vmatpush1.xpose.msra.mxu0 0.0
        %2036 = vmatprep.subr.mxu0 0.0
        %2037 = vmatpush1.xpose.msra.mxu0 0.0
        %2038 = vmatprep.subr.mxu0 0.0
        %2039 = vmatpush1.xpose.msra.mxu0 0.0
        %2040 = vmatprep.subr.mxu0 0.0
        %2041 = vmatpush1.xpose.msra.mxu0 0.0
        %2042 = vmatprep.subr.mxu0 0.0
        %2043 = vmatpush1.xpose.msra.mxu0 0.0
        %2044 = vmatprep.subr.mxu0 0.0
        %2045 = vmatpush1.xpose.msra.mxu0 0.0
        %2046 = vmatprep.subr.mxu0 0.0
        %2047 = vmatpush1.xpose.msra.mxu0 0.0
        %2048 = vmatprep.subr.mxu0 0.0
        %2049 = vmatpush1.xpose.msra.mxu0 0.0
        %2050 = vmatprep.subr.mxu0 0.0
        %2051 = vmatpush1.xpose.msra.mxu0 0.0
        %2052 = vmatprep.subr.mxu0 0.0
        %2053 = vmatpush1.xpose.msra.mxu0 0.0
        %2054 = vmatprep.subr.mxu0 0.0
        %2055 = vmatpush1.xpose.msra.mxu0 0.0
        %2056 = vmatprep.subr.mxu0 0.0
        %2057 = vmatpush1.xpose.msra.mxu0 0.0
        %2058 = vmatprep.mubr.f32.mxu0 0.0
        %2059 = vmatmul.mubr.f32.gmra.mrb[0].mxu0 %v1989
        %v2060 = vpop.f32.mrb[0].mxu0
        %v2061 = vadd.f32 %v1910, %v2060
        %v2062 = vpop.f32.mrb[0].mxu0
        %2063 = vdwg.mxu0
        %v2065 = vsel %vm1911, %v1904, 0
        %v2068 = vsel %vm1911, %v1908, 0
        %2070 = vmatprep.subr.mxu0 0.0
        %2071 = vmatpush1.xpose.msra.mxu0 %v2068
        %2072 = vmatprep.subr.mxu0 0.0
        %2073 = vmatpush1.xpose.msra.mxu0 0.0
        %2074 = vmatprep.subr.mxu0 0.0
        %2075 = vmatpush1.xpose.msra.mxu0 0.0
        %2076 = vmatprep.subr.mxu0 0.0
        %2077 = vmatpush1.xpose.msra.mxu0 0.0
        %2078 = vmatprep.subr.mxu0 0.0
        %2079 = vmatpush1.xpose.msra.mxu0 0.0
        %2080 = vmatprep.subr.mxu0 0.0
        %2081 = vmatpush1.xpose.msra.mxu0 0.0
        %2082 = vmatprep.subr.mxu0 0.0
        %2083 = vmatpush1.xpose.msra.mxu0 0.0
        %2084 = vmatprep.subr.mxu0 0.0
        %2085 = vmatpush1.xpose.msra.mxu0 0.0
        %2086 = vmatprep.subr.mxu0 0.0
        %2087 = vmatpush1.xpose.msra.mxu0 0.0
        %2088 = vmatprep.subr.mxu0 0.0
        %2089 = vmatpush1.xpose.msra.mxu0 0.0
        %2090 = vmatprep.subr.mxu0 0.0
        %2091 = vmatpush1.xpose.msra.mxu0 0.0
        %2092 = vmatprep.subr.mxu0 0.0
        %2093 = vmatpush1.xpose.msra.mxu0 0.0
        %2094 = vmatprep.subr.mxu0 0.0
        %2095 = vmatpush1.xpose.msra.mxu0 0.0
        %2096 = vmatprep.subr.mxu0 0.0
        %2097 = vmatpush1.xpose.msra.mxu0 0.0
        %2098 = vmatprep.subr.mxu0 0.0
        %2099 = vmatpush1.xpose.msra.mxu0 0.0
        %2100 = vmatprep.subr.mxu0 0.0
        %2101 = vmatpush1.xpose.msra.mxu0 0.0
        %2102 = vmatprep.subr.mxu0 0.0
        %2103 = vmatpush1.xpose.msra.mxu0 0.0
        %2104 = vmatprep.subr.mxu0 0.0
        %2105 = vmatpush1.xpose.msra.mxu0 0.0
        %2106 = vmatprep.subr.mxu0 0.0
        %2107 = vmatpush1.xpose.msra.mxu0 0.0
        %2108 = vmatprep.subr.mxu0 0.0
        %2109 = vmatpush1.xpose.msra.mxu0 0.0
        %2110 = vmatprep.subr.mxu0 0.0
        %2111 = vmatpush1.xpose.msra.mxu0 0.0
        %2112 = vmatprep.subr.mxu0 0.0
        %2113 = vmatpush1.xpose.msra.mxu0 0.0
        %2114 = vmatprep.subr.mxu0 0.0
        %2115 = vmatpush1.xpose.msra.mxu0 0.0
        %2116 = vmatprep.subr.mxu0 0.0
        %2117 = vmatpush1.xpose.msra.mxu0 0.0
        %2118 = vmatprep.subr.mxu0 0.0
        %2119 = vmatpush1.xpose.msra.mxu0 0.0
        %2120 = vmatprep.subr.mxu0 0.0
        %2121 = vmatpush1.xpose.msra.mxu0 0.0
        %2122 = vmatprep.subr.mxu0 0.0
        %2123 = vmatpush1.xpose.msra.mxu0 0.0
        %2124 = vmatprep.subr.mxu0 0.0
        %2125 = vmatpush1.xpose.msra.mxu0 0.0
        %2126 = vmatprep.subr.mxu0 0.0
        %2127 = vmatpush1.xpose.msra.mxu0 0.0
        %2128 = vmatprep.subr.mxu0 0.0
        %2129 = vmatpush1.xpose.msra.mxu0 0.0
        %2130 = vmatprep.subr.mxu0 0.0
        %2131 = vmatpush1.xpose.msra.mxu0 0.0
        %2132 = vmatprep.subr.mxu0 0.0
        %2133 = vmatpush1.xpose.msra.mxu0 0.0
        %2134 = vmatprep.mubr.f32.mxu0 0.0
        %2135 = vmatmul.mubr.f32.gmra.mrb[0].mxu0 %v2065
        %v2136 = vpop.f32.mrb[0].mxu0
        %v2137 = vadd.f32 %v1910, %v2136
        %v2138 = vpop.f32.mrb[0].mxu0
        %2139 = vdwg.mxu0
        %v2141 = vsel %vm1911, %v1905, 0
        %v2144 = vsel %vm1911, %v1909, 0
        %2146 = vmatprep.subr.mxu0 0.0
        %2147 = vmatpush1.xpose.msra.mxu0 %v2144
        %2148 = vmatprep.subr.mxu0 0.0
        %2149 = vmatpush1.xpose.msra.mxu0 0.0
        %2150 = vmatprep.subr.mxu0 0.0
        %2151 = vmatpush1.xpose.msra.mxu0 0.0
        %2152 = vmatprep.subr.mxu0 0.0
        %2153 = vmatpush1.xpose.msra.mxu0 0.0
        %2154 = vmatprep.subr.mxu0 0.0
        %2155 = vmatpush1.xpose.msra.mxu0 0.0
        %2156 = vmatprep.subr.mxu0 0.0
        %2157 = vmatpush1.xpose.msra.mxu0 0.0
        %2158 = vmatprep.subr.mxu0 0.0
        %2159 = vmatpush1.xpose.msra.mxu0 0.0
        %2160 = vmatprep.subr.mxu0 0.0
        %2161 = vmatpush1.xpose.msra.mxu0 0.0
        %2162 = vmatprep.subr.mxu0 0.0
        %2163 = vmatpush1.xpose.msra.mxu0 0.0
        %2164 = vmatprep.subr.mxu0 0.0
        %2165 = vmatpush1.xpose.msra.mxu0 0.0
        %2166 = vmatprep.subr.mxu0 0.0
        %2167 = vmatpush1.xpose.msra.mxu0 0.0
        %2168 = vmatprep.subr.mxu0 0.0
        %2169 = vmatpush1.xpose.msra.mxu0 0.0
        %2170 = vmatprep.subr.mxu0 0.0
        %2171 = vmatpush1.xpose.msra.mxu0 0.0
        %2172 = vmatprep.subr.mxu0 0.0
        %2173 = vmatpush1.xpose.msra.mxu0 0.0
        %2174 = vmatprep.subr.mxu0 0.0
        %2175 = vmatpush1.xpose.msra.mxu0 0.0
        %2176 = vmatprep.subr.mxu0 0.0
        %2177 = vmatpush1.xpose.msra.mxu0 0.0
        %2178 = vmatprep.subr.mxu0 0.0
        %2179 = vmatpush1.xpose.msra.mxu0 0.0
        %2180 = vmatprep.subr.mxu0 0.0
        %2181 = vmatpush1.xpose.msra.mxu0 0.0
        %2182 = vmatprep.subr.mxu0 0.0
        %2183 = vmatpush1.xpose.msra.mxu0 0.0
        %2184 = vmatprep.subr.mxu0 0.0
        %2185 = vmatpush1.xpose.msra.mxu0 0.0
        %2186 = vmatprep.subr.mxu0 0.0
        %2187 = vmatpush1.xpose.msra.mxu0 0.0
        %2188 = vmatprep.subr.mxu0 0.0
        %2189 = vmatpush1.xpose.msra.mxu0 0.0
        %2190 = vmatprep.subr.mxu0 0.0
        %2191 = vmatpush1.xpose.msra.mxu0 0.0
        %2192 = vmatprep.subr.mxu0 0.0
        %2193 = vmatpush1.xpose.msra.mxu0 0.0
        %2194 = vmatprep.subr.mxu0 0.0
        %2195 = vmatpush1.xpose.msra.mxu0 0.0
        %2196 = vmatprep.subr.mxu0 0.0
        %2197 = vmatpush1.xpose.msra.mxu0 0.0
        %2198 = vmatprep.subr.mxu0 0.0
        %2199 = vmatpush1.xpose.msra.mxu0 0.0
        %2200 = vmatprep.subr.mxu0 0.0
        %2201 = vmatpush1.xpose.msra.mxu0 0.0
        %2202 = vmatprep.subr.mxu0 0.0
        %2203 = vmatpush1.xpose.msra.mxu0 0.0
        %2204 = vmatprep.subr.mxu0 0.0
        %2205 = vmatpush1.xpose.msra.mxu0 0.0
        %2206 = vmatprep.subr.mxu0 0.0
        %2207 = vmatpush1.xpose.msra.mxu0 0.0
        %2208 = vmatprep.subr.mxu0 0.0
        %2209 = vmatpush1.xpose.msra.mxu0 0.0
        %2210 = vmatprep.mubr.f32.mxu0 0.0
        %2211 = vmatmul.mubr.f32.gmra.mrb[0].mxu0 %v2141
        %v2212 = vpop.f32.mrb[0].mxu0
        %v2213 = vadd.f32 %v1910, %v2212
        %v2214 = vpop.f32.mrb[0].mxu0
        %2215 = vdwg.mxu0
        %v2216 = vsel %vm1911, %v1985, -inf
        %2217 = vmax.xlane.f32.xlu0 %v2216
        %v2218 = vpop.xlane.xlu0 %2217
        %v2219 = vsel %vm1911, %v2061, -inf
        %2220 = vmax.xlane.f32.xlu0 %v2219
        %v2221 = vpop.xlane.xlu0 %2220
        %v2222 = vsel %vm1911, %v2137, -inf
        %2223 = vmax.xlane.f32.xlu0 %v2222
        %v2224 = vpop.xlane.xlu0 %2223
        %v2225 = vsel %vm1911, %v2213, -inf
        %2226 = vmax.xlane.f32.xlu0 %v2225
        %v2227 = vpop.xlane.xlu0 %2226
        %v2228 = vsub.f32 %v1985, %v2218
        %v2229 = vsub.f32 %v2061, %v2221
        %v2230 = vsub.f32 %v2137, %v2224
        %v2231 = vsub.f32 %v2213, %v2227
        %v2232 = vmul.f32 %v2228, 1.442695
        %v2233 = vpow.pop %v2232
        %v2234 = vmul.f32 %v2229, 1.442695
        %v2235 = vpow.pop %v2234
        %v2236 = vmul.f32 %v2230, 1.442695
        %v2237 = vpow.pop %v2236
        %v2238 = vmul.f32 %v2231, 1.442695
        %v2239 = vpow.pop %v2238
        %v2240 = vsel %vm1911, %v2233, 0.0
        %2241 = vadd.xlane.f32.xlu0 %v2240
        %v2242 = vpop.xlane.xlu0 %2241
        %v2243 = vsel %vm1911, %v2235, 0.0
        %2244 = vadd.xlane.f32.xlu0 %v2243
        %v2245 = vpop.xlane.xlu0 %2244
        %v2246 = vsel %vm1911, %v2237, 0.0
        %2247 = vadd.xlane.f32.xlu0 %v2246
        %v2248 = vpop.xlane.xlu0 %2247
        %v2249 = vsel %vm1911, %v2239, 0.0
        %2250 = vadd.xlane.f32.xlu0 %v2249
        %v2251 = vpop.xlane.xlu0 %2250
        %v2253 = vsel %vm1911, %v2233, 0
        %2255 = vmatprep.subr.mxu0 0.0
        %2256 = vmatpush1.msra.mxu0 %v1079
        %2257 = vmatprep.subr.mxu0 0.0
        %2258 = vmatpush1.msra.mxu0 0.0
        %2259 = vmatprep.subr.mxu0 0.0
        %2260 = vmatpush1.msra.mxu0 0.0
        %2261 = vmatprep.subr.mxu0 0.0
        %2262 = vmatpush1.msra.mxu0 0.0
        %2263 = vmatprep.subr.mxu0 0.0
        %2264 = vmatpush1.msra.mxu0 0.0
        %2265 = vmatprep.subr.mxu0 0.0
        %2266 = vmatpush1.msra.mxu0 0.0
        %2267 = vmatprep.subr.mxu0 0.0
        %2268 = vmatpush1.msra.mxu0 0.0
        %2269 = vmatprep.subr.mxu0 0.0
        %2270 = vmatpush1.msra.mxu0 0.0
        %2271 = vmatprep.subr.mxu0 0.0
        %2272 = vmatpush1.msra.mxu0 0.0
        %2273 = vmatprep.subr.mxu0 0.0
        %2274 = vmatpush1.msra.mxu0 0.0
        %2275 = vmatprep.subr.mxu0 0.0
        %2276 = vmatpush1.msra.mxu0 0.0
        %2277 = vmatprep.subr.mxu0 0.0
        %2278 = vmatpush1.msra.mxu0 0.0
        %2279 = vmatprep.subr.mxu0 0.0
        %2280 = vmatpush1.msra.mxu0 0.0
        %2281 = vmatprep.subr.mxu0 0.0
        %2282 = vmatpush1.msra.mxu0 0.0
        %2283 = vmatprep.subr.mxu0 0.0
        %2284 = vmatpush1.msra.mxu0 0.0
        %2285 = vmatprep.subr.mxu0 0.0
        %2286 = vmatpush1.msra.mxu0 0.0
        %2287 = vmatprep.subr.mxu0 0.0
        %2288 = vmatpush1.msra.mxu0 0.0
        %2289 = vmatprep.subr.mxu0 0.0
        %2290 = vmatpush1.msra.mxu0 0.0
        %2291 = vmatprep.subr.mxu0 0.0
        %2292 = vmatpush1.msra.mxu0 0.0
        %2293 = vmatprep.subr.mxu0 0.0
        %2294 = vmatpush1.msra.mxu0 0.0
        %2295 = vmatprep.subr.mxu0 0.0
        %2296 = vmatpush1.msra.mxu0 0.0
        %2297 = vmatprep.subr.mxu0 0.0
        %2298 = vmatpush1.msra.mxu0 0.0
        %2299 = vmatprep.subr.mxu0 0.0
        %2300 = vmatpush1.msra.mxu0 0.0
        %2301 = vmatprep.subr.mxu0 0.0
        %2302 = vmatpush1.msra.mxu0 0.0
        %2303 = vmatprep.subr.mxu0 0.0
        %2304 = vmatpush1.msra.mxu0 0.0
        %2305 = vmatprep.subr.mxu0 0.0
        %2306 = vmatpush1.msra.mxu0 0.0
        %2307 = vmatprep.subr.mxu0 0.0
        %2308 = vmatpush1.msra.mxu0 0.0
        %2309 = vmatprep.subr.mxu0 0.0
        %2310 = vmatpush1.msra.mxu0 0.0
        %2311 = vmatprep.subr.mxu0 0.0
        %2312 = vmatpush1.msra.mxu0 0.0
        %2313 = vmatprep.subr.mxu0 0.0
        %2314 = vmatpush1.msra.mxu0 0.0
        %2315 = vmatprep.subr.mxu0 0.0
        %2316 = vmatpush1.msra.mxu0 0.0
        %2317 = vmatprep.subr.mxu0 0.0
        %2318 = vmatpush1.msra.mxu0 0.0
        %2319 = vmatprep.mubr.f32.mxu0 0.0
        %2320 = vmatmul.mubr.f32.gmra.mrb[0].mxu0 %v2253
        %v2321 = vpop.f32.mrb[0].mxu0
        %v2322 = vadd.f32 0.0, %v2321
        %v2323 = vpop.f32.mrb[0].mxu0
        %2324 = vdwg.mxu0
        %v2326 = vsel %vm1911, %v2235, 0
        %2328 = vmatprep.subr.mxu0 0.0
        %2329 = vmatpush1.msra.mxu0 %v1149
        %2330 = vmatprep.subr.mxu0 0.0
        %2331 = vmatpush1.msra.mxu0 0.0
        %2332 = vmatprep.subr.mxu0 0.0
        %2333 = vmatpush1.msra.mxu0 0.0
        %2334 = vmatprep.subr.mxu0 0.0
        %2335 = vmatpush1.msra.mxu0 0.0
        %2336 = vmatprep.subr.mxu0 0.0
        %2337 = vmatpush1.msra.mxu0 0.0
        %2338 = vmatprep.subr.mxu0 0.0
        %2339 = vmatpush1.msra.mxu0 0.0
        %2340 = vmatprep.subr.mxu0 0.0
        %2341 = vmatpush1.msra.mxu0 0.0
        %2342 = vmatprep.subr.mxu0 0.0
        %2343 = vmatpush1.msra.mxu0 0.0
        %2344 = vmatprep.subr.mxu0 0.0
        %2345 = vmatpush1.msra.mxu0 0.0
        %2346 = vmatprep.subr.mxu0 0.0
        %2347 = vmatpush1.msra.mxu0 0.0
        %2348 = vmatprep.subr.mxu0 0.0
        %2349 = vmatpush1.msra.mxu0 0.0
        %2350 = vmatprep.subr.mxu0 0.0
        %2351 = vmatpush1.msra.mxu0 0.0
        %2352 = vmatprep.subr.mxu0 0.0
        %2353 = vmatpush1.msra.mxu0 0.0
        %2354 = vmatprep.subr.mxu0 0.0
        %2355 = vmatpush1.msra.mxu0 0.0
        %2356 = vmatprep.subr.mxu0 0.0
        %2357 = vmatpush1.msra.mxu0 0.0
        %2358 = vmatprep.subr.mxu0 0.0
        %2359 = vmatpush1.msra.mxu0 0.0
        %2360 = vmatprep.subr.mxu0 0.0
        %2361 = vmatpush1.msra.mxu0 0.0
        %2362 = vmatprep.subr.mxu0 0.0
        %2363 = vmatpush1.msra.mxu0 0.0
        %2364 = vmatprep.subr.mxu0 0.0
        %2365 = vmatpush1.msra.mxu0 0.0
        %2366 = vmatprep.subr.mxu0 0.0
        %2367 = vmatpush1.msra.mxu0 0.0
        %2368 = vmatprep.subr.mxu0 0.0
        %2369 = vmatpush1.msra.mxu0 0.0
        %2370 = vmatprep.subr.mxu0 0.0
        %2371 = vmatpush1.msra.mxu0 0.0
        %2372 = vmatprep.subr.mxu0 0.0
        %2373 = vmatpush1.msra.mxu0 0.0
        %2374 = vmatprep.subr.mxu0 0.0
        %2375 = vmatpush1.msra.mxu0 0.0
        %2376 = vmatprep.subr.mxu0 0.0
        %2377 = vmatpush1.msra.mxu0 0.0
        %2378 = vmatprep.subr.mxu0 0.0
        %2379 = vmatpush1.msra.mxu0 0.0
        %2380 = vmatprep.subr.mxu0 0.0
        %2381 = vmatpush1.msra.mxu0 0.0
        %2382 = vmatprep.subr.mxu0 0.0
        %2383 = vmatpush1.msra.mxu0 0.0
        %2384 = vmatprep.subr.mxu0 0.0
        %2385 = vmatpush1.msra.mxu0 0.0
        %2386 = vmatprep.subr.mxu0 0.0
        %2387 = vmatpush1.msra.mxu0 0.0
        %2388 = vmatprep.subr.mxu0 0.0
        %2389 = vmatpush1.msra.mxu0 0.0
        %2390 = vmatprep.subr.mxu0 0.0
        %2391 = vmatpush1.msra.mxu0 0.0
        %2392 = vmatprep.mubr.f32.mxu0 0.0
        %2393 = vmatmul.mubr.f32.gmra.mrb[0].mxu0 %v2326
        %v2394 = vpop.f32.mrb[0].mxu0
        %v2395 = vadd.f32 0.0, %v2394
        %v2396 = vpop.f32.mrb[0].mxu0
        %2397 = vdwg.mxu0
        %v2399 = vsel %vm1911, %v2237, 0
        %2401 = vmatprep.subr.mxu0 0.0
        %2402 = vmatpush1.msra.mxu0 %v1219
        %2403 = vmatprep.subr.mxu0 0.0
        %2404 = vmatpush1.msra.mxu0 0.0
        %2405 = vmatprep.subr.mxu0 0.0
        %2406 = vmatpush1.msra.mxu0 0.0
        %2407 = vmatprep.subr.mxu0 0.0
        %2408 = vmatpush1.msra.mxu0 0.0
        %2409 = vmatprep.subr.mxu0 0.0
        %2410 = vmatpush1.msra.mxu0 0.0
        %2411 = vmatprep.subr.mxu0 0.0
        %2412 = vmatpush1.msra.mxu0 0.0
        %2413 = vmatprep.subr.mxu0 0.0
        %2414 = vmatpush1.msra.mxu0 0.0
        %2415 = vmatprep.subr.mxu0 0.0
        %2416 = vmatpush1.msra.mxu0 0.0
        %2417 = vmatprep.subr.mxu0 0.0
        %2418 = vmatpush1.msra.mxu0 0.0
        %2419 = vmatprep.subr.mxu0 0.0
        %2420 = vmatpush1.msra.mxu0 0.0
        %2421 = vmatprep.subr.mxu0 0.0
        %2422 = vmatpush1.msra.mxu0 0.0
        %2423 = vmatprep.subr.mxu0 0.0
        %2424 = vmatpush1.msra.mxu0 0.0
        %2425 = vmatprep.subr.mxu0 0.0
        %2426 = vmatpush1.msra.mxu0 0.0
        %2427 = vmatprep.subr.mxu0 0.0
        %2428 = vmatpush1.msra.mxu0 0.0
        %2429 = vmatprep.subr.mxu0 0.0
        %2430 = vmatpush1.msra.mxu0 0.0
        %2431 = vmatprep.subr.mxu0 0.0
        %2432 = vmatpush1.msra.mxu0 0.0
        %2433 = vmatprep.subr.mxu0 0.0
        %2434 = vmatpush1.msra.mxu0 0.0
        %2435 = vmatprep.subr.mxu0 0.0
        %2436 = vmatpush1.msra.mxu0 0.0
        %2437 = vmatprep.subr.mxu0 0.0
        %2438 = vmatpush1.msra.mxu0 0.0
        %2439 = vmatprep.subr.mxu0 0.0
        %2440 = vmatpush1.msra.mxu0 0.0
        %2441 = vmatprep.subr.mxu0 0.0
        %2442 = vmatpush1.msra.mxu0 0.0
        %2443 = vmatprep.subr.mxu0 0.0
        %2444 = vmatpush1.msra.mxu0 0.0
        %2445 = vmatprep.subr.mxu0 0.0
        %2446 = vmatpush1.msra.mxu0 0.0
        %2447 = vmatprep.subr.mxu0 0.0
        %2448 = vmatpush1.msra.mxu0 0.0
        %2449 = vmatprep.subr.mxu0 0.0
        %2450 = vmatpush1.msra.mxu0 0.0
        %2451 = vmatprep.subr.mxu0 0.0
        %2452 = vmatpush1.msra.mxu0 0.0
        %2453 = vmatprep.subr.mxu0 0.0
        %2454 = vmatpush1.msra.mxu0 0.0
        %2455 = vmatprep.subr.mxu0 0.0
        %2456 = vmatpush1.msra.mxu0 0.0
        %2457 = vmatprep.subr.mxu0 0.0
        %2458 = vmatpush1.msra.mxu0 0.0
        %2459 = vmatprep.subr.mxu0 0.0
        %2460 = vmatpush1.msra.mxu0 0.0
        %2461 = vmatprep.subr.mxu0 0.0
        %2462 = vmatpush1.msra.mxu0 0.0
        %2463 = vmatprep.subr.mxu0 0.0
        %2464 = vmatpush1.msra.mxu0 0.0
        %2465 = vmatprep.mubr.f32.mxu0 0.0
        %2466 = vmatmul.mubr.f32.gmra.mrb[0].mxu0 %v2399
        %v2467 = vpop.f32.mrb[0].mxu0
        %v2468 = vadd.f32 0.0, %v2467
        %v2469 = vpop.f32.mrb[0].mxu0
        %2470 = vdwg.mxu0
        %v2472 = vsel %vm1911, %v2239, 0
        %2474 = vmatprep.subr.mxu0 0.0
        %2475 = vmatpush1.msra.mxu0 %v1289
        %2476 = vmatprep.subr.mxu0 0.0
        %2477 = vmatpush1.msra.mxu0 0.0
        %2478 = vmatprep.subr.mxu0 0.0
        %2479 = vmatpush1.msra.mxu0 0.0
        %2480 = vmatprep.subr.mxu0 0.0
        %2481 = vmatpush1.msra.mxu0 0.0
        %2482 = vmatprep.subr.mxu0 0.0
        %2483 = vmatpush1.msra.mxu0 0.0
        %2484 = vmatprep.subr.mxu0 0.0
        %2485 = vmatpush1.msra.mxu0 0.0
        %2486 = vmatprep.subr.mxu0 0.0
        %2487 = vmatpush1.msra.mxu0 0.0
        %2488 = vmatprep.subr.mxu0 0.0
        %2489 = vmatpush1.msra.mxu0 0.0
        %2490 = vmatprep.subr.mxu0 0.0
        %2491 = vmatpush1.msra.mxu0 0.0
        %2492 = vmatprep.subr.mxu0 0.0
        %2493 = vmatpush1.msra.mxu0 0.0
        %2494 = vmatprep.subr.mxu0 0.0
        %2495 = vmatpush1.msra.mxu0 0.0
        %2496 = vmatprep.subr.mxu0 0.0
        %2497 = vmatpush1.msra.mxu0 0.0
        %2498 = vmatprep.subr.mxu0 0.0
        %2499 = vmatpush1.msra.mxu0 0.0
        %2500 = vmatprep.subr.mxu0 0.0
        %2501 = vmatpush1.msra.mxu0 0.0
        %2502 = vmatprep.subr.mxu0 0.0
        %2503 = vmatpush1.msra.mxu0 0.0
        %2504 = vmatprep.subr.mxu0 0.0
        %2505 = vmatpush1.msra.mxu0 0.0
        %2506 = vmatprep.subr.mxu0 0.0
        %2507 = vmatpush1.msra.mxu0 0.0
        %2508 = vmatprep.subr.mxu0 0.0
        %2509 = vmatpush1.msra.mxu0 0.0
        %2510 = vmatprep.subr.mxu0 0.0
        %2511 = vmatpush1.msra.mxu0 0.0
        %2512 = vmatprep.subr.mxu0 0.0
        %2513 = vmatpush1.msra.mxu0 0.0
        %2514 = vmatprep.subr.mxu0 0.0
        %2515 = vmatpush1.msra.mxu0 0.0
        %2516 = vmatprep.subr.mxu0 0.0
        %2517 = vmatpush1.msra.mxu0 0.0
        %2518 = vmatprep.subr.mxu0 0.0
        %2519 = vmatpush1.msra.mxu0 0.0
        %2520 = vmatprep.subr.mxu0 0.0
        %2521 = vmatpush1.msra.mxu0 0.0
        %2522 = vmatprep.subr.mxu0 0.0
        %2523 = vmatpush1.msra.mxu0 0.0
        %2524 = vmatprep.subr.mxu0 0.0
        %2525 = vmatpush1.msra.mxu0 0.0
        %2526 = vmatprep.subr.mxu0 0.0
        %2527 = vmatpush1.msra.mxu0 0.0
        %2528 = vmatprep.subr.mxu0 0.0
        %2529 = vmatpush1.msra.mxu0 0.0
        %2530 = vmatprep.subr.mxu0 0.0
        %2531 = vmatpush1.msra.mxu0 0.0
        %2532 = vmatprep.subr.mxu0 0.0
        %2533 = vmatpush1.msra.mxu0 0.0
        %2534 = vmatprep.subr.mxu0 0.0
        %2535 = vmatpush1.msra.mxu0 0.0
        %2536 = vmatprep.subr.mxu0 0.0
        %2537 = vmatpush1.msra.mxu0 0.0
        %2538 = vmatprep.mubr.f32.mxu0 0.0
        %2539 = vmatmul.mubr.f32.gmra.mrb[0].mxu0 %v2472
        %v2540 = vpop.f32.mrb[0].mxu0
        %v2541 = vadd.f32 0.0, %v2540
        %v2542 = vpop.f32.mrb[0].mxu0
        %2543 = vdwg.mxu0
        %v2544 = vrcp.pop %v2242
        %v2545 = vrcp.pop %v2245
        %v2546 = vrcp.pop %v2248
        %v2547 = vrcp.pop %v2251
        %v2548 = vmul.f32 %v2322, %v2544
        %v2549 = vmul.f32 %v2395, %v2545
        %v2550 = vmul.f32 %v2468, %v2546
        %v2551 = vmul.f32 %v2541, %v2547
        %v2552 = vld [vmem:[%s6] sm:$0xff]
        %v2553 = vld [vmem:[%s6 + $0x8] sm:$0xff]
        %v2554 = vld [vmem:[%s6 + $0x10] sm:$0xff]
        %v2555 = vld [vmem:[%s6 + $0x18] sm:$0xff]
        %v2557 = vsel %vm1911, %v2548, 0
        %2559 = vmatprep.subr.mxu0 0.0
        %2560 = vmatpush1.msra.mxu0 %v2552
        %2561 = vmatprep.subr.mxu0 0.0
        %2562 = vmatpush1.msra.mxu0 0.0
        %2563 = vmatprep.subr.mxu0 0.0
        %2564 = vmatpush1.msra.mxu0 0.0
        %2565 = vmatprep.subr.mxu0 0.0
        %2566 = vmatpush1.msra.mxu0 0.0
        %2567 = vmatprep.subr.mxu0 0.0
        %2568 = vmatpush1.msra.mxu0 0.0
        %2569 = vmatprep.subr.mxu0 0.0
        %2570 = vmatpush1.msra.mxu0 0.0
        %2571 = vmatprep.subr.mxu0 0.0
        %2572 = vmatpush1.msra.mxu0 0.0
        %2573 = vmatprep.subr.mxu0 0.0
        %2574 = vmatpush1.msra.mxu0 0.0
        %2575 = vmatprep.subr.mxu0 0.0
        %2576 = vmatpush1.msra.mxu0 0.0
        %2577 = vmatprep.subr.mxu0 0.0
        %2578 = vmatpush1.msra.mxu0 0.0
        %2579 = vmatprep.subr.mxu0 0.0
        %2580 = vmatpush1.msra.mxu0 0.0
        %2581 = vmatprep.subr.mxu0 0.0
        %2582 = vmatpush1.msra.mxu0 0.0
        %2583 = vmatprep.subr.mxu0 0.0
        %2584 = vmatpush1.msra.mxu0 0.0
        %2585 = vmatprep.subr.mxu0 0.0
        %2586 = vmatpush1.msra.mxu0 0.0
        %2587 = vmatprep.subr.mxu0 0.0
        %2588 = vmatpush1.msra.mxu0 0.0
        %2589 = vmatprep.subr.mxu0 0.0
        %2590 = vmatpush1.msra.mxu0 0.0
        %2591 = vmatprep.subr.mxu0 0.0
        %2592 = vmatpush1.msra.mxu0 0.0
        %2593 = vmatprep.subr.mxu0 0.0
        %2594 = vmatpush1.msra.mxu0 0.0
        %2595 = vmatprep.subr.mxu0 0.0
        %2596 = vmatpush1.msra.mxu0 0.0
        %2597 = vmatprep.subr.mxu0 0.0
        %2598 = vmatpush1.msra.mxu0 0.0
        %2599 = vmatprep.subr.mxu0 0.0
        %2600 = vmatpush1.msra.mxu0 0.0
        %2601 = vmatprep.subr.mxu0 0.0
        %2602 = vmatpush1.msra.mxu0 0.0
        %2603 = vmatprep.subr.mxu0 0.0
        %2604 = vmatpush1.msra.mxu0 0.0
        %2605 = vmatprep.subr.mxu0 0.0
        %2606 = vmatpush1.msra.mxu0 0.0
        %2607 = vmatprep.subr.mxu0 0.0
        %2608 = vmatpush1.msra.mxu0 0.0
        %2609 = vmatprep.subr.mxu0 0.0
        %2610 = vmatpush1.msra.mxu0 0.0
        %2611 = vmatprep.subr.mxu0 0.0
        %2612 = vmatpush1.msra.mxu0 0.0
        %2613 = vmatprep.subr.mxu0 0.0
        %2614 = vmatpush1.msra.mxu0 0.0
        %2615 = vmatprep.subr.mxu0 0.0
        %2616 = vmatpush1.msra.mxu0 0.0
        %2617 = vmatprep.subr.mxu0 0.0
        %2618 = vmatpush1.msra.mxu0 0.0
        %2619 = vmatprep.subr.mxu0 0.0
        %2620 = vmatpush1.msra.mxu0 0.0
        %2621 = vmatprep.subr.mxu0 0.0
        %2622 = vmatpush1.msra.mxu0 0.0
        %2623 = vmatprep.mubr.f32.mxu0 0.0
        %2624 = vmatmul.mubr.f32.gmra.mrb[0].mxu0 %v2557
        %v2625 = vpop.f32.mrb[0].mxu0
        %v2626 = vadd.f32 0.0, %v2625
        %v2627 = vpop.f32.mrb[0].mxu0
        %2628 = vdwg.mxu0
        %v2630 = vsel %vm1911, %v2549, 0
        %2632 = vmatprep.subr.mxu0 0.0
        %2633 = vmatpush1.msra.mxu0 %v2553
        %2634 = vmatprep.subr.mxu0 0.0
        %2635 = vmatpush1.msra.mxu0 0.0
        %2636 = vmatprep.subr.mxu0 0.0
        %2637 = vmatpush1.msra.mxu0 0.0
        %2638 = vmatprep.subr.mxu0 0.0
        %2639 = vmatpush1.msra.mxu0 0.0
        %2640 = vmatprep.subr.mxu0 0.0
        %2641 = vmatpush1.msra.mxu0 0.0
        %2642 = vmatprep.subr.mxu0 0.0
        %2643 = vmatpush1.msra.mxu0 0.0
        %2644 = vmatprep.subr.mxu0 0.0
        %2645 = vmatpush1.msra.mxu0 0.0
        %2646 = vmatprep.subr.mxu0 0.0
        %2647 = vmatpush1.msra.mxu0 0.0
        %2648 = vmatprep.subr.mxu0 0.0
        %2649 = vmatpush1.msra.mxu0 0.0
        %2650 = vmatprep.subr.mxu0 0.0
        %2651 = vmatpush1.msra.mxu0 0.0
        %2652 = vmatprep.subr.mxu0 0.0
        %2653 = vmatpush1.msra.mxu0 0.0
        %2654 = vmatprep.subr.mxu0 0.0
        %2655 = vmatpush1.msra.mxu0 0.0
        %2656 = vmatprep.subr.mxu0 0.0
        %2657 = vmatpush1.msra.mxu0 0.0
        %2658 = vmatprep.subr.mxu0 0.0
        %2659 = vmatpush1.msra.mxu0 0.0
        %2660 = vmatprep.subr.mxu0 0.0
        %2661 = vmatpush1.msra.mxu0 0.0
        %2662 = vmatprep.subr.mxu0 0.0
        %2663 = vmatpush1.msra.mxu0 0.0
        %2664 = vmatprep.subr.mxu0 0.0
        %2665 = vmatpush1.msra.mxu0 0.0
        %2666 = vmatprep.subr.mxu0 0.0
        %2667 = vmatpush1.msra.mxu0 0.0
        %2668 = vmatprep.subr.mxu0 0.0
        %2669 = vmatpush1.msra.mxu0 0.0
        %2670 = vmatprep.subr.mxu0 0.0
        %2671 = vmatpush1.msra.mxu0 0.0
        %2672 = vmatprep.subr.mxu0 0.0
        %2673 = vmatpush1.msra.mxu0 0.0
        %2674 = vmatprep.subr.mxu0 0.0
        %2675 = vmatpush1.msra.mxu0 0.0
        %2676 = vmatprep.subr.mxu0 0.0
        %2677 = vmatpush1.msra.mxu0 0.0
        %2678 = vmatprep.subr.mxu0 0.0
        %2679 = vmatpush1.msra.mxu0 0.0
        %2680 = vmatprep.subr.mxu0 0.0
        %2681 = vmatpush1.msra.mxu0 0.0
        %2682 = vmatprep.subr.mxu0 0.0
        %2683 = vmatpush1.msra.mxu0 0.0
        %2684 = vmatprep.subr.mxu0 0.0
        %2685 = vmatpush1.msra.mxu0 0.0
        %2686 = vmatprep.subr.mxu0 0.0
        %2687 = vmatpush1.msra.mxu0 0.0
        %2688 = vmatprep.subr.mxu0 0.0
        %2689 = vmatpush1.msra.mxu0 0.0
        %2690 = vmatprep.subr.mxu0 0.0
        %2691 = vmatpush1.msra.mxu0 0.0
        %2692 = vmatprep.subr.mxu0 0.0
        %2693 = vmatpush1.msra.mxu0 0.0
        %2694 = vmatprep.subr.mxu0 0.0
        %2695 = vmatpush1.msra.mxu0 0.0
        %2696 = vmatprep.mubr.f32.mxu0 0.0
        %2697 = vmatmul.mubr.f32.gmra.mrb[0].mxu0 %v2630
        %v2698 = vpop.f32.mrb[0].mxu0
        %v2699 = vadd.f32 0.0, %v2698
        %v2700 = vpop.f32.mrb[0].mxu0
        %2701 = vdwg.mxu0
        %v2703 = vsel %vm1911, %v2550, 0
        %2705 = vmatprep.subr.mxu0 0.0
        %2706 = vmatpush1.msra.mxu0 %v2554
        %2707 = vmatprep.subr.mxu0 0.0
        %2708 = vmatpush1.msra.mxu0 0.0
        %2709 = vmatprep.subr.mxu0 0.0
        %2710 = vmatpush1.msra.mxu0 0.0
        %2711 = vmatprep.subr.mxu0 0.0
        %2712 = vmatpush1.msra.mxu0 0.0
        %2713 = vmatprep.subr.mxu0 0.0
        %2714 = vmatpush1.msra.mxu0 0.0
        %2715 = vmatprep.subr.mxu0 0.0
        %2716 = vmatpush1.msra.mxu0 0.0
        %2717 = vmatprep.subr.mxu0 0.0
        %2718 = vmatpush1.msra.mxu0 0.0
        %2719 = vmatprep.subr.mxu0 0.0
        %2720 = vmatpush1.msra.mxu0 0.0
        %2721 = vmatprep.subr.mxu0 0.0
        %2722 = vmatpush1.msra.mxu0 0.0
        %2723 = vmatprep.subr.mxu0 0.0
        %2724 = vmatpush1.msra.mxu0 0.0
        %2725 = vmatprep.subr.mxu0 0.0
        %2726 = vmatpush1.msra.mxu0 0.0
        %2727 = vmatprep.subr.mxu0 0.0
        %2728 = vmatpush1.msra.mxu0 0.0
        %2729 = vmatprep.subr.mxu0 0.0
        %2730 = vmatpush1.msra.mxu0 0.0
        %2731 = vmatprep.subr.mxu0 0.0
        %2732 = vmatpush1.msra.mxu0 0.0
        %2733 = vmatprep.subr.mxu0 0.0
        %2734 = vmatpush1.msra.mxu0 0.0
        %2735 = vmatprep.subr.mxu0 0.0
        %2736 = vmatpush1.msra.mxu0 0.0
        %2737 = vmatprep.subr.mxu0 0.0
        %2738 = vmatpush1.msra.mxu0 0.0
        %2739 = vmatprep.subr.mxu0 0.0
        %2740 = vmatpush1.msra.mxu0 0.0
        %2741 = vmatprep.subr.mxu0 0.0
        %2742 = vmatpush1.msra.mxu0 0.0
        %2743 = vmatprep.subr.mxu0 0.0
        %2744 = vmatpush1.msra.mxu0 0.0
        %2745 = vmatprep.subr.mxu0 0.0
        %2746 = vmatpush1.msra.mxu0 0.0
        %2747 = vmatprep.subr.mxu0 0.0
        %2748 = vmatpush1.msra.mxu0 0.0
        %2749 = vmatprep.subr.mxu0 0.0
        %2750 = vmatpush1.msra.mxu0 0.0
        %2751 = vmatprep.subr.mxu0 0.0
        %2752 = vmatpush1.msra.mxu0 0.0
        %2753 = vmatprep.subr.mxu0 0.0
        %2754 = vmatpush1.msra.mxu0 0.0
        %2755 = vmatprep.subr.mxu0 0.0
        %2756 = vmatpush1.msra.mxu0 0.0
        %2757 = vmatprep.subr.mxu0 0.0
        %2758 = vmatpush1.msra.mxu0 0.0
        %2759 = vmatprep.subr.mxu0 0.0
        %2760 = vmatpush1.msra.mxu0 0.0
        %2761 = vmatprep.subr.mxu0 0.0
        %2762 = vmatpush1.msra.mxu0 0.0
        %2763 = vmatprep.subr.mxu0 0.0
        %2764 = vmatpush1.msra.mxu0 0.0
        %2765 = vmatprep.subr.mxu0 0.0
        %2766 = vmatpush1.msra.mxu0 0.0
        %2767 = vmatprep.subr.mxu0 0.0
        %2768 = vmatpush1.msra.mxu0 0.0
        %2769 = vmatprep.mubr.f32.mxu0 0.0
        %2770 = vmatmul.mubr.f32.gmra.mrb[0].mxu0 %v2703
        %v2771 = vpop.f32.mrb[0].mxu0
        %v2772 = vadd.f32 0.0, %v2771
        %v2773 = vpop.f32.mrb[0].mxu0
        %2774 = vdwg.mxu0
        %v2776 = vsel %vm1911, %v2551, 0
        %2778 = vmatprep.subr.mxu0 0.0
        %2779 = vmatpush1.msra.mxu0 %v2555
        %2780 = vmatprep.subr.mxu0 0.0
        %2781 = vmatpush1.msra.mxu0 0.0
        %2782 = vmatprep.subr.mxu0 0.0
        %2783 = vmatpush1.msra.mxu0 0.0
        %2784 = vmatprep.subr.mxu0 0.0
        %2785 = vmatpush1.msra.mxu0 0.0
        %2786 = vmatprep.subr.mxu0 0.0
        %2787 = vmatpush1.msra.mxu0 0.0
        %2788 = vmatprep.subr.mxu0 0.0
        %2789 = vmatpush1.msra.mxu0 0.0
        %2790 = vmatprep.subr.mxu0 0.0
        %2791 = vmatpush1.msra.mxu0 0.0
        %2792 = vmatprep.subr.mxu0 0.0
        %2793 = vmatpush1.msra.mxu0 0.0
        %2794 = vmatprep.subr.mxu0 0.0
        %2795 = vmatpush1.msra.mxu0 0.0
        %2796 = vmatprep.subr.mxu0 0.0
        %2797 = vmatpush1.msra.mxu0 0.0
        %2798 = vmatprep.subr.mxu0 0.0
        %2799 = vmatpush1.msra.mxu0 0.0
        %2800 = vmatprep.subr.mxu0 0.0
        %2801 = vmatpush1.msra.mxu0 0.0
        %2802 = vmatprep.subr.mxu0 0.0
        %2803 = vmatpush1.msra.mxu0 0.0
        %2804 = vmatprep.subr.mxu0 0.0
        %2805 = vmatpush1.msra.mxu0 0.0
        %2806 = vmatprep.subr.mxu0 0.0
        %2807 = vmatpush1.msra.mxu0 0.0
        %2808 = vmatprep.subr.mxu0 0.0
        %2809 = vmatpush1.msra.mxu0 0.0
        %2810 = vmatprep.subr.mxu0 0.0
        %2811 = vmatpush1.msra.mxu0 0.0
        %2812 = vmatprep.subr.mxu0 0.0
        %2813 = vmatpush1.msra.mxu0 0.0
        %2814 = vmatprep.subr.mxu0 0.0
        %2815 = vmatpush1.msra.mxu0 0.0
        %2816 = vmatprep.subr.mxu0 0.0
        %2817 = vmatpush1.msra.mxu0 0.0
        %2818 = vmatprep.subr.mxu0 0.0
        %2819 = vmatpush1.msra.mxu0 0.0
        %2820 = vmatprep.subr.mxu0 0.0
        %2821 = vmatpush1.msra.mxu0 0.0
        %2822 = vmatprep.subr.mxu0 0.0
        %2823 = vmatpush1.msra.mxu0 0.0
        %2824 = vmatprep.subr.mxu0 0.0
        %2825 = vmatpush1.msra.mxu0 0.0
        %2826 = vmatprep.subr.mxu0 0.0
        %2827 = vmatpush1.msra.mxu0 0.0
        %2828 = vmatprep.subr.mxu0 0.0
        %2829 = vmatpush1.msra.mxu0 0.0
        %2830 = vmatprep.subr.mxu0 0.0
        %2831 = vmatpush1.msra.mxu0 0.0
        %2832 = vmatprep.subr.mxu0 0.0
        %2833 = vmatpush1.msra.mxu0 0.0
        %2834 = vmatprep.subr.mxu0 0.0
        %2835 = vmatpush1.msra.mxu0 0.0
        %2836 = vmatprep.subr.mxu0 0.0
        %2837 = vmatpush1.msra.mxu0 0.0
        %2838 = vmatprep.subr.mxu0 0.0
        %2839 = vmatpush1.msra.mxu0 0.0
        %2840 = vmatprep.subr.mxu0 0.0
        %2841 = vmatpush1.msra.mxu0 0.0
        %2842 = vmatprep.mubr.f32.mxu0 0.0
        %2843 = vmatmul.mubr.f32.gmra.mrb[0].mxu0 %v2776
        %v2844 = vpop.f32.mrb[0].mxu0
        %v2845 = vadd.f32 0.0, %v2844
        %v2846 = vpop.f32.mrb[0].mxu0
        %2847 = vdwg.mxu0
        %v2848 = vsel %vm385, %v2626, 0.0
        %v2849 = vsel %vm385, %v2699, 0.0
        %v2850 = vadd.f32 %v2848, %v2849
        %v2851 = vsel %vm385, %v2772, 0.0
        %v2852 = vadd.f32 %v2850, %v2851
        %v2853 = vsel %vm385, %v2845, 0.0
        %v2854 = vadd.f32 %v2852, %v2853
        %v2855 = vadd.f32 %v2854, %v382
        %v2856 = vld [vmem:[%s8] sm:$0x1]
        %v2857 = vmul.f32 %v2855, %v2855
        %v2858 = vsel %vm385, %v2857, 0.0
        %2859 = vadd.xlane.f32.xlu0 %v2858
        %v2860 = vpop.xlane.xlu0 %2859
        %v2861 = vmul.f32 %v2860, %v389
        %v2862 = vadd.f32 %v2861, 1e-05
        %v2863 = vrsqrt.pop %v2862
        %v2864 = vmul.f32 %v2855, %v2863
        %v2866 = vlaneseq
        %v2867 = vshrl.u32 %v2866, 7
        %v2868 = vsub.s32 0, %v2867
        %v2869 = vrot.slane %v2856, %v2868
        %v2871 = vmul.f32 %v2864, %v2869
        %v2872 = vld [vmem:[%s9] sm:$0xff]
        %v2873 = vld [vmem:[%s9 + $0x8] sm:$0xff]
        %v2874 = vld [vmem:[%s9 + $0x10] sm:$0xff]
        %v2875 = vld [vmem:[%s9 + $0x18] sm:$0xff]
        %v2877 = vsel %vm385, %v2871, 0
        %2879 = vmatprep.subr.mxu0 0.0
        %2880 = vmatpush1.msra.mxu0 %v2872
        %2881 = vmatprep.subr.mxu0 0.0
        %2882 = vmatpush1.msra.mxu0 %v2873
        %2883 = vmatprep.subr.mxu0 0.0
        %2884 = vmatpush1.msra.mxu0 %v2874
        %2885 = vmatprep.subr.mxu0 0.0
        %2886 = vmatpush1.msra.mxu0 %v2875
        %2887 = vmatprep.subr.mxu0 0.0
        %2888 = vmatpush1.msra.mxu0 0.0
        %2889 = vmatprep.subr.mxu0 0.0
        %2890 = vmatpush1.msra.mxu0 0.0
        %2891 = vmatprep.subr.mxu0 0.0
        %2892 = vmatpush1.msra.mxu0 0.0
        %2893 = vmatprep.subr.mxu0 0.0
        %2894 = vmatpush1.msra.mxu0 0.0
        %2895 = vmatprep.subr.mxu0 0.0
        %2896 = vmatpush1.msra.mxu0 0.0
        %2897 = vmatprep.subr.mxu0 0.0
        %2898 = vmatpush1.msra.mxu0 0.0
        %2899 = vmatprep.subr.mxu0 0.0
        %2900 = vmatpush1.msra.mxu0 0.0
        %2901 = vmatprep.subr.mxu0 0.0
        %2902 = vmatpush1.msra.mxu0 0.0
        %2903 = vmatprep.subr.mxu0 0.0
        %2904 = vmatpush1.msra.mxu0 0.0
        %2905 = vmatprep.subr.mxu0 0.0
        %2906 = vmatpush1.msra.mxu0 0.0
        %2907 = vmatprep.subr.mxu0 0.0
        %2908 = vmatpush1.msra.mxu0 0.0
        %2909 = vmatprep.subr.mxu0 0.0
        %2910 = vmatpush1.msra.mxu0 0.0
        %2911 = vmatprep.subr.mxu0 0.0
        %2912 = vmatpush1.msra.mxu0 0.0
        %2913 = vmatprep.subr.mxu0 0.0
        %2914 = vmatpush1.msra.mxu0 0.0
        %2915 = vmatprep.subr.mxu0 0.0
        %2916 = vmatpush1.msra.mxu0 0.0
        %2917 = vmatprep.subr.mxu0 0.0
        %2918 = vmatpush1.msra.mxu0 0.0
        %2919 = vmatprep.subr.mxu0 0.0
        %2920 = vmatpush1.msra.mxu0 0.0
        %2921 = vmatprep.subr.mxu0 0.0
        %2922 = vmatpush1.msra.mxu0 0.0
        %2923 = vmatprep.subr.mxu0 0.0
        %2924 = vmatpush1.msra.mxu0 0.0
        %2925 = vmatprep.subr.mxu0 0.0
        %2926 = vmatpush1.msra.mxu0 0.0
        %2927 = vmatprep.subr.mxu0 0.0
        %2928 = vmatpush1.msra.mxu0 0.0
        %2929 = vmatprep.subr.mxu0 0.0
        %2930 = vmatpush1.msra.mxu0 0.0
        %2931 = vmatprep.subr.mxu0 0.0
        %2932 = vmatpush1.msra.mxu0 0.0
        %2933 = vmatprep.subr.mxu0 0.0
        %2934 = vmatpush1.msra.mxu0 0.0
        %2935 = vmatprep.subr.mxu0 0.0
        %2936 = vmatpush1.msra.mxu0 0.0
        %2937 = vmatprep.subr.mxu0 0.0
        %2938 = vmatpush1.msra.mxu0 0.0
        %2939 = vmatprep.subr.mxu0 0.0
        %2940 = vmatpush1.msra.mxu0 0.0
        %2941 = vmatprep.subr.mxu0 0.0
        %2942 = vmatpush1.msra.mxu0 0.0
        %2943 = vmatprep.mubr.f32.mxu0 0.0
        %2944 = vmatmul.mubr.f32.gmra.mrb[0].mxu0 %v2877
        %v2945 = vpop.f32.mrb[0].mxu0
        %v2946 = vadd.f32 0.0, %v2945
        %v2947 = vpop.f32.mrb[0].mxu0
        %2948 = vdwg.mxu0
        %v2949 = vxor.u32 %v2946, 2147483648
        %v2950 = vmul.f32 %v2949, 1.442695
        %v2951 = vpow.pop %v2950
        %v2952 = vadd.f32 %v2951, 1.0
        %v2953 = vrcp.pop %v2952
        %v2954 = vmul.f32 1.0, %v2953
        %v2955 = vmul.f32 %v2946, %v2954
        %2957 = vrot.lane.b32.xlu0 %v2946, 64
        %v2958 = vpop.permute.xlu0 %2957
        %v2960 = vmul.f32 %v2955, %v2958
        %v2961 = vld [vmem:[%s10] sm:$0xff]
        %v2962 = vld [vmem:[%s10 + $0x8] sm:$0xff]
        %v2963 = vld [vmem:[%s10 + $0x10] sm:$0xff]
        %v2964 = vld [vmem:[%s10 + $0x18] sm:$0xff]
        %v2965 = vld [vmem:[%s10 + $0x20] sm:$0xff]
        %v2966 = vld [vmem:[%s10 + $0x28] sm:$0xff]
        %v2967 = vld [vmem:[%s10 + $0x30] sm:$0xff]
        %v2968 = vld [vmem:[%s10 + $0x38] sm:$0xff]
        %vm2969 = vcmask 523264
        %v2971 = vsel %vm2969, %v2960, 0
        %2973 = vmatprep.subr.mxu0 0.0
        %2974 = vmatpush1.msra.mxu0 %v2961
        %2975 = vmatprep.subr.mxu0 0.0
        %2976 = vmatpush1.msra.mxu0 %v2962
        %2977 = vmatprep.subr.mxu0 0.0
        %2978 = vmatpush1.msra.mxu0 %v2963
        %2979 = vmatprep.subr.mxu0 0.0
        %2980 = vmatpush1.msra.mxu0 %v2964
        %2981 = vmatprep.subr.mxu0 0.0
        %2982 = vmatpush1.msra.mxu0 %v2965
        %2983 = vmatprep.subr.mxu0 0.0
        %2984 = vmatpush1.msra.mxu0 %v2966
        %2985 = vmatprep.subr.mxu0 0.0
        %2986 = vmatpush1.msra.mxu0 %v2967
        %2987 = vmatprep.subr.mxu0 0.0
        %2988 = vmatpush1.msra.mxu0 %v2968
        %2989 = vmatprep.subr.mxu0 0.0
        %2990 = vmatpush1.msra.mxu0 0.0
        %2991 = vmatprep.subr.mxu0 0.0
        %2992 = vmatpush1.msra.mxu0 0.0
        %2993 = vmatprep.subr.mxu0 0.0
        %2994 = vmatpush1.msra.mxu0 0.0
        %2995 = vmatprep.subr.mxu0 0.0
        %2996 = vmatpush1.msra.mxu0 0.0
        %2997 = vmatprep.subr.mxu0 0.0
        %2998 = vmatpush1.msra.mxu0 0.0
        %2999 = vmatprep.subr.mxu0 0.0
        %3000 = vmatpush1.msra.mxu0 0.0
        %3001 = vmatprep.subr.mxu0 0.0
        %3002 = vmatpush1.msra.mxu0 0.0
        %3003 = vmatprep.subr.mxu0 0.0
        %3004 = vmatpush1.msra.mxu0 0.0
        %3005 = vmatprep.subr.mxu0 0.0
        %3006 = vmatpush1.msra.mxu0 0.0
        %3007 = vmatprep.subr.mxu0 0.0
        %3008 = vmatpush1.msra.mxu0 0.0
        %3009 = vmatprep.subr.mxu0 0.0
        %3010 = vmatpush1.msra.mxu0 0.0
        %3011 = vmatprep.subr.mxu0 0.0
        %3012 = vmatpush1.msra.mxu0 0.0
        %3013 = vmatprep.subr.mxu0 0.0
        %3014 = vmatpush1.msra.mxu0 0.0
        %3015 = vmatprep.subr.mxu0 0.0
        %3016 = vmatpush1.msra.mxu0 0.0
        %3017 = vmatprep.subr.mxu0 0.0
        %3018 = vmatpush1.msra.mxu0 0.0
        %3019 = vmatprep.subr.mxu0 0.0
        %3020 = vmatpush1.msra.mxu0 0.0
        %3021 = vmatprep.subr.mxu0 0.0
        %3022 = vmatpush1.msra.mxu0 0.0
        %3023 = vmatprep.subr.mxu0 0.0
        %3024 = vmatpush1.msra.mxu0 0.0
        %3025 = vmatprep.subr.mxu0 0.0
        %3026 = vmatpush1.msra.mxu0 0.0
        %3027 = vmatprep.subr.mxu0 0.0
        %3028 = vmatpush1.msra.mxu0 0.0
        %3029 = vmatprep.subr.mxu0 0.0
        %3030 = vmatpush1.msra.mxu0 0.0
        %3031 = vmatprep.subr.mxu0 0.0
        %3032 = vmatpush1.msra.mxu0 0.0
        %3033 = vmatprep.subr.mxu0 0.0
        %3034 = vmatpush1.msra.mxu0 0.0
        %3035 = vmatprep.subr.mxu0 0.0
        %3036 = vmatpush1.msra.mxu0 0.0
        %3037 = vmatprep.mubr.f32.mxu0 0.0
        %3038 = vmatmul.mubr.f32.gmra.mrb[0].mxu0 %v2971
        %v3039 = vpop.f32.mrb[0].mxu0
        %v3040 = vadd.f32 0.0, %v3039
        %v3041 = vpop.f32.mrb[0].mxu0
        %3042 = vdwg.mxu0
        %v3043 = vadd.f32 %v2855, %v3040
        %3044 = vst.msk [vmem:[%s377] sm:$0xff] %vm385, %v3043
        %s3045 = sand.u32 %s269, 1
        %s3046 = scalar_lea.sflag [#allocation3], %s3045
        %s3047 = sand.u32 %s269, 1
        %s3048 = smul.addr %s3047, 8
        %s3049 = scalar_lea.vmem [#allocation2], %s3048
        // Predicated region
        $region65: #{tpu_custom_call.1} parent=63 // pred_check
          %p3050 = pneg %p279
        $region66: #{tpu_custom_call.1} parent=63 // pred_check_branch
          %3052 = sbr.rel (%p3050) target = $region68
        $region67: #{tpu_custom_call.1} parent=63 // pred_region
          %s3054 = ssub.s32 128, 128
          %3055 = vsyncadd %s3046, %s3054
          %s3056 = smul.addr %s25, 128
          %s3057 = scalar_lea.hbm %s11, %s3056
          %s3059 = sshll.u32 %s3049, 4
          %s3060 = int_to_ptr.vmem [resolvable:$true] %s3059
          %3062 = dma.vmem_to_hbm [thread:$0]  %s3060, 128, %s3057, %s3046
        $region68: #{tpu_custom_call.1} parent=63 // pred_fallthru
          _
      $region64: #{tpu_custom_call.1} parent=5 // pred_fallthru
        _
      %p3063 = scmp.le.s32.totalorder 2, %s20
      // Predicated region
      $region69: #{tpu_custom_call.1} parent=5 // pred_check
        %p3064 = pneg %p3063
      $region70: #{tpu_custom_call.1} parent=5 // pred_check_branch
        %3066 = sbr.rel (%p3064) target = $region72
      $region71: #{tpu_custom_call.1} parent=5 // pred_region
        %s3067 = ssub.s32 %s20, 2
        // Predicated region
        $region73: #{tpu_custom_call.1} parent=71 // pred_check
          %p3068 = pneg %p285
        $region74: #{tpu_custom_call.1} parent=71 // pred_check_branch
          %3070 = sbr.rel (%p3068) target = $region76
        $region75: #{tpu_custom_call.1} parent=71 // pred_region
          %s3071 = sand.u32 %s270, 1
          %s3072 = scalar_lea.sflag [#allocation3], %s3071
          %s3073 = sand.u32 %s270, 1
          %s3074 = smul.addr %s3073, 8
          %s3075 = scalar_lea.vmem [#allocation2], %s3074
          %3076 = dma.done %s3072, 128
        $region76: #{tpu_custom_call.1} parent=71 // pred_fallthru
          _
      $region72: #{tpu_custom_call.1} parent=5 // pred_fallthru
        _
    $region6: #{tpu_custom_call.1} parent=1 // loop_footer
      %s24 = sadd.s32 1, %s20
    $region7: #{tpu_custom_call.1} parent=1 // loop_footer_branch
      %19 = sbr.rel target = $region3
    $region8: #{tpu_custom_call.1} parent=1 // loop_exit
      _
    %3077 = vsyncpa [#allocation3], 1
    %s3078 = scalar_lea.sflag [#allocation3], 1
    %3079 = vsyncpa %s3078, 1

</llo_original>
